<compile_context>
chip_gen: v7x
topology: tpu7x:2x2x1
jax: 0.10.0
libtpu: 0.0.40
codegen_flags: <defaults>
</compile_context>

<pallas_src>
import functools

import jax
import jax.numpy as jnp
from jax import lax
from jax.experimental import pallas as pl
from jax.experimental.pallas import tpu as pltpu

# -------------------- synthetic config (mirrors config.MODEL.*) -------------
IN_CHANNEL = 4           # config.MODEL.IN_CHANNEL
SPATIAL_OUT_CHANNEL = 8  # config.MODEL.SPATIAL.OUT_CHANNEL
KERNEL_SIZES = (1, 3)    # config.MODEL.SPATIAL.KERNEL_SIZES
HIDDEN_DIM = 32          # config.MODEL.TEMPORAL.HIDDEN_DIM
NUM_LAYERS = 1           # config.MODEL.TEMPORAL.NUM_LAYERS
MAX_DELTA_T = 8          # config.MODEL.TEMPORAL.MAX_DELTA_T
ADD_TYPE = 0             # config.MODEL.TEMPORAL.ADDING_TYPE (0 -> add)
PROMPT_TYPE = 0          # config.MODEL.PROMPT_TYPE

LN_EPS = 1e-5


def _round_up(x, m):
    return ((x + m - 1) // m) * m


# ============================ fused Pallas kernel ===========================
def fused_kernel(lt_ref, slab_ref, wconv_ref, wih_ref, bz_ref, whh_ref,
                 dt_ref, wpc_ref, bf_ref, o_ref, *, T, bb, HW, D):
    """Whole Model_Ver1 forward for one block of `bb` batch elements.

    Everything is kept in a (features, pixels) layout: pixels live in lanes.

    lt_ref   : (B,) int32 lead_time in SMEM (scalar prefetch)
    slab_ref : (1, KPAD, T*bb*HW)  host-built im2col slab (+ ones bias row)
    wconv_ref: (2*OC, KPAD)        transposed combined 1x1/3x3 conv weight
    wih_ref  : (4D, 2*OC)          transposed LSTM input weight
    bz_ref   : (4D, 1)             LSTM bias
    whh_ref  : (4D, D)             transposed LSTM recurrent weight
    dt_ref   : (D, MAX_DELTA_T)    transposed prompt table
    wpc_ref  : (D, 1)              ln_g*wp centered head vector
    bf_ref   : (1, 1)              folded head bias (bp + ln_b.wp)
    o_ref    : (1, 1, bb*HW)       lane-dense output
    """
    nb = pl.program_id(0)
    LB = bb * HW
    max_dt = dt_ref.shape[1]

    # ---- spatial extractor: 1x1 + 3x3 conv + bias + ReLU + channel-concat as
    #      ONE transposed matmul (2*OC, KPAD) @ (KPAD, T*LB) -> lane-dense.
    slab = slab_ref[0]                                       # (KPAD, T*LB)
    spat = jnp.maximum(
        jnp.dot(wconv_ref[...], slab, preferred_element_type=jnp.float32),
        0.0)                                                 # (2*OC, T*LB)

    # ---- LSTM input projection hoisted out of the time loop (one matmul for
    #      all T frames), bias added once.
    xproj = jnp.dot(wih_ref[...], spat,
                    preferred_element_type=jnp.float32) + bz_ref[...]  # (4D, T*LB)

    # ---- temporal extractor: per-pixel LSTM over T, last hidden state.
    #      Only the (4D,D)@(D,LB) recurrence remains in the loop; gate
    #      extraction is a static sublane slice (D=32, multiple of 8).
    #      T is small (4) -> unrolled with static lane slices of xproj.
    whhT = whh_ref[...]                                      # (4D, D)
    h = jnp.zeros((D, LB), jnp.float32)
    c = jnp.zeros((D, LB), jnp.float32)
    for t in range(T):
        z = xproj[:, t * LB:(t + 1) * LB]                    # static lane slice
        if t > 0:
            z = z + jnp.dot(whhT, h, preferred_element_type=jnp.float32)
        i_g = jax.nn.sigmoid(z[0 * D:1 * D, :])
        g_g = jnp.tanh(z[2 * D:3 * D, :])
        o_g = jax.nn.sigmoid(z[3 * D:4 * D, :])
        if t == 0:
            c = i_g * g_g                                    # c starts at 0
        else:
            f_g = jax.nn.sigmoid(z[1 * D:2 * D, :])
            c = f_g * c + i_g * g_g
        h = o_g * jnp.tanh(c)                                # (D, LB)

    # ---- PromptMixin (add_type=0) + folded PredictionHead.
    #      y = rsqrt(var+eps) * sum_d xe_d*wpc_d + bf, with wpc = g*wp - S/D,
    #      bf = bp + sum(ln_b*wp); one-pass mean/var over the sublane axis.
    inv_d = 1.0 / D
    wpc = wpc_ref[...]                                       # (D, 1)
    bf = bf_ref[...]                                         # (1, 1)
    dt = dt_ref[...]                                         # (D, MAX_DELTA_T)
    lane_iota = lax.broadcasted_iota(jnp.int32, (1, max_dt), 1)
    ys = []
    for j in range(bb):
        lt = lt_ref[nb * bb + j]                             # SMEM scalar
        idx = jnp.clip(lt - 7, 0, max_dt - 1)                # clamp (no OOB)
        # one-hot select of the prompt row, already in (D, 1) orientation
        p = jnp.sum(jnp.where(lane_iota == idx, dt, 0.0),
                    axis=1, keepdims=True)                   # (D, 1)
        xe = h[:, j * HW:(j + 1) * HW] + p                   # (D, HW)
        s1 = jnp.sum(xe, axis=0, keepdims=True)              # (1, HW)
        s2 = jnp.sum(xe * xe, axis=0, keepdims=True)         # (1, HW)
        sw = jnp.sum(xe * wpc, axis=0, keepdims=True)        # (1, HW)
        mean = s1 * inv_d
        var = s2 * inv_d - mean * mean
        ys.append(sw * lax.rsqrt(var + LN_EPS) + bf)         # (1, HW)
    yall = ys[0] if bb == 1 else jnp.concatenate(ys, axis=1)  # (1, LB)
    o_ref[...] = yall.reshape(1, 1, LB).astype(o_ref.dtype)


# ============================ wrapper =======================================
def fused_forward(slab, lead_time, fp, *, T, bb, HW):
    """slab: (NB, KPAD, T*bb*HW) float32; lead_time: (B,) int32."""
    NB, KPAD, TLB = slab.shape
    D = HIDDEN_DIM
    LB = bb * HW

    kern = functools.partial(fused_kernel, T=T, bb=bb, HW=HW, D=D)
    return pl.pallas_call(
        kern,
        out_shape=jax.ShapeDtypeStruct((NB, 1, LB), jnp.float32),
        grid_spec=pltpu.PrefetchScalarGridSpec(
            num_scalar_prefetch=1,            # lead_time -> SMEM
            grid=(NB,),
            in_specs=[
                pl.BlockSpec((1, KPAD, TLB), lambda nb, lt: (nb, 0, 0)),
                pl.BlockSpec(fp["wconvT"].shape, lambda nb, lt: (0, 0)),
                pl.BlockSpec(fp["wihT"].shape, lambda nb, lt: (0, 0)),
                pl.BlockSpec(fp["bz"].shape, lambda nb, lt: (0, 0)),
                pl.BlockSpec(fp["whhT"].shape, lambda nb, lt: (0, 0)),
                pl.BlockSpec(fp["dtT"].shape, lambda nb, lt: (0, 0)),
                pl.BlockSpec(fp["wpc"].shape, lambda nb, lt: (0, 0)),
                pl.BlockSpec(fp["bf"].shape, lambda nb, lt: (0, 0)),
            ],
            out_specs=pl.BlockSpec((1, 1, LB), lambda nb, lt: (nb, 0, 0)),
        ),
        compiler_params=pltpu.CompilerParams(
            dimension_semantics=("parallel",)),
    )(lead_time, slab, fp["wconvT"], fp["wihT"], fp["bz"], fp["whhT"],
      fp["dtT"], fp["wpc"], fp["bf"])


def model_ver1_forward(fparams, ncmwf, lead_time, num_blocks=2):
    """ncmwf: (B, T, C, H, W) float32, lead_time: (B,) int32 -> (B, H, W, 1).

    num_blocks=2 keeps a 2-way parallel grid for v7x megacore; on single-TC
    v5e/v6e num_blocks=1 folds all batches into one grid step (less overhead).
    """
    B, T, C, H, W = ncmwf.shape
    NB = num_blocks if (num_blocks >= 1 and B % num_blocks == 0) else 1
    bb = B // NB
    HW = H * W
    LB = bb * HW
    K9 = 9 * C
    KPAD = fparams["wconvT"].shape[1]

    # Host-side im2col: 1-px halo pad + 9 shifted views stacked on the K axis,
    # laid out as (NB, KPAD, T*bb*HW) with pixels (lane axis) ordered
    # t-major, then local-batch, then pixel.  Bias ones row + zero pad rows
    # appended so K is a clean multiple of 8 sublanes.
    xpad = jnp.pad(ncmwf, ((0, 0), (0, 0), (0, 0), (1, 1), (1, 1)))
    parts = [xpad[:, :, :, dy:dy + H, dx:dx + W]
             for dy in range(3) for dx in range(3)]           # 9 x (B,T,C,H,W)
    slab = jnp.stack(parts, axis=2).reshape(B, T, K9, HW)     # (B,T,9C,HW)
    slab = (slab.reshape(NB, bb, T, K9, HW)
                .transpose(0, 3, 2, 1, 4)
                .reshape(NB, K9, T * LB))
    rows = [slab, jnp.ones((NB, 1, T * LB), slab.dtype)]      # bias row
    if KPAD - K9 - 1 > 0:
        rows.append(jnp.zeros((NB, KPAD - K9 - 1, T * LB), slab.dtype))
    slab = jnp.concatenate(rows, axis=1)                      # (NB,KPAD,T*LB)

    out = fused_forward(slab, lead_time.astype(jnp.int32), fparams,
                        T=T, bb=bb, HW=HW)                    # (NB,1,bb*HW)
    return out.reshape(B, H, W, 1)


# ============================ parameter preparation =========================
def prepare_fused_params(params):
    """One-time host-side packing of weights into kernel-friendly layouts."""
    C, OC, D = IN_CHANNEL, SPATIAL_OUT_CHANNEL, HIDDEN_DIM
    K9 = 9 * C
    KPAD = _round_up(K9 + 1, 8)       # im2col rows + bias row, mult of 8
    f32 = jnp.float32

    # Combined transposed conv weight (2*OC, KPAD).  im2col row order is
    # (patch=dy*3+dx, c); 1x1 conv == center tap (patch 4).  Column K9 is the
    # bias (paired with the slab's ones row); remaining columns are zero pad.
    w3T = params["w3"].reshape(K9, OC).T                            # (OC, K9)
    w1T = jnp.zeros((OC, K9), f32).at[:, 4 * C:5 * C].set(params["w1"].T)
    wT = jnp.concatenate([w1T, w3T], axis=0)                        # (2OC, K9)
    bias_col = jnp.concatenate([params["b1"], params["b3"]],
                               axis=-1).reshape(2 * OC, 1)
    cols = [wT, bias_col]
    if KPAD - K9 - 1 > 0:
        cols.append(jnp.zeros((2 * OC, KPAD - K9 - 1), f32))
    wconvT = jnp.concatenate(cols, axis=1)                          # (2OC,KPAD)

    # LSTM weights transposed to the (features, pixels) layout.
    wihT = params["wih_t"].T                                        # (4D, 2OC)
    whhT = params["whh_t"].T                                        # (4D, D)
    bz = params["b_lstm"].reshape(4 * D, 1)                         # (4D, 1)

    # Prompt table transposed so a row select is already (D, 1).
    dtT = params["delta_t"].T                                       # (D, MAXDT)

    # Fold LayerNorm gamma/beta and the Linear(D,1) head into one (D,1)
    # centered vector + scalar bias:
    #   y = rsqrt(var+eps) * sum_d xe_d*(g_d*wp_d - S/D) + (bp + sum(b_d*wp_d))
    wpg = params["ln_g"].reshape(D, 1) * params["wp"]               # (D, 1)
    wpc = wpg - jnp.sum(wpg) / D
    bf = (params["bp"].reshape(1, 1)
          + jnp.sum(params["ln_b"].reshape(D, 1) * params["wp"]))

    return {"wconvT": wconvT, "wihT": wihT, "bz": bz, "whhT": whhT,
            "dtT": dtT, "wpc": wpc, "bf": bf}


# ============================ pure-JAX reference ============================
def _ref_forward(params, ncmwf, lead_time):
    B, T, C, H, W = ncmwf.shape
    OC = SPATIAL_OUT_CHANNEL
    D = HIDDEN_DIM
    x = jnp.transpose(ncmwf.reshape(B * T, C, H, W), (0, 2, 3, 1))
    dn = ("NHWC", "HWIO", "NHWC")
    y1 = lax.conv_general_dilated(x, params["w1"].reshape(1, 1, C, OC), (1, 1),
                                  "SAME", dimension_numbers=dn) + params["b1"].reshape(1, 1, 1, OC)
    y3 = lax.conv_general_dilated(x, params["w3"], (1, 1),
                                  "SAME", dimension_numbers=dn) + params["b3"].reshape(1, 1, 1, OC)
    spat = jnp.concatenate([jnp.maximum(y1, 0.0), jnp.maximum(y3, 0.0)], axis=-1)
    F = 2 * OC
    seq = jnp.transpose(spat.reshape(B, T, H, W, F), (1, 0, 2, 3, 4)).reshape(T, B * H * W, F)

    def step(carry, x_t):
        h, c = carry
        z = x_t @ params["wih_t"] + h @ params["whh_t"] + params["b_lstm"]
        i = jax.nn.sigmoid(z[:, :D]); f = jax.nn.sigmoid(z[:, D:2 * D])
        g = jnp.tanh(z[:, 2 * D:3 * D]); o = jax.nn.sigmoid(z[:, 3 * D:4 * D])
        c = f * c + i * g
        h = o * jnp.tanh(c)
        return (h, c), None

    N = B * H * W
    (h, _), _ = lax.scan(step, (jnp.zeros((N, D)), jnp.zeros((N, D))), seq)
    temb = h.reshape(B, H * W, D)
    prompts = jnp.take(params["delta_t"], lead_time.astype(jnp.int32) - 7, axis=0).reshape(B, 1, D)
    x = temb + prompts
    mean = jnp.mean(x, axis=-1, keepdims=True)
    var = jnp.mean((x - mean) ** 2, axis=-1, keepdims=True)
    xn = (x - mean) * lax.rsqrt(var + LN_EPS) * params["ln_g"] + params["ln_b"]
    out = xn @ params["wp"] + params["bp"]
    return out.reshape(B, H, W, 1)


# ============================ parameter init ================================
def init_params(key):
    ks = jax.random.split(key, 8)
    C, OC, D = IN_CHANNEL, SPATIAL_OUT_CHANNEL, HIDDEN_DIM
    F = len(KERNEL_SIZES) * OC

    def xavier(k, shape, fan_in, fan_out):
        lim = (6.0 / (fan_in + fan_out)) ** 0.5
        return jax.random.uniform(k, shape, jnp.float32, -lim, lim)

    return {
        # Combined_Spatial: Conv2d k=1 and k=3 (xavier weight, zero bias)
        "w1": xavier(ks[0], (C, OC), C, OC),
        "b1": jnp.zeros((1, OC), jnp.float32),
        "w3": xavier(ks[1], (3, 3, C, OC), C * 9, OC * 9),
        "b3": jnp.zeros((1, OC), jnp.float32),
        # TemporalExactor LSTM (gates i,f,g,o; W stored transposed)
        "wih_t": jax.random.normal(ks[2], (F, 4 * D), jnp.float32) / jnp.sqrt(float(F)),
        "whh_t": jax.random.normal(ks[3], (D, 4 * D), jnp.float32) / jnp.sqrt(float(D)),
        "b_lstm": jnp.zeros((1, 4 * D), jnp.float32),
        # PromptMixin delta_t
        "delta_t": jax.random.normal(ks[4], (MAX_DELTA_T, D), jnp.float32),
        # PredictionHead: LayerNorm + Linear(D, 1)
        "ln_g": jnp.ones((1, D), jnp.float32),
        "ln_b": jnp.zeros((1, D), jnp.float32),
        "wp": xavier(ks[5], (D, 1), D, 1),
        "bp": jnp.zeros((1, 1), jnp.float32),
    }


# ============================ main ==========================================
if __name__ == "__main__":
    key = jax.random.PRNGKey(0)
    k_param, k_in = jax.random.split(key)
    params = init_params(k_param)
    fparams = prepare_fused_params(params)          # one-time weight packing

    B, T, C, H, W = 2, 4, IN_CHANNEL, 16, 16
    ncmwf = jax.random.normal(k_in, (B, T, C, H, W), jnp.float32)
    lead_time = jnp.array([7, 12], dtype=jnp.int32)  # within [7, 7 + MAX_DELTA_T)

    fwd = jax.jit(model_ver1_forward)
    out = jax.block_until_ready(fwd(fparams, ncmwf, lead_time))

    ref = jax.block_until_ready(_ref_forward(params, ncmwf, lead_time))
    assert out.shape == (B, H, W, 1), out.shape
    assert jnp.allclose(out, ref, atol=2e-4, rtol=2e-4), float(jnp.max(jnp.abs(out - ref)))

    print("KERNEL_OK")
</pallas_src>

<mosaic_0001>
module attributes {stable_mosaic.version = 11 : i64} {
  func.func @fused_kernel(%arg0: i32, %arg1: memref<2xi32, #tpu.memory_space<smem>>, %arg2: memref<1x40x1024xf32, #tpu.memory_space<vmem>>, %arg3: memref<16x40xf32, #tpu.memory_space<vmem>>, %arg4: memref<128x16xf32, #tpu.memory_space<vmem>>, %arg5: memref<128x1xf32, #tpu.memory_space<vmem>>, %arg6: memref<128x32xf32, #tpu.memory_space<vmem>>, %arg7: memref<32x8xf32, #tpu.memory_space<vmem>>, %arg8: memref<32x1xf32, #tpu.memory_space<vmem>>, %arg9: memref<1x1xf32, #tpu.memory_space<vmem>>, %arg10: memref<1x1x256xf32, #tpu.memory_space<vmem>>) attributes {dimension_semantics = [#tpu.dimension_semantics<parallel>], iteration_bounds = array<i64: 2>, scalar_prefetch = 1 : i64, scratch_operands = 0 : i64, tpu.core_type = #tpu.core_type<tc>, window_params = [{transform_indices = @transform_0, window_bounds = array<i64: 1, 40, 1024>}, {pipeline_mode = #tpu.pipeline_mode<synchronous>, transform_indices = @transform_1, window_bounds = array<i64: 16, 40>}, {pipeline_mode = #tpu.pipeline_mode<synchronous>, transform_indices = @transform_2, window_bounds = array<i64: 128, 16>}, {pipeline_mode = #tpu.pipeline_mode<synchronous>, transform_indices = @transform_3, window_bounds = array<i64: 128, 1>}, {pipeline_mode = #tpu.pipeline_mode<synchronous>, transform_indices = @transform_4, window_bounds = array<i64: 128, 32>}, {pipeline_mode = #tpu.pipeline_mode<synchronous>, transform_indices = @transform_5, window_bounds = array<i64: 32, 8>}, {pipeline_mode = #tpu.pipeline_mode<synchronous>, transform_indices = @transform_6, window_bounds = array<i64: 32, 1>}, {pipeline_mode = #tpu.pipeline_mode<synchronous>, transform_indices = @transform_7, window_bounds = array<i64: 1, 1>}, {transform_indices = @transform_8, window_bounds = array<i64: 1, 1, 256>}]} {
    %c0 = arith.constant 0 : index
    %c0_0 = arith.constant 0 : index
    %c0_1 = arith.constant 0 : index
    %0 = vector.load %arg2[%c0, %c0_0, %c0_1] : memref<1x40x1024xf32, #tpu.memory_space<vmem>>, vector<1x40x1024xf32>
    %1 = vector.shape_cast %0 : vector<1x40x1024xf32> to vector<40x1024xf32>
    %c0_2 = arith.constant 0 : index
    %c0_3 = arith.constant 0 : index
    %2 = vector.load %arg3[%c0_2, %c0_3] : memref<16x40xf32, #tpu.memory_space<vmem>>, vector<16x40xf32>
    %cst = arith.constant dense<0.000000e+00> : vector<16x1024xf32>
    %3 = tpu.matmul %2, %1, %cst {dimension_numbers = #tpu.dot_dimension_numbers<[1], [0], [0], [1], [0, 0, 1, 1], [], []>} : vector<16x40xf32>, vector<40x1024xf32>, vector<16x1024xf32> -> vector<16x1024xf32>
    %cst_4 = arith.constant 0.000000e+00 : f32
    %4 = vector.broadcast %cst_4 : f32 to vector<16x1024xf32>
    %5 = arith.maximumf %3, %4 : vector<16x1024xf32>
    %c0_5 = arith.constant 0 : index
    %c0_6 = arith.constant 0 : index
    %6 = vector.load %arg4[%c0_5, %c0_6] : memref<128x16xf32, #tpu.memory_space<vmem>>, vector<128x16xf32>
    %cst_7 = arith.constant dense<0.000000e+00> : vector<128x1024xf32>
    %7 = tpu.matmul %6, %5, %cst_7 {dimension_numbers = #tpu.dot_dimension_numbers<[1], [0], [0], [1], [0, 0, 1, 1], [], []>} : vector<128x16xf32>, vector<16x1024xf32>, vector<128x1024xf32> -> vector<128x1024xf32>
    %c0_8 = arith.constant 0 : index
    %c0_9 = arith.constant 0 : index
    %8 = vector.load %arg5[%c0_8, %c0_9] : memref<128x1xf32, #tpu.memory_space<vmem>>, vector<128x1xf32>
    %9 = vector.broadcast %8 : vector<128x1xf32> to vector<128x1024xf32>
    %10 = arith.addf %7, %9 : vector<128x1024xf32>
    %c0_10 = arith.constant 0 : index
    %c0_11 = arith.constant 0 : index
    %11 = vector.load %arg6[%c0_10, %c0_11] : memref<128x32xf32, #tpu.memory_space<vmem>>, vector<128x32xf32>
    %12 = vector.extract_strided_slice %10 {offsets = [0, 0], sizes = [128, 256], strides = [1, 1]} : vector<128x1024xf32> to vector<128x256xf32>
    %13 = vector.extract_strided_slice %12 {offsets = [0, 0], sizes = [32, 256], strides = [1, 1]} : vector<128x256xf32> to vector<32x256xf32>
    %14 = arith.negf %13 : vector<32x256xf32>
    %15 = math.exp %14 : vector<32x256xf32>
    %cst_12 = arith.constant 1.000000e+00 : f32
    %16 = vector.broadcast %cst_12 : f32 to vector<32x256xf32>
    %17 = arith.addf %16, %15 : vector<32x256xf32>
    %18 = arith.divf %16, %17 : vector<32x256xf32>
    %19 = vector.extract_strided_slice %12 {offsets = [64, 0], sizes = [32, 256], strides = [1, 1]} : vector<128x256xf32> to vector<32x256xf32>
    %20 = math.tanh %19 : vector<32x256xf32>
    %21 = vector.extract_strided_slice %12 {offsets = [96, 0], sizes = [32, 256], strides = [1, 1]} : vector<128x256xf32> to vector<32x256xf32>
    %22 = arith.negf %21 : vector<32x256xf32>
    %23 = math.exp %22 : vector<32x256xf32>
    %cst_13 = arith.constant 1.000000e+00 : f32
    %24 = vector.broadcast %cst_13 : f32 to vector<32x256xf32>
    %25 = arith.addf %24, %23 : vector<32x256xf32>
    %26 = arith.divf %24, %25 : vector<32x256xf32>
    %27 = arith.mulf %18, %20 : vector<32x256xf32>
    %28 = math.tanh %27 : vector<32x256xf32>
    %29 = arith.mulf %26, %28 : vector<32x256xf32>
    %30 = vector.extract_strided_slice %10 {offsets = [0, 256], sizes = [128, 256], strides = [1, 1]} : vector<128x1024xf32> to vector<128x256xf32>
    %cst_14 = arith.constant dense<0.000000e+00> : vector<128x256xf32>
    %31 = tpu.matmul %11, %29, %cst_14 {dimension_numbers = #tpu.dot_dimension_numbers<[1], [0], [0], [1], [0, 0, 1, 1], [], []>} : vector<128x32xf32>, vector<32x256xf32>, vector<128x256xf32> -> vector<128x256xf32>
    %32 = arith.addf %30, %31 : vector<128x256xf32>
    %33 = vector.extract_strided_slice %32 {offsets = [0, 0], sizes = [32, 256], strides = [1, 1]} : vector<128x256xf32> to vector<32x256xf32>
    %34 = arith.negf %33 : vector<32x256xf32>
    %35 = math.exp %34 : vector<32x256xf32>
    %cst_15 = arith.constant 1.000000e+00 : f32
    %36 = vector.broadcast %cst_15 : f32 to vector<32x256xf32>
    %37 = arith.addf %36, %35 : vector<32x256xf32>
    %38 = arith.divf %36, %37 : vector<32x256xf32>
    %39 = vector.extract_strided_slice %32 {offsets = [64, 0], sizes = [32, 256], strides = [1, 1]} : vector<128x256xf32> to vector<32x256xf32>
    %40 = math.tanh %39 : vector<32x256xf32>
    %41 = vector.extract_strided_slice %32 {offsets = [96, 0], sizes = [32, 256], strides = [1, 1]} : vector<128x256xf32> to vector<32x256xf32>
    %42 = arith.negf %41 : vector<32x256xf32>
    %43 = math.exp %42 : vector<32x256xf32>
    %cst_16 = arith.constant 1.000000e+00 : f32
    %44 = vector.broadcast %cst_16 : f32 to vector<32x256xf32>
    %45 = arith.addf %44, %43 : vector<32x256xf32>
    %46 = arith.divf %44, %45 : vector<32x256xf32>
    %47 = vector.extract_strided_slice %32 {offsets = [32, 0], sizes = [32, 256], strides = [1, 1]} : vector<128x256xf32> to vector<32x256xf32>
    %48 = arith.negf %47 : vector<32x256xf32>
    %49 = math.exp %48 : vector<32x256xf32>
    %cst_17 = arith.constant 1.000000e+00 : f32
    %50 = vector.broadcast %cst_17 : f32 to vector<32x256xf32>
    %51 = arith.addf %50, %49 : vector<32x256xf32>
    %52 = arith.divf %50, %51 : vector<32x256xf32>
    %53 = arith.mulf %52, %27 : vector<32x256xf32>
    %54 = arith.mulf %38, %40 : vector<32x256xf32>
    %55 = arith.addf %53, %54 : vector<32x256xf32>
    %56 = math.tanh %55 : vector<32x256xf32>
    %57 = arith.mulf %46, %56 : vector<32x256xf32>
    %58 = vector.extract_strided_slice %10 {offsets = [0, 512], sizes = [128, 256], strides = [1, 1]} : vector<128x1024xf32> to vector<128x256xf32>
    %cst_18 = arith.constant dense<0.000000e+00> : vector<128x256xf32>
    %59 = tpu.matmul %11, %57, %cst_18 {dimension_numbers = #tpu.dot_dimension_numbers<[1], [0], [0], [1], [0, 0, 1, 1], [], []>} : vector<128x32xf32>, vector<32x256xf32>, vector<128x256xf32> -> vector<128x256xf32>
    %60 = arith.addf %58, %59 : vector<128x256xf32>
    %61 = vector.extract_strided_slice %60 {offsets = [0, 0], sizes = [32, 256], strides = [1, 1]} : vector<128x256xf32> to vector<32x256xf32>
    %62 = arith.negf %61 : vector<32x256xf32>
    %63 = math.exp %62 : vector<32x256xf32>
    %cst_19 = arith.constant 1.000000e+00 : f32
    %64 = vector.broadcast %cst_19 : f32 to vector<32x256xf32>
    %65 = arith.addf %64, %63 : vector<32x256xf32>
    %66 = arith.divf %64, %65 : vector<32x256xf32>
    %67 = vector.extract_strided_slice %60 {offsets = [64, 0], sizes = [32, 256], strides = [1, 1]} : vector<128x256xf32> to vector<32x256xf32>
    %68 = math.tanh %67 : vector<32x256xf32>
    %69 = vector.extract_strided_slice %60 {offsets = [96, 0], sizes = [32, 256], strides = [1, 1]} : vector<128x256xf32> to vector<32x256xf32>
    %70 = arith.negf %69 : vector<32x256xf32>
    %71 = math.exp %70 : vector<32x256xf32>
    %cst_20 = arith.constant 1.000000e+00 : f32
    %72 = vector.broadcast %cst_20 : f32 to vector<32x256xf32>
    %73 = arith.addf %72, %71 : vector<32x256xf32>
    %74 = arith.divf %72, %73 : vector<32x256xf32>
    %75 = vector.extract_strided_slice %60 {offsets = [32, 0], sizes = [32, 256], strides = [1, 1]} : vector<128x256xf32> to vector<32x256xf32>
    %76 = arith.negf %75 : vector<32x256xf32>
    %77 = math.exp %76 : vector<32x256xf32>
    %cst_21 = arith.constant 1.000000e+00 : f32
    %78 = vector.broadcast %cst_21 : f32 to vector<32x256xf32>
    %79 = arith.addf %78, %77 : vector<32x256xf32>
    %80 = arith.divf %78, %79 : vector<32x256xf32>
    %81 = arith.mulf %80, %55 : vector<32x256xf32>
    %82 = arith.mulf %66, %68 : vector<32x256xf32>
    %83 = arith.addf %81, %82 : vector<32x256xf32>
    %84 = math.tanh %83 : vector<32x256xf32>
    %85 = arith.mulf %74, %84 : vector<32x256xf32>
    %86 = vector.extract_strided_slice %10 {offsets = [0, 768], sizes = [128, 256], strides = [1, 1]} : vector<128x1024xf32> to vector<128x256xf32>
    %cst_22 = arith.constant dense<0.000000e+00> : vector<128x256xf32>
    %87 = tpu.matmul %11, %85, %cst_22 {dimension_numbers = #tpu.dot_dimension_numbers<[1], [0], [0], [1], [0, 0, 1, 1], [], []>} : vector<128x32xf32>, vector<32x256xf32>, vector<128x256xf32> -> vector<128x256xf32>
    %88 = arith.addf %86, %87 : vector<128x256xf32>
    %89 = vector.extract_strided_slice %88 {offsets = [0, 0], sizes = [32, 256], strides = [1, 1]} : vector<128x256xf32> to vector<32x256xf32>
    %90 = arith.negf %89 : vector<32x256xf32>
    %91 = math.exp %90 : vector<32x256xf32>
    %cst_23 = arith.constant 1.000000e+00 : f32
    %92 = vector.broadcast %cst_23 : f32 to vector<32x256xf32>
    %93 = arith.addf %92, %91 : vector<32x256xf32>
    %94 = arith.divf %92, %93 : vector<32x256xf32>
    %95 = vector.extract_strided_slice %88 {offsets = [64, 0], sizes = [32, 256], strides = [1, 1]} : vector<128x256xf32> to vector<32x256xf32>
    %96 = math.tanh %95 : vector<32x256xf32>
    %97 = vector.extract_strided_slice %88 {offsets = [96, 0], sizes = [32, 256], strides = [1, 1]} : vector<128x256xf32> to vector<32x256xf32>
    %98 = arith.negf %97 : vector<32x256xf32>
    %99 = math.exp %98 : vector<32x256xf32>
    %cst_24 = arith.constant 1.000000e+00 : f32
    %100 = vector.broadcast %cst_24 : f32 to vector<32x256xf32>
    %101 = arith.addf %100, %99 : vector<32x256xf32>
    %102 = arith.divf %100, %101 : vector<32x256xf32>
    %103 = vector.extract_strided_slice %88 {offsets = [32, 0], sizes = [32, 256], strides = [1, 1]} : vector<128x256xf32> to vector<32x256xf32>
    %104 = arith.negf %103 : vector<32x256xf32>
    %105 = math.exp %104 : vector<32x256xf32>
    %cst_25 = arith.constant 1.000000e+00 : f32
    %106 = vector.broadcast %cst_25 : f32 to vector<32x256xf32>
    %107 = arith.addf %106, %105 : vector<32x256xf32>
    %108 = arith.divf %106, %107 : vector<32x256xf32>
    %109 = arith.mulf %108, %83 : vector<32x256xf32>
    %110 = arith.mulf %94, %96 : vector<32x256xf32>
    %111 = arith.addf %109, %110 : vector<32x256xf32>
    %112 = math.tanh %111 : vector<32x256xf32>
    %113 = arith.mulf %102, %112 : vector<32x256xf32>
    %c0_26 = arith.constant 0 : index
    %c0_27 = arith.constant 0 : index
    %114 = vector.load %arg8[%c0_26, %c0_27] : memref<32x1xf32, #tpu.memory_space<vmem>>, vector<32x1xf32>
    %c0_28 = arith.constant 0 : index
    %c0_29 = arith.constant 0 : index
    %115 = vector.load %arg9[%c0_28, %c0_29] : memref<1x1xf32, #tpu.memory_space<vmem>>, vector<1x1xf32>
    %c0_30 = arith.constant 0 : index
    %c0_31 = arith.constant 0 : index
    %116 = vector.load %arg7[%c0_30, %c0_31] : memref<32x8xf32, #tpu.memory_space<vmem>>, vector<32x8xf32>
    %117 = tpu.iota {dimensions = array<i32: 1>} : vector<1x8xi32>
    %c1_i32 = arith.constant 1 : i32
    %118 = arith.muli %arg0, %c1_i32 : i32
    %c0_i32 = arith.constant 0 : i32
    %119 = arith.addi %118, %c0_i32 : i32
    %120 = arith.index_cast %119 : i32 to index
    %121 = memref.load %arg1[%120] : memref<2xi32, #tpu.memory_space<smem>>
    %c7_i32 = arith.constant 7 : i32
    %122 = arith.subi %121, %c7_i32 : i32
    %c0_i32_32 = arith.constant 0 : i32
    %c7_i32_33 = arith.constant 7 : i32
    %123 = arith.maxsi %c0_i32_32, %122 : i32
    %124 = arith.minsi %c7_i32_33, %123 : i32
    %125 = vector.broadcast %124 : i32 to vector<1x8xi32>
    %126 = arith.cmpi eq, %117, %125 : vector<1x8xi32>
    %cst_34 = arith.constant 0.000000e+00 : f32
    %127 = vector.shape_cast %126 : vector<1x8xi1> to vector<1x8xi1>
    %128 = vector.broadcast %127 : vector<1x8xi1> to vector<32x8xi1>
    %129 = vector.broadcast %cst_34 : f32 to vector<32x8xf32>
    %130 = arith.select %128, %116, %129 : vector<32x8xi1>, vector<32x8xf32>
    %cst_35 = arith.constant dense<0.000000e+00> : vector<32xf32>
    %131 = vector.multi_reduction <add>, %130, %cst_35 [1] : vector<32x8xf32> to vector<32xf32>
    %132 = vector.shape_cast %131 : vector<32xf32> to vector<32x1xf32>
    %133 = vector.broadcast %132 : vector<32x1xf32> to vector<32x256xf32>
    %134 = arith.addf %113, %133 : vector<32x256xf32>
    %cst_36 = arith.constant dense<0.000000e+00> : vector<256xf32>
    %135 = vector.multi_reduction <add>, %134, %cst_36 [0] : vector<32x256xf32> to vector<256xf32>
    %136 = vector.shape_cast %135 : vector<256xf32> to vector<1x256xf32>
    %137 = arith.mulf %134, %134 : vector<32x256xf32>
    %cst_37 = arith.constant dense<0.000000e+00> : vector<256xf32>
    %138 = vector.multi_reduction <add>, %137, %cst_37 [0] : vector<32x256xf32> to vector<256xf32>
    %139 = vector.shape_cast %138 : vector<256xf32> to vector<1x256xf32>
    %140 = vector.broadcast %114 : vector<32x1xf32> to vector<32x256xf32>
    %141 = arith.mulf %134, %140 : vector<32x256xf32>
    %cst_38 = arith.constant dense<0.000000e+00> : vector<256xf32>
    %142 = vector.multi_reduction <add>, %141, %cst_38 [0] : vector<32x256xf32> to vector<256xf32>
    %143 = vector.shape_cast %142 : vector<256xf32> to vector<1x256xf32>
    %cst_39 = arith.constant 3.125000e-02 : f32
    %144 = vector.broadcast %cst_39 : f32 to vector<1x256xf32>
    %145 = arith.mulf %136, %144 : vector<1x256xf32>
    %cst_40 = arith.constant 3.125000e-02 : f32
    %146 = vector.broadcast %cst_40 : f32 to vector<1x256xf32>
    %147 = arith.mulf %139, %146 : vector<1x256xf32>
    %148 = arith.mulf %145, %145 : vector<1x256xf32>
    %149 = arith.subf %147, %148 : vector<1x256xf32>
    %cst_41 = arith.constant 9.99999974E-6 : f32
    %150 = vector.broadcast %cst_41 : f32 to vector<1x256xf32>
    %151 = arith.addf %149, %150 : vector<1x256xf32>
    %152 = math.rsqrt %151 : vector<1x256xf32>
    %153 = arith.mulf %143, %152 : vector<1x256xf32>
    %154 = vector.broadcast %115 : vector<1x1xf32> to vector<1x256xf32>
    %155 = arith.addf %153, %154 : vector<1x256xf32>
    %156 = vector.shape_cast %155 : vector<1x256xf32> to vector<1x1x256xf32>
    %c0_42 = arith.constant 0 : index
    %c0_43 = arith.constant 0 : index
    %c0_44 = arith.constant 0 : index
    %157 = vector.load %arg10[%c0_42, %c0_43, %c0_44] : memref<1x1x256xf32, #tpu.memory_space<vmem>>, vector<1x1x256xf32>
    tpu.vector_store %arg10[%c0_42, %c0_43, %c0_44], %156 {strides = array<i32>} : memref<1x1x256xf32, #tpu.memory_space<vmem>>, vector<1x1x256xf32>,
    return
  }
  func.func @transform_0(%arg0: i32, %arg1: memref<2xi32, #tpu.memory_space<smem>>) -> (i32, i32, i32) {
    %c0_i32 = arith.constant 0 : i32
    %c0_i32_0 = arith.constant 0 : i32
    %c0_i32_1 = arith.constant 0 : i32
    return %arg0, %c0_i32, %c0_i32_0 : i32, i32, i32
  }
  func.func @transform_1(%arg0: i32, %arg1: memref<2xi32, #tpu.memory_space<smem>>) -> (i32, i32) {
    %c0_i32 = arith.constant 0 : i32
    %c0_i32_0 = arith.constant 0 : i32
    %c0_i32_1 = arith.constant 0 : i32
    return %c0_i32, %c0_i32_0 : i32, i32
  }
  func.func @transform_2(%arg0: i32, %arg1: memref<2xi32, #tpu.memory_space<smem>>) -> (i32, i32) {
    %c0_i32 = arith.constant 0 : i32
    %c0_i32_0 = arith.constant 0 : i32
    %c0_i32_1 = arith.constant 0 : i32
    return %c0_i32, %c0_i32_0 : i32, i32
  }
  func.func @transform_3(%arg0: i32, %arg1: memref<2xi32, #tpu.memory_space<smem>>) -> (i32, i32) {
    %c0_i32 = arith.constant 0 : i32
    %c0_i32_0 = arith.constant 0 : i32
    %c0_i32_1 = arith.constant 0 : i32
    return %c0_i32, %c0_i32_0 : i32, i32
  }
  func.func @transform_4(%arg0: i32, %arg1: memref<2xi32, #tpu.memory_space<smem>>) -> (i32, i32) {
    %c0_i32 = arith.constant 0 : i32
    %c0_i32_0 = arith.constant 0 : i32
    %c0_i32_1 = arith.constant 0 : i32
    return %c0_i32, %c0_i32_0 : i32, i32
  }
  func.func @transform_5(%arg0: i32, %arg1: memref<2xi32, #tpu.memory_space<smem>>) -> (i32, i32) {
    %c0_i32 = arith.constant 0 : i32
    %c0_i32_0 = arith.constant 0 : i32
    %c0_i32_1 = arith.constant 0 : i32
    return %c0_i32, %c0_i32_0 : i32, i32
  }
  func.func @transform_6(%arg0: i32, %arg1: memref<2xi32, #tpu.memory_space<smem>>) -> (i32, i32) {
    %c0_i32 = arith.constant 0 : i32
    %c0_i32_0 = arith.constant 0 : i32
    %c0_i32_1 = arith.constant 0 : i32
    return %c0_i32, %c0_i32_0 : i32, i32
  }
  func.func @transform_7(%arg0: i32, %arg1: memref<2xi32, #tpu.memory_space<smem>>) -> (i32, i32) {
    %c0_i32 = arith.constant 0 : i32
    %c0_i32_0 = arith.constant 0 : i32
    %c0_i32_1 = arith.constant 0 : i32
    return %c0_i32, %c0_i32_0 : i32, i32
  }
  func.func @transform_8(%arg0: i32, %arg1: memref<2xi32, #tpu.memory_space<smem>>) -> (i32, i32, i32) {
    %c0_i32 = arith.constant 0 : i32
    %c0_i32_0 = arith.constant 0 : i32
    %c0_i32_1 = arith.constant 0 : i32
    return %arg0, %c0_i32, %c0_i32_0 : i32, i32, i32
  }
}

</mosaic_0001>

<llo_original>
// kernel: model_ver1_forward.1
$region0: #{model_ver1_forward.1}
  #allocation0 [shape = 'u32[]', space=smem, size = 0x4, offset = 0x4, fixed_abs, tag = 'smem constant byte address 0x4 - core index']
  #allocation1 [shape = 'u32[144,128]{1,0:T(1,128)}', space=vmem, size = 0x12000, scoped, tag = 'internal scratch']
  #allocation2 [shape = 's32[1]{0}', space=sflag, size = 0x4, scoped, tag = 'scoped memory for model_ver1_forward.1']
  #allocation3 [shape = 'u8[512]{0}', space=smem, size = 0x200, scoped, tag = 'prefetched SMEM operand 0']
  #allocation4 [shape = 'f32[1,1]{1,0:T(1,128)S(1)}', space=vmem, size = 0x200, scoped, tag = 'scoped memory for model_ver1_forward.1']
  %s0 = inlined_call_operand.vmem [shape: s32[2], index: 0, kind: input, shape index: {}]
  %s1 = inlined_call_operand.vmem [shape: f32[2,40,1024], index: 1, kind: input, shape index: {}]
  %s2 = inlined_call_operand.vmem [shape: f32[16,40], index: 2, kind: input, shape index: {}]
  %s3 = inlined_call_operand.vmem [shape: f32[128,16], index: 3, kind: input, shape index: {}]
  %s4 = inlined_call_operand.vmem [shape: f32[128,1], index: 4, kind: input, shape index: {}]
  %s5 = inlined_call_operand.vmem [shape: f32[128,32], index: 5, kind: input, shape index: {}]
  %s6 = inlined_call_operand.vmem [shape: f32[32,8], index: 6, kind: input, shape index: {}]
  %s7 = inlined_call_operand.vmem [shape: f32[32,1], index: 7, kind: input, shape index: {}]
  %s8 = inlined_call_operand.<no memory space> [shape: f32[1,1], index: 8, kind: input, shape index: {}]
  %s9 = inlined_call_operand.vmem [shape: f32[2,1,256], index: 9, kind: output, shape index: {}]
  %s10 = sld [smem:[#allocation0]]
  $region65: #{model_ver1_forward.1} parent=0
    _
  %s12 = ssub.s32 1, %s10
  %s13 = scalar_select 0, %s12, %s10
  %s14 = sshll.u32 %s0, 4
  %s15 = int_to_ptr.vmem [resolvable:$true] %s14
  %17 = dma.vmem_to_smem %s15, 16, [#allocation3], [#allocation2]
  %v18 = vstv %s8
  %19 = vst [vmem:[#allocation4] sm:$0x1] %v18
  %20 = dma.done [#allocation2], 16
  %21 = sfence
  loop: start=0, step=1, limit=4
  $region2: #{model_ver1_forward.1} parent=0 // loop_pre_header
    _
  $region3: #{model_ver1_forward.1} parent=0 // loop_header
    %s23 = sphi 0, %s27
    %p24 = scmp.ge.s32.totalorder %s23, 4
    %s33 = sphi 0, %s35
    %s36 = sphi 0, %s33
    %s37 = sphi 0, %s36
    %s53 = sphi 0, %s37
    %s57 = sphi 0, %s57
    %s59 = sphi 0, %s57
    %s60 = sphi 0, %s59
    %s74 = sphi 0, %s60
    %s78 = sphi 0, %s78
    %s80 = sphi 0, %s78
    %s81 = sphi 0, %s80
    %s95 = sphi 0, %s81
    %s99 = sphi 0, %s99
    %s101 = sphi 0, %s99
    %s102 = sphi 0, %s101
    %s116 = sphi 0, %s102
    %s120 = sphi 0, %s120
    %s122 = sphi 0, %s120
    %s123 = sphi 0, %s122
    %s137 = sphi 0, %s123
    %s141 = sphi 0, %s141
    %s143 = sphi 0, %s141
    %s144 = sphi 0, %s143
    %s158 = sphi 0, %s144
    %s162 = sphi 0, %s162
    %s164 = sphi 0, %s162
    %s165 = sphi 0, %s164
    %s179 = sphi 0, %s165
    %s183 = sphi 0, %s183
    %s185 = sphi 0, %s183
    %s186 = sphi 0, %s185
    %s200 = sphi 0, %s186
    %s206 = sphi 0, %s208
    %s209 = sphi 0, %s206
    %s210 = sphi 0, %s209
    %s226 = sphi 0, %s210
  $region4: #{model_ver1_forward.1} parent=0 // loop_header_branch
    %26 = sbr.rel (%p24) target = $region8
  $region5: #{model_ver1_forward.1} parent=0 // loop_body
    %s28 = ssub.s32 %s23, 1
    %s29 = ssub.s32 %s23, 2
    %s30 = sadd.s32 %s23, 1
    %s31 = ssub.s32 %s23, %s30
    %p32 = scmp.eq.s32.totalorder %s31, 0
    %s34 = sadd.s32 %s33, 1
    %s35 = scalar_select %p32, %s33, %s34
    %p38 = pneg %p32
    %p39 = scmp.eq.s32.totalorder %s23, 1
    %p40 = por %p38, %p39
    %p41 = scmp.ne.s32.totalorder %s33, %s36
    %p42 = scmp.eq.s32.totalorder %s23, 0
    %p43 = por %p41, %p42
    %p44 = scmp.ne.s32.totalorder %s33, %s36
    %p45 = scmp.eq.s32.totalorder %s28, 1
    %p46 = por %p44, %p45
    %p47 = scmp.ne.s32.totalorder %s36, %s37
    %p48 = scmp.eq.s32.totalorder %s28, 0
    %p49 = por %p47, %p48
    %p50 = scmp.ne.s32.totalorder %s36, %s37
    %p51 = scmp.eq.s32.totalorder %s29, 1
    %p52 = por %p50, %p51
    %p54 = scmp.ne.s32.totalorder %s37, %s53
    %p55 = scmp.eq.s32.totalorder %s29, 0
    %p56 = por %p54, %p55
    %s58 = sadd.s32 %s57, 1
    %p61 = scmp.eq.s32.totalorder %s23, 1
    %p62 = scmp.ne.s32.totalorder %s57, %s59
    %p63 = scmp.eq.s32.totalorder %s23, 0
    %p64 = por %p62, %p63
    %p65 = scmp.ne.s32.totalorder %s57, %s59
    %p66 = scmp.eq.s32.totalorder %s28, 1
    %p67 = por %p65, %p66
    %p68 = scmp.ne.s32.totalorder %s59, %s60
    %p69 = scmp.eq.s32.totalorder %s28, 0
    %p70 = por %p68, %p69
    %p71 = scmp.ne.s32.totalorder %s59, %s60
    %p72 = scmp.eq.s32.totalorder %s29, 1
    %p73 = por %p71, %p72
    %p75 = scmp.ne.s32.totalorder %s60, %s74
    %p76 = scmp.eq.s32.totalorder %s29, 0
    %p77 = por %p75, %p76
    %s79 = sadd.s32 %s78, 1
    %p82 = scmp.eq.s32.totalorder %s23, 1
    %p83 = scmp.ne.s32.totalorder %s78, %s80
    %p84 = scmp.eq.s32.totalorder %s23, 0
    %p85 = por %p83, %p84
    %p86 = scmp.ne.s32.totalorder %s78, %s80
    %p87 = scmp.eq.s32.totalorder %s28, 1
    %p88 = por %p86, %p87
    %p89 = scmp.ne.s32.totalorder %s80, %s81
    %p90 = scmp.eq.s32.totalorder %s28, 0
    %p91 = por %p89, %p90
    %p92 = scmp.ne.s32.totalorder %s80, %s81
    %p93 = scmp.eq.s32.totalorder %s29, 1
    %p94 = por %p92, %p93
    %p96 = scmp.ne.s32.totalorder %s81, %s95
    %p97 = scmp.eq.s32.totalorder %s29, 0
    %p98 = por %p96, %p97
    %s100 = sadd.s32 %s99, 1
    %p103 = scmp.eq.s32.totalorder %s23, 1
    %p104 = scmp.ne.s32.totalorder %s99, %s101
    %p105 = scmp.eq.s32.totalorder %s23, 0
    %p106 = por %p104, %p105
    %p107 = scmp.ne.s32.totalorder %s99, %s101
    %p108 = scmp.eq.s32.totalorder %s28, 1
    %p109 = por %p107, %p108
    %p110 = scmp.ne.s32.totalorder %s101, %s102
    %p111 = scmp.eq.s32.totalorder %s28, 0
    %p112 = por %p110, %p111
    %p113 = scmp.ne.s32.totalorder %s101, %s102
    %p114 = scmp.eq.s32.totalorder %s29, 1
    %p115 = por %p113, %p114
    %p117 = scmp.ne.s32.totalorder %s102, %s116
    %p118 = scmp.eq.s32.totalorder %s29, 0
    %p119 = por %p117, %p118
    %s121 = sadd.s32 %s120, 1
    %p124 = scmp.eq.s32.totalorder %s23, 1
    %p125 = scmp.ne.s32.totalorder %s120, %s122
    %p126 = scmp.eq.s32.totalorder %s23, 0
    %p127 = por %p125, %p126
    %p128 = scmp.ne.s32.totalorder %s120, %s122
    %p129 = scmp.eq.s32.totalorder %s28, 1
    %p130 = por %p128, %p129
    %p131 = scmp.ne.s32.totalorder %s122, %s123
    %p132 = scmp.eq.s32.totalorder %s28, 0
    %p133 = por %p131, %p132
    %p134 = scmp.ne.s32.totalorder %s122, %s123
    %p135 = scmp.eq.s32.totalorder %s29, 1
    %p136 = por %p134, %p135
    %p138 = scmp.ne.s32.totalorder %s123, %s137
    %p139 = scmp.eq.s32.totalorder %s29, 0
    %p140 = por %p138, %p139
    %s142 = sadd.s32 %s141, 1
    %p145 = scmp.eq.s32.totalorder %s23, 1
    %p146 = scmp.ne.s32.totalorder %s141, %s143
    %p147 = scmp.eq.s32.totalorder %s23, 0
    %p148 = por %p146, %p147
    %p149 = scmp.ne.s32.totalorder %s141, %s143
    %p150 = scmp.eq.s32.totalorder %s28, 1
    %p151 = por %p149, %p150
    %p152 = scmp.ne.s32.totalorder %s143, %s144
    %p153 = scmp.eq.s32.totalorder %s28, 0
    %p154 = por %p152, %p153
    %p155 = scmp.ne.s32.totalorder %s143, %s144
    %p156 = scmp.eq.s32.totalorder %s29, 1
    %p157 = por %p155, %p156
    %p159 = scmp.ne.s32.totalorder %s144, %s158
    %p160 = scmp.eq.s32.totalorder %s29, 0
    %p161 = por %p159, %p160
    %s163 = sadd.s32 %s162, 1
    %p166 = scmp.eq.s32.totalorder %s23, 1
    %p167 = scmp.ne.s32.totalorder %s162, %s164
    %p168 = scmp.eq.s32.totalorder %s23, 0
    %p169 = por %p167, %p168
    %p170 = scmp.ne.s32.totalorder %s162, %s164
    %p171 = scmp.eq.s32.totalorder %s28, 1
    %p172 = por %p170, %p171
    %p173 = scmp.ne.s32.totalorder %s164, %s165
    %p174 = scmp.eq.s32.totalorder %s28, 0
    %p175 = por %p173, %p174
    %p176 = scmp.ne.s32.totalorder %s164, %s165
    %p177 = scmp.eq.s32.totalorder %s29, 1
    %p178 = por %p176, %p177
    %p180 = scmp.ne.s32.totalorder %s165, %s179
    %p181 = scmp.eq.s32.totalorder %s29, 0
    %p182 = por %p180, %p181
    %s184 = sadd.s32 %s183, 1
    %p187 = scmp.eq.s32.totalorder %s23, 1
    %p188 = scmp.ne.s32.totalorder %s183, %s185
    %p189 = scmp.eq.s32.totalorder %s23, 0
    %p190 = por %p188, %p189
    %p191 = scmp.ne.s32.totalorder %s183, %s185
    %p192 = scmp.eq.s32.totalorder %s28, 1
    %p193 = por %p191, %p192
    %p194 = scmp.ne.s32.totalorder %s185, %s186
    %p195 = scmp.eq.s32.totalorder %s28, 0
    %p196 = por %p194, %p195
    %p197 = scmp.ne.s32.totalorder %s185, %s186
    %p198 = scmp.eq.s32.totalorder %s29, 1
    %p199 = por %p197, %p198
    %p201 = scmp.ne.s32.totalorder %s186, %s200
    %p202 = scmp.eq.s32.totalorder %s29, 0
    %p203 = por %p201, %p202
    %s204 = ssub.s32 %s23, %s30
    %p205 = scmp.eq.s32.totalorder %s204, 0
    %s207 = sadd.s32 %s206, 1
    %s208 = scalar_select %p205, %s206, %s207
    %p211 = pneg %p205
    %p212 = scmp.eq.s32.totalorder %s23, 1
    %p213 = por %p211, %p212
    %p214 = scmp.ne.s32.totalorder %s206, %s209
    %p215 = scmp.eq.s32.totalorder %s23, 0
    %p216 = por %p214, %p215
    %p217 = scmp.ne.s32.totalorder %s206, %s209
    %p218 = scmp.eq.s32.totalorder %s28, 1
    %p219 = por %p217, %p218
    %p220 = scmp.ne.s32.totalorder %s209, %s210
    %p221 = scmp.eq.s32.totalorder %s28, 0
    %p222 = por %p220, %p221
    %p223 = scmp.ne.s32.totalorder %s209, %s210
    %p224 = scmp.eq.s32.totalorder %s29, 1
    %p225 = por %p223, %p224
    %p227 = scmp.ne.s32.totalorder %s210, %s226
    %p228 = scmp.eq.s32.totalorder %s29, 0
    %p229 = por %p227, %p228
    %p230 = scmp.le.s32.totalorder 1, %s23
    %p231 = scmp.lt.s32.totalorder %s23, 3
    %p232 = pnand %p230, %p231
    %p233 = pneg %p232
    // Predicated region
    $region9: #{model_ver1_forward.1} parent=5 // pred_check
      _
    $region10: #{model_ver1_forward.1} parent=5 // pred_check_branch
      %235 = sbr.rel (%p232) target = $region12
    $region11: #{model_ver1_forward.1} parent=5 // pred_region
      %s236 = ssub.s32 %s23, 1
      // Predicated region
      $region13: #{model_ver1_forward.1} parent=11 // pred_check
        %p237 = pneg %p70
      $region14: #{model_ver1_forward.1} parent=11 // pred_check_branch
        %239 = sbr.rel (%p237) target = $region16
      $region15: #{model_ver1_forward.1} parent=11 // pred_region
        _
      $region16: #{model_ver1_forward.1} parent=11 // pred_fallthru
        _
      // Predicated region
      $region17: #{model_ver1_forward.1} parent=11 // pred_check
        %p240 = pneg %p91
      $region18: #{model_ver1_forward.1} parent=11 // pred_check_branch
        %242 = sbr.rel (%p240) target = $region20
      $region19: #{model_ver1_forward.1} parent=11 // pred_region
        _
      $region20: #{model_ver1_forward.1} parent=11 // pred_fallthru
        _
      // Predicated region
      $region21: #{model_ver1_forward.1} parent=11 // pred_check
        %p243 = pneg %p112
      $region22: #{model_ver1_forward.1} parent=11 // pred_check_branch
        %245 = sbr.rel (%p243) target = $region24
      $region23: #{model_ver1_forward.1} parent=11 // pred_region
        _
      $region24: #{model_ver1_forward.1} parent=11 // pred_fallthru
        _
      // Predicated region
      $region25: #{model_ver1_forward.1} parent=11 // pred_check
        %p246 = pneg %p133
      $region26: #{model_ver1_forward.1} parent=11 // pred_check_branch
        %248 = sbr.rel (%p246) target = $region28
      $region27: #{model_ver1_forward.1} parent=11 // pred_region
        _
      $region28: #{model_ver1_forward.1} parent=11 // pred_fallthru
        _
      // Predicated region
      $region29: #{model_ver1_forward.1} parent=11 // pred_check
        %p249 = pneg %p154
      $region30: #{model_ver1_forward.1} parent=11 // pred_check_branch
        %251 = sbr.rel (%p249) target = $region32
      $region31: #{model_ver1_forward.1} parent=11 // pred_region
        _
      $region32: #{model_ver1_forward.1} parent=11 // pred_fallthru
        _
      // Predicated region
      $region33: #{model_ver1_forward.1} parent=11 // pred_check
        %p252 = pneg %p175
      $region34: #{model_ver1_forward.1} parent=11 // pred_check_branch
        %254 = sbr.rel (%p252) target = $region36
      $region35: #{model_ver1_forward.1} parent=11 // pred_region
        _
      $region36: #{model_ver1_forward.1} parent=11 // pred_fallthru
        _
      // Predicated region
      $region37: #{model_ver1_forward.1} parent=11 // pred_check
        %p255 = pneg %p196
      $region38: #{model_ver1_forward.1} parent=11 // pred_check_branch
        %257 = sbr.rel (%p255) target = $region40
      $region39: #{model_ver1_forward.1} parent=11 // pred_region
        _
      $region40: #{model_ver1_forward.1} parent=11 // pred_fallthru
        _
    $region12: #{model_ver1_forward.1} parent=5 // pred_fallthru
      _
    %p258 = scmp.lt.s32.totalorder %s23, 2
    // Predicated region
    $region41: #{model_ver1_forward.1} parent=5 // pred_check
      %p259 = pneg %p258
    $region42: #{model_ver1_forward.1} parent=5 // pred_check_branch
      %261 = sbr.rel (%p259) target = $region44
    $region43: #{model_ver1_forward.1} parent=5 // pred_region
      // Predicated region
      $region45: #{model_ver1_forward.1} parent=43 // pred_check
        %p262 = pneg %p43
      $region46: #{model_ver1_forward.1} parent=43 // pred_check_branch
        %264 = sbr.rel (%p262) target = $region48
      $region47: #{model_ver1_forward.1} parent=43 // pred_region
        %p265 = scmp.lt.s32.totalorder %s23, 1
        %s266 = scalar_select %p265, %s23, 1
        %s267 = smul.addr %s266, 40
        %s268 = smul.addr %s267, 8
        %s269 = scalar_lea.vmem %s1, %s268
      $region48: #{model_ver1_forward.1} parent=43 // pred_fallthru
        _
    $region44: #{model_ver1_forward.1} parent=5 // pred_fallthru
      _
    %p270 = scmp.le.s32.totalorder 1, %s23
    %p271 = scmp.lt.s32.totalorder %s23, 3
    %p272 = pnand %p270, %p271
    %p273 = pneg %p272
    // Predicated region
    $region49: #{model_ver1_forward.1} parent=5 // pred_check
      _
    $region50: #{model_ver1_forward.1} parent=5 // pred_check_branch
      %275 = sbr.rel (%p272) target = $region52
    $region51: #{model_ver1_forward.1} parent=5 // pred_region
      %s276 = ssub.s32 %s23, 1
      %p277 = scmp.lt.s32.totalorder %s28, 1
      %s278 = scalar_select %p277, %s28, 1
      %s279 = smul.addr %s278, 40
      %s280 = smul.addr %s279, 8
      %s281 = scalar_lea.vmem %s1, %s280
      %p282 = pneg %p49
      %p283 = pneg %p46
      %p284 = pneg %p70
      %p285 = pneg %p67
      %p286 = pneg %p91
      %p287 = pneg %p88
      %p288 = pneg %p112
      %p289 = pneg %p109
      %p290 = pneg %p133
      %p291 = pneg %p130
      %p292 = pneg %p154
      %p293 = pneg %p151
      %p294 = pneg %p175
      %p295 = pneg %p172
      %p296 = pneg %p196
      %p297 = pneg %p193
      %p298 = pneg %p222
      %p299 = pneg %p219
      %p300 = scmp.lt.s32.totalorder %s28, 1
      %s301 = scalar_select %p300, %s28, 1
      %s302 = smul.addr %s301, 2
      %s303 = scalar_lea.vmem %s9, %s302
      %p304 = scmp.lt.s32.totalorder %s28, 1
      %s305 = scalar_select %p304, %s28, 1
      %s306 = smul.addr %s305, 40
      %s307 = smul.addr %s306, 8
      %s308 = scalar_lea.vmem %s1, %s307
      %p309 = scmp.lt.s32.totalorder %s28, 1
      %s310 = scalar_select %p309, %s28, 1
      %s311 = smul.addr %s310, 2
      %s312 = scalar_lea.vmem %s9, %s311
      %v313 = vld [vmem:[%s308] sm:$0xff]
      %v314 = vld [vmem:[%s308 + $0x8] sm:$0xff]
      %v315 = vld [vmem:[%s308 + $0x10] sm:$0xff]
      %v316 = vld [vmem:[%s308 + $0x18] sm:$0xff]
      %v317 = vld [vmem:[%s308 + $0x20] sm:$0xff]
      %v318 = vld [vmem:[%s308 + $0x28] sm:$0xff]
      %v319 = vld [vmem:[%s308 + $0x30] sm:$0xff]
      %v320 = vld [vmem:[%s308 + $0x38] sm:$0xff]
      %v321 = vld [vmem:[%s308 + $0x40] sm:$0xff]
      %v322 = vld [vmem:[%s308 + $0x48] sm:$0xff]
      %v323 = vld [vmem:[%s308 + $0x50] sm:$0xff]
      %v324 = vld [vmem:[%s308 + $0x58] sm:$0xff]
      %v325 = vld [vmem:[%s308 + $0x60] sm:$0xff]
      %v326 = vld [vmem:[%s308 + $0x68] sm:$0xff]
      %v327 = vld [vmem:[%s308 + $0x70] sm:$0xff]
      %v328 = vld [vmem:[%s308 + $0x78] sm:$0xff]
      %v329 = vld [vmem:[%s308 + $0x80] sm:$0xff]
      %v330 = vld [vmem:[%s308 + $0x88] sm:$0xff]
      %v331 = vld [vmem:[%s308 + $0x90] sm:$0xff]
      %v332 = vld [vmem:[%s308 + $0x98] sm:$0xff]
      %v333 = vld [vmem:[%s308 + $0xa0] sm:$0xff]
      %v334 = vld [vmem:[%s308 + $0xa8] sm:$0xff]
      %v335 = vld [vmem:[%s308 + $0xb0] sm:$0xff]
      %v336 = vld [vmem:[%s308 + $0xb8] sm:$0xff]
      %v337 = vld [vmem:[%s308 + $0xc0] sm:$0xff]
      %v338 = vld [vmem:[%s308 + $0xc8] sm:$0xff]
      %v339 = vld [vmem:[%s308 + $0xd0] sm:$0xff]
      %v340 = vld [vmem:[%s308 + $0xd8] sm:$0xff]
      %v341 = vld [vmem:[%s308 + $0xe0] sm:$0xff]
      %v342 = vld [vmem:[%s308 + $0xe8] sm:$0xff]
      %v343 = vld [vmem:[%s308 + $0xf0] sm:$0xff]
      %v344 = vld [vmem:[%s308 + $0xf8] sm:$0xff]
      %v345 = vld [vmem:[%s308 + $0x100] sm:$0xff]
      %v346 = vld [vmem:[%s308 + $0x108] sm:$0xff]
      %v347 = vld [vmem:[%s308 + $0x110] sm:$0xff]
      %v348 = vld [vmem:[%s308 + $0x118] sm:$0xff]
      %v349 = vld [vmem:[%s308 + $0x120] sm:$0xff]
      %v350 = vld [vmem:[%s308 + $0x128] sm:$0xff]
      %v351 = vld [vmem:[%s308 + $0x130] sm:$0xff]
      %v352 = vld [vmem:[%s308 + $0x138] sm:$0xff]
      %v353 = vld [vmem:[%s2] sm:$0xff]
      %v354 = vld [vmem:[%s2 + $0x8] sm:$0xff]
      %vm355 = vcmask 326656
      %v357 = vsel %vm355, %v353, 0
      %v360 = vsel %vm355, %v354, 0
      %362 = vmatprep.subr.mxu0 %v314
      %363 = vmatpush1.msra.mxu0 %v313
      %364 = vmatprep.subr.mxu0 %v322
      %365 = vmatpush1.msra.mxu0 %v321
      %366 = vmatprep.subr.mxu0 %v330
      %367 = vmatpush1.msra.mxu0 %v329
      %368 = vmatprep.subr.mxu0 %v338
      %369 = vmatpush1.msra.mxu0 %v337
      %370 = vmatprep.subr.mxu0 %v346
      %371 = vmatpush1.msra.mxu0 %v345
      %372 = vmatprep.subr.mxu0 0.0
      %373 = vmatpush1.msra.mxu0 0.0
      %374 = vmatprep.subr.mxu0 0.0
      %375 = vmatpush1.msra.mxu0 0.0
      %376 = vmatprep.subr.mxu0 0.0
      %377 = vmatpush1.msra.mxu0 0.0
      %378 = vmatprep.subr.mxu0 0.0
      %379 = vmatpush1.msra.mxu0 0.0
      %380 = vmatprep.subr.mxu0 0.0
      %381 = vmatpush1.msra.mxu0 0.0
      %382 = vmatprep.subr.mxu0 0.0
      %383 = vmatpush1.msra.mxu0 0.0
      %384 = vmatprep.subr.mxu0 0.0
      %385 = vmatpush1.msra.mxu0 0.0
      %386 = vmatprep.subr.mxu0 0.0
      %387 = vmatpush1.msra.mxu0 0.0
      %388 = vmatprep.subr.mxu0 0.0
      %389 = vmatpush1.msra.mxu0 0.0
      %390 = vmatprep.subr.mxu0 0.0
      %391 = vmatpush1.msra.mxu0 0.0
      %392 = vmatprep.subr.mxu0 0.0
      %393 = vmatpush1.msra.mxu0 0.0
      %394 = vmatprep.subr.mxu0 0.0
      %395 = vmatpush1.msra.mxu0 0.0
      %396 = vmatprep.subr.mxu0 0.0
      %397 = vmatpush1.msra.mxu0 0.0
      %398 = vmatprep.subr.mxu0 0.0
      %399 = vmatpush1.msra.mxu0 0.0
      %400 = vmatprep.subr.mxu0 0.0
      %401 = vmatpush1.msra.mxu0 0.0
      %402 = vmatprep.subr.mxu0 0.0
      %403 = vmatpush1.msra.mxu0 0.0
      %404 = vmatprep.subr.mxu0 0.0
      %405 = vmatpush1.msra.mxu0 0.0
      %406 = vmatprep.subr.mxu0 0.0
      %407 = vmatpush1.msra.mxu0 0.0
      %408 = vmatprep.subr.mxu0 0.0
      %409 = vmatpush1.msra.mxu0 0.0
      %410 = vmatprep.subr.mxu0 0.0
      %411 = vmatpush1.msra.mxu0 0.0
      %412 = vmatprep.subr.mxu0 0.0
      %413 = vmatpush1.msra.mxu0 0.0
      %414 = vmatprep.subr.mxu0 0.0
      %415 = vmatpush1.msra.mxu0 0.0
      %416 = vmatprep.subr.mxu0 0.0
      %417 = vmatpush1.msra.mxu0 0.0
      %418 = vmatprep.subr.mxu0 0.0
      %419 = vmatpush1.msra.mxu0 0.0
      %420 = vmatprep.subr.mxu0 0.0
      %421 = vmatpush1.msra.mxu0 0.0
      %422 = vmatprep.subr.mxu0 0.0
      %423 = vmatpush1.msra.mxu0 0.0
      %424 = vmatprep.subr.mxu0 0.0
      %425 = vmatpush1.msra.mxu0 0.0
      %426 = vmatprep.mubr.f32.mxu0 0.0
      %427 = vmatmul.mubr.f32.gmra.mrb[0].mxu0 %v357
      %v428 = vpop.f32.mrb[0].mxu0
      %v429 = vadd.f32 0.0, %v428
      %v430 = vpop.f32.mrb[0].mxu0
      %v431 = vadd.f32 0.0, %v430
      %432 = vmatprep.mubr.f32.mxu0 0.0
      %433 = vmatmul.mubr.f32.gmra.mrb[0].mxu0 %v360
      %v434 = vpop.f32.mrb[0].mxu0
      %v435 = vadd.f32 0.0, %v434
      %v436 = vpop.f32.mrb[0].mxu0
      %v437 = vadd.f32 0.0, %v436
      %438 = vdwg.mxu0
      %439 = vmatprep.subr.mxu0 %v316
      %440 = vmatpush1.msra.mxu0 %v315
      %441 = vmatprep.subr.mxu0 %v324
      %442 = vmatpush1.msra.mxu0 %v323
      %443 = vmatprep.subr.mxu0 %v332
      %444 = vmatpush1.msra.mxu0 %v331
      %445 = vmatprep.subr.mxu0 %v340
      %446 = vmatpush1.msra.mxu0 %v339
      %447 = vmatprep.subr.mxu0 %v348
      %448 = vmatpush1.msra.mxu0 %v347
      %449 = vmatprep.subr.mxu0 0.0
      %450 = vmatpush1.msra.mxu0 0.0
      %451 = vmatprep.subr.mxu0 0.0
      %452 = vmatpush1.msra.mxu0 0.0
      %453 = vmatprep.subr.mxu0 0.0
      %454 = vmatpush1.msra.mxu0 0.0
      %455 = vmatprep.subr.mxu0 0.0
      %456 = vmatpush1.msra.mxu0 0.0
      %457 = vmatprep.subr.mxu0 0.0
      %458 = vmatpush1.msra.mxu0 0.0
      %459 = vmatprep.subr.mxu0 0.0
      %460 = vmatpush1.msra.mxu0 0.0
      %461 = vmatprep.subr.mxu0 0.0
      %462 = vmatpush1.msra.mxu0 0.0
      %463 = vmatprep.subr.mxu0 0.0
      %464 = vmatpush1.msra.mxu0 0.0
      %465 = vmatprep.subr.mxu0 0.0
      %466 = vmatpush1.msra.mxu0 0.0
      %467 = vmatprep.subr.mxu0 0.0
      %468 = vmatpush1.msra.mxu0 0.0
      %469 = vmatprep.subr.mxu0 0.0
      %470 = vmatpush1.msra.mxu0 0.0
      %471 = vmatprep.subr.mxu0 0.0
      %472 = vmatpush1.msra.mxu0 0.0
      %473 = vmatprep.subr.mxu0 0.0
      %474 = vmatpush1.msra.mxu0 0.0
      %475 = vmatprep.subr.mxu0 0.0
      %476 = vmatpush1.msra.mxu0 0.0
      %477 = vmatprep.subr.mxu0 0.0
      %478 = vmatpush1.msra.mxu0 0.0
      %479 = vmatprep.subr.mxu0 0.0
      %480 = vmatpush1.msra.mxu0 0.0
      %481 = vmatprep.subr.mxu0 0.0
      %482 = vmatpush1.msra.mxu0 0.0
      %483 = vmatprep.subr.mxu0 0.0
      %484 = vmatpush1.msra.mxu0 0.0
      %485 = vmatprep.subr.mxu0 0.0
      %486 = vmatpush1.msra.mxu0 0.0
      %487 = vmatprep.subr.mxu0 0.0
      %488 = vmatpush1.msra.mxu0 0.0
      %489 = vmatprep.subr.mxu0 0.0
      %490 = vmatpush1.msra.mxu0 0.0
      %491 = vmatprep.subr.mxu0 0.0
      %492 = vmatpush1.msra.mxu0 0.0
      %493 = vmatprep.subr.mxu0 0.0
      %494 = vmatpush1.msra.mxu0 0.0
      %495 = vmatprep.subr.mxu0 0.0
      %496 = vmatpush1.msra.mxu0 0.0
      %497 = vmatprep.subr.mxu0 0.0
      %498 = vmatpush1.msra.mxu0 0.0
      %499 = vmatprep.subr.mxu0 0.0
      %500 = vmatpush1.msra.mxu0 0.0
      %501 = vmatprep.subr.mxu0 0.0
      %502 = vmatpush1.msra.mxu0 0.0
      %503 = vmatprep.mubr.f32.mxu0 0.0
      %504 = vmatmul.mubr.f32.gmra.mrb[0].mxu0 %v357
      %v505 = vpop.f32.mrb[0].mxu0
      %v506 = vadd.f32 0.0, %v505
      %v507 = vpop.f32.mrb[0].mxu0
      %v508 = vadd.f32 0.0, %v507
      %509 = vmatprep.mubr.f32.mxu0 0.0
      %510 = vmatmul.mubr.f32.gmra.mrb[0].mxu0 %v360
      %v511 = vpop.f32.mrb[0].mxu0
      %v512 = vadd.f32 0.0, %v511
      %v513 = vpop.f32.mrb[0].mxu0
      %v514 = vadd.f32 0.0, %v513
      %515 = vdwg.mxu0
      %516 = vmatprep.subr.mxu0 %v318
      %517 = vmatpush1.msra.mxu0 %v317
      %518 = vmatprep.subr.mxu0 %v326
      %519 = vmatpush1.msra.mxu0 %v325
      %520 = vmatprep.subr.mxu0 %v334
      %521 = vmatpush1.msra.mxu0 %v333
      %522 = vmatprep.subr.mxu0 %v342
      %523 = vmatpush1.msra.mxu0 %v341
      %524 = vmatprep.subr.mxu0 %v350
      %525 = vmatpush1.msra.mxu0 %v349
      %526 = vmatprep.subr.mxu0 0.0
      %527 = vmatpush1.msra.mxu0 0.0
      %528 = vmatprep.subr.mxu0 0.0
      %529 = vmatpush1.msra.mxu0 0.0
      %530 = vmatprep.subr.mxu0 0.0
      %531 = vmatpush1.msra.mxu0 0.0
      %532 = vmatprep.subr.mxu0 0.0
      %533 = vmatpush1.msra.mxu0 0.0
      %534 = vmatprep.subr.mxu0 0.0
      %535 = vmatpush1.msra.mxu0 0.0
      %536 = vmatprep.subr.mxu0 0.0
      %537 = vmatpush1.msra.mxu0 0.0
      %538 = vmatprep.subr.mxu0 0.0
      %539 = vmatpush1.msra.mxu0 0.0
      %540 = vmatprep.subr.mxu0 0.0
      %541 = vmatpush1.msra.mxu0 0.0
      %542 = vmatprep.subr.mxu0 0.0
      %543 = vmatpush1.msra.mxu0 0.0
      %544 = vmatprep.subr.mxu0 0.0
      %545 = vmatpush1.msra.mxu0 0.0
      %546 = vmatprep.subr.mxu0 0.0
      %547 = vmatpush1.msra.mxu0 0.0
      %548 = vmatprep.subr.mxu0 0.0
      %549 = vmatpush1.msra.mxu0 0.0
      %550 = vmatprep.subr.mxu0 0.0
      %551 = vmatpush1.msra.mxu0 0.0
      %552 = vmatprep.subr.mxu0 0.0
      %553 = vmatpush1.msra.mxu0 0.0
      %554 = vmatprep.subr.mxu0 0.0
      %555 = vmatpush1.msra.mxu0 0.0
      %556 = vmatprep.subr.mxu0 0.0
      %557 = vmatpush1.msra.mxu0 0.0
      %558 = vmatprep.subr.mxu0 0.0
      %559 = vmatpush1.msra.mxu0 0.0
      %560 = vmatprep.subr.mxu0 0.0
      %561 = vmatpush1.msra.mxu0 0.0
      %562 = vmatprep.subr.mxu0 0.0
      %563 = vmatpush1.msra.mxu0 0.0
      %564 = vmatprep.subr.mxu0 0.0
      %565 = vmatpush1.msra.mxu0 0.0
      %566 = vmatprep.subr.mxu0 0.0
      %567 = vmatpush1.msra.mxu0 0.0
      %568 = vmatprep.subr.mxu0 0.0
      %569 = vmatpush1.msra.mxu0 0.0
      %570 = vmatprep.subr.mxu0 0.0
      %571 = vmatpush1.msra.mxu0 0.0
      %572 = vmatprep.subr.mxu0 0.0
      %573 = vmatpush1.msra.mxu0 0.0
      %574 = vmatprep.subr.mxu0 0.0
      %575 = vmatpush1.msra.mxu0 0.0
      %576 = vmatprep.subr.mxu0 0.0
      %577 = vmatpush1.msra.mxu0 0.0
      %578 = vmatprep.subr.mxu0 0.0
      %579 = vmatpush1.msra.mxu0 0.0
      %580 = vmatprep.mubr.f32.mxu0 0.0
      %581 = vmatmul.mubr.f32.gmra.mrb[0].mxu0 %v357
      %v582 = vpop.f32.mrb[0].mxu0
      %v583 = vadd.f32 0.0, %v582
      %v584 = vpop.f32.mrb[0].mxu0
      %v585 = vadd.f32 0.0, %v584
      %586 = vmatprep.mubr.f32.mxu0 0.0
      %587 = vmatmul.mubr.f32.gmra.mrb[0].mxu0 %v360
      %v588 = vpop.f32.mrb[0].mxu0
      %v589 = vadd.f32 0.0, %v588
      %v590 = vpop.f32.mrb[0].mxu0
      %v591 = vadd.f32 0.0, %v590
      %592 = vdwg.mxu0
      %593 = vmatprep.subr.mxu0 %v320
      %594 = vmatpush1.msra.mxu0 %v319
      %595 = vmatprep.subr.mxu0 %v328
      %596 = vmatpush1.msra.mxu0 %v327
      %597 = vmatprep.subr.mxu0 %v336
      %598 = vmatpush1.msra.mxu0 %v335
      %599 = vmatprep.subr.mxu0 %v344
      %600 = vmatpush1.msra.mxu0 %v343
      %601 = vmatprep.subr.mxu0 %v352
      %602 = vmatpush1.msra.mxu0 %v351
      %603 = vmatprep.subr.mxu0 0.0
      %604 = vmatpush1.msra.mxu0 0.0
      %605 = vmatprep.subr.mxu0 0.0
      %606 = vmatpush1.msra.mxu0 0.0
      %607 = vmatprep.subr.mxu0 0.0
      %608 = vmatpush1.msra.mxu0 0.0
      %609 = vmatprep.subr.mxu0 0.0
      %610 = vmatpush1.msra.mxu0 0.0
      %611 = vmatprep.subr.mxu0 0.0
      %612 = vmatpush1.msra.mxu0 0.0
      %613 = vmatprep.subr.mxu0 0.0
      %614 = vmatpush1.msra.mxu0 0.0
      %615 = vmatprep.subr.mxu0 0.0
      %616 = vmatpush1.msra.mxu0 0.0
      %617 = vmatprep.subr.mxu0 0.0
      %618 = vmatpush1.msra.mxu0 0.0
      %619 = vmatprep.subr.mxu0 0.0
      %620 = vmatpush1.msra.mxu0 0.0
      %621 = vmatprep.subr.mxu0 0.0
      %622 = vmatpush1.msra.mxu0 0.0
      %623 = vmatprep.subr.mxu0 0.0
      %624 = vmatpush1.msra.mxu0 0.0
      %625 = vmatprep.subr.mxu0 0.0
      %626 = vmatpush1.msra.mxu0 0.0
      %627 = vmatprep.subr.mxu0 0.0
      %628 = vmatpush1.msra.mxu0 0.0
      %629 = vmatprep.subr.mxu0 0.0
      %630 = vmatpush1.msra.mxu0 0.0
      %631 = vmatprep.subr.mxu0 0.0
      %632 = vmatpush1.msra.mxu0 0.0
      %633 = vmatprep.subr.mxu0 0.0
      %634 = vmatpush1.msra.mxu0 0.0
      %635 = vmatprep.subr.mxu0 0.0
      %636 = vmatpush1.msra.mxu0 0.0
      %637 = vmatprep.subr.mxu0 0.0
      %638 = vmatpush1.msra.mxu0 0.0
      %639 = vmatprep.subr.mxu0 0.0
      %640 = vmatpush1.msra.mxu0 0.0
      %641 = vmatprep.subr.mxu0 0.0
      %642 = vmatpush1.msra.mxu0 0.0
      %643 = vmatprep.subr.mxu0 0.0
      %644 = vmatpush1.msra.mxu0 0.0
      %645 = vmatprep.subr.mxu0 0.0
      %646 = vmatpush1.msra.mxu0 0.0
      %647 = vmatprep.subr.mxu0 0.0
      %648 = vmatpush1.msra.mxu0 0.0
      %649 = vmatprep.subr.mxu0 0.0
      %650 = vmatpush1.msra.mxu0 0.0
      %651 = vmatprep.subr.mxu0 0.0
      %652 = vmatpush1.msra.mxu0 0.0
      %653 = vmatprep.subr.mxu0 0.0
      %654 = vmatpush1.msra.mxu0 0.0
      %655 = vmatprep.subr.mxu0 0.0
      %656 = vmatpush1.msra.mxu0 0.0
      %657 = vmatprep.mubr.f32.mxu0 0.0
      %658 = vmatmul.mubr.f32.gmra.mrb[0].mxu0 %v357
      %v659 = vpop.f32.mrb[0].mxu0
      %v660 = vadd.f32 0.0, %v659
      %v661 = vpop.f32.mrb[0].mxu0
      %v662 = vadd.f32 0.0, %v661
      %663 = vmatprep.mubr.f32.mxu0 0.0
      %664 = vmatmul.mubr.f32.gmra.mrb[0].mxu0 %v360
      %v665 = vpop.f32.mrb[0].mxu0
      %v666 = vadd.f32 0.0, %v665
      %v667 = vpop.f32.mrb[0].mxu0
      %v668 = vadd.f32 0.0, %v667
      %669 = vdwg.mxu0
      %v670 = vmax.f32 %v429, 0.0
      %v671 = vmax.f32 %v431, 0.0
      %v672 = vmax.f32 %v506, 0.0
      %v673 = vmax.f32 %v508, 0.0
      %v674 = vmax.f32 %v583, 0.0
      %v675 = vmax.f32 %v585, 0.0
      %v676 = vmax.f32 %v660, 0.0
      %v677 = vmax.f32 %v662, 0.0
      %v678 = vmax.f32 %v435, 0.0
      %v679 = vmax.f32 %v437, 0.0
      %v680 = vmax.f32 %v512, 0.0
      %v681 = vmax.f32 %v514, 0.0
      %v682 = vmax.f32 %v589, 0.0
      %v683 = vmax.f32 %v591, 0.0
      %v684 = vmax.f32 %v666, 0.0
      %v685 = vmax.f32 %v668, 0.0
      %v686 = vld [vmem:[%s3] sm:$0xff]
      %v687 = vld [vmem:[%s3 + $0x8] sm:$0xff]
      %v688 = vld [vmem:[%s3 + $0x10] sm:$0xff]
      %v689 = vld [vmem:[%s3 + $0x18] sm:$0xff]
      %v690 = vld [vmem:[%s3 + $0x20] sm:$0xff]
      %v691 = vld [vmem:[%s3 + $0x28] sm:$0xff]
      %v692 = vld [vmem:[%s3 + $0x30] sm:$0xff]
      %v693 = vld [vmem:[%s3 + $0x38] sm:$0xff]
      %v694 = vld [vmem:[%s3 + $0x40] sm:$0xff]
      %v695 = vld [vmem:[%s3 + $0x48] sm:$0xff]
      %v696 = vld [vmem:[%s3 + $0x50] sm:$0xff]
      %v697 = vld [vmem:[%s3 + $0x58] sm:$0xff]
      %v698 = vld [vmem:[%s3 + $0x60] sm:$0xff]
      %v699 = vld [vmem:[%s3 + $0x68] sm:$0xff]
      %v700 = vld [vmem:[%s3 + $0x70] sm:$0xff]
      %v701 = vld [vmem:[%s3 + $0x78] sm:$0xff]
      %v702 = vld [vmem:[%s4] sm:$0xff]
      %v703 = vld [vmem:[%s4 + $0x8] sm:$0xff]
      %v704 = vld [vmem:[%s4 + $0x10] sm:$0xff]
      %v705 = vld [vmem:[%s4 + $0x18] sm:$0xff]
      %v706 = vld [vmem:[%s4 + $0x20] sm:$0xff]
      %v707 = vld [vmem:[%s4 + $0x28] sm:$0xff]
      %v708 = vld [vmem:[%s4 + $0x30] sm:$0xff]
      %v709 = vld [vmem:[%s4 + $0x38] sm:$0xff]
      %v710 = vld [vmem:[%s4 + $0x40] sm:$0xff]
      %v711 = vld [vmem:[%s4 + $0x48] sm:$0xff]
      %v712 = vld [vmem:[%s4 + $0x50] sm:$0xff]
      %v713 = vld [vmem:[%s4 + $0x58] sm:$0xff]
      %v714 = vld [vmem:[%s4 + $0x60] sm:$0xff]
      %v715 = vld [vmem:[%s4 + $0x68] sm:$0xff]
      %v716 = vld [vmem:[%s4 + $0x70] sm:$0xff]
      %v717 = vld [vmem:[%s4 + $0x78] sm:$0xff]
      %719 = vset.pattern.permute.xlu0 0
      %720 = vperm.xlu0 %719, %v702
      %v721 = vpop.permute.xlu0 %720
      %724 = vset.pattern.permute.xlu0 0
      %725 = vperm.xlu0 %724, %v703
      %v726 = vpop.permute.xlu0 %725
      %729 = vset.pattern.permute.xlu0 0
      %730 = vperm.xlu0 %729, %v704
      %v731 = vpop.permute.xlu0 %730
      %734 = vset.pattern.permute.xlu0 0
      %735 = vperm.xlu0 %734, %v705
      %v736 = vpop.permute.xlu0 %735
      %739 = vset.pattern.permute.xlu0 0
      %740 = vperm.xlu0 %739, %v706
      %v741 = vpop.permute.xlu0 %740
      %744 = vset.pattern.permute.xlu0 0
      %745 = vperm.xlu0 %744, %v707
      %v746 = vpop.permute.xlu0 %745
      %749 = vset.pattern.permute.xlu0 0
      %750 = vperm.xlu0 %749, %v708
      %v751 = vpop.permute.xlu0 %750
      %754 = vset.pattern.permute.xlu0 0
      %755 = vperm.xlu0 %754, %v709
      %v756 = vpop.permute.xlu0 %755
      %759 = vset.pattern.permute.xlu0 0
      %760 = vperm.xlu0 %759, %v710
      %v761 = vpop.permute.xlu0 %760
      %764 = vset.pattern.permute.xlu0 0
      %765 = vperm.xlu0 %764, %v711
      %v766 = vpop.permute.xlu0 %765
      %769 = vset.pattern.permute.xlu0 0
      %770 = vperm.xlu0 %769, %v712
      %v771 = vpop.permute.xlu0 %770
      %774 = vset.pattern.permute.xlu0 0
      %775 = vperm.xlu0 %774, %v713
      %v776 = vpop.permute.xlu0 %775
      %779 = vset.pattern.permute.xlu0 0
      %780 = vperm.xlu0 %779, %v714
      %v781 = vpop.permute.xlu0 %780
      %784 = vset.pattern.permute.xlu0 0
      %785 = vperm.xlu0 %784, %v715
      %v786 = vpop.permute.xlu0 %785
      %789 = vset.pattern.permute.xlu0 0
      %790 = vperm.xlu0 %789, %v716
      %v791 = vpop.permute.xlu0 %790
      %794 = vset.pattern.permute.xlu0 0
      %795 = vperm.xlu0 %794, %v717
      %v796 = vpop.permute.xlu0 %795
      %vm798 = vcmask 130048
      %v800 = vsel %vm798, %v686, 0
      %v803 = vsel %vm798, %v687, 0
      %v806 = vsel %vm798, %v688, 0
      %v809 = vsel %vm798, %v689, 0
      %v812 = vsel %vm798, %v690, 0
      %v815 = vsel %vm798, %v691, 0
      %v818 = vsel %vm798, %v692, 0
      %v821 = vsel %vm798, %v693, 0
      %v824 = vsel %vm798, %v694, 0
      %v827 = vsel %vm798, %v695, 0
      %v830 = vsel %vm798, %v696, 0
      %v833 = vsel %vm798, %v697, 0
      %v836 = vsel %vm798, %v698, 0
      %v839 = vsel %vm798, %v699, 0
      %v842 = vsel %vm798, %v700, 0
      %v845 = vsel %vm798, %v701, 0
      %847 = vmatprep.subr.mxu0 %v671
      %848 = vmatpush1.msra.mxu0 %v670
      %849 = vmatprep.subr.mxu0 %v679
      %850 = vmatpush1.msra.mxu0 %v678
      %851 = vmatprep.subr.mxu0 0.0
      %852 = vmatpush1.msra.mxu0 0.0
      %853 = vmatprep.subr.mxu0 0.0
      %854 = vmatpush1.msra.mxu0 0.0
      %855 = vmatprep.subr.mxu0 0.0
      %856 = vmatpush1.msra.mxu0 0.0
      %857 = vmatprep.subr.mxu0 0.0
      %858 = vmatpush1.msra.mxu0 0.0
      %859 = vmatprep.subr.mxu0 0.0
      %860 = vmatpush1.msra.mxu0 0.0
      %861 = vmatprep.subr.mxu0 0.0
      %862 = vmatpush1.msra.mxu0 0.0
      %863 = vmatprep.subr.mxu0 0.0
      %864 = vmatpush1.msra.mxu0 0.0
      %865 = vmatprep.subr.mxu0 0.0
      %866 = vmatpush1.msra.mxu0 0.0
      %867 = vmatprep.subr.mxu0 0.0
      %868 = vmatpush1.msra.mxu0 0.0
      %869 = vmatprep.subr.mxu0 0.0
      %870 = vmatpush1.msra.mxu0 0.0
      %871 = vmatprep.subr.mxu0 0.0
      %872 = vmatpush1.msra.mxu0 0.0
      %873 = vmatprep.subr.mxu0 0.0
      %874 = vmatpush1.msra.mxu0 0.0
      %875 = vmatprep.subr.mxu0 0.0
      %876 = vmatpush1.msra.mxu0 0.0
      %877 = vmatprep.subr.mxu0 0.0
      %878 = vmatpush1.msra.mxu0 0.0
      %879 = vmatprep.subr.mxu0 0.0
      %880 = vmatpush1.msra.mxu0 0.0
      %881 = vmatprep.subr.mxu0 0.0
      %882 = vmatpush1.msra.mxu0 0.0
      %883 = vmatprep.subr.mxu0 0.0
      %884 = vmatpush1.msra.mxu0 0.0
      %885 = vmatprep.subr.mxu0 0.0
      %886 = vmatpush1.msra.mxu0 0.0
      %887 = vmatprep.subr.mxu0 0.0
      %888 = vmatpush1.msra.mxu0 0.0
      %889 = vmatprep.subr.mxu0 0.0
      %890 = vmatpush1.msra.mxu0 0.0
      %891 = vmatprep.subr.mxu0 0.0
      %892 = vmatpush1.msra.mxu0 0.0
      %893 = vmatprep.subr.mxu0 0.0
      %894 = vmatpush1.msra.mxu0 0.0
      %895 = vmatprep.subr.mxu0 0.0
      %896 = vmatpush1.msra.mxu0 0.0
      %897 = vmatprep.subr.mxu0 0.0
      %898 = vmatpush1.msra.mxu0 0.0
      %899 = vmatprep.subr.mxu0 0.0
      %900 = vmatpush1.msra.mxu0 0.0
      %901 = vmatprep.subr.mxu0 0.0
      %902 = vmatpush1.msra.mxu0 0.0
      %903 = vmatprep.subr.mxu0 0.0
      %904 = vmatpush1.msra.mxu0 0.0
      %905 = vmatprep.subr.mxu0 0.0
      %906 = vmatpush1.msra.mxu0 0.0
      %907 = vmatprep.subr.mxu0 0.0
      %908 = vmatpush1.msra.mxu0 0.0
      %909 = vmatprep.subr.mxu0 0.0
      %910 = vmatpush1.msra.mxu0 0.0
      %911 = vmatprep.mubr.f32.mxu0 0.0
      %912 = vmatmul.mubr.f32.gmra.mrb[0].mxu0 %v800
      %v913 = vpop.f32.mrb[0].mxu0
      %v914 = vadd.f32 %v721, %v913
      %v915 = vpop.f32.mrb[0].mxu0
      %v916 = vadd.f32 %v721, %v915
      %917 = vmatprep.mubr.f32.mxu0 0.0
      %918 = vmatmul.mubr.f32.gmra.mrb[0].mxu0 %v803
      %v919 = vpop.f32.mrb[0].mxu0
      %v920 = vadd.f32 %v726, %v919
      %v921 = vpop.f32.mrb[0].mxu0
      %v922 = vadd.f32 %v726, %v921
      %923 = vmatprep.mubr.f32.mxu0 0.0
      %924 = vmatmul.mubr.f32.gmra.mrb[0].mxu0 %v806
      %v925 = vpop.f32.mrb[0].mxu0
      %v926 = vadd.f32 %v731, %v925
      %v927 = vpop.f32.mrb[0].mxu0
      %v928 = vadd.f32 %v731, %v927
      %929 = vmatprep.mubr.f32.mxu0 0.0
      %930 = vmatmul.mubr.f32.gmra.mrb[0].mxu0 %v809
      %v931 = vpop.f32.mrb[0].mxu0
      %v932 = vadd.f32 %v736, %v931
      %v933 = vpop.f32.mrb[0].mxu0
      %v934 = vadd.f32 %v736, %v933
      %935 = vmatprep.mubr.f32.mxu0 0.0
      %936 = vmatmul.mubr.f32.gmra.mrb[0].mxu0 %v812
      %v937 = vpop.f32.mrb[0].mxu0
      %v938 = vpop.f32.mrb[0].mxu0
      %939 = vmatprep.mubr.f32.mxu0 0.0
      %940 = vmatmul.mubr.f32.gmra.mrb[0].mxu0 %v815
      %v941 = vpop.f32.mrb[0].mxu0
      %v942 = vpop.f32.mrb[0].mxu0
      %943 = vmatprep.mubr.f32.mxu0 0.0
      %944 = vmatmul.mubr.f32.gmra.mrb[0].mxu0 %v818
      %v945 = vpop.f32.mrb[0].mxu0
      %v946 = vpop.f32.mrb[0].mxu0
      %947 = vmatprep.mubr.f32.mxu0 0.0
      %948 = vmatmul.mubr.f32.gmra.mrb[0].mxu0 %v821
      %v949 = vpop.f32.mrb[0].mxu0
      %v950 = vpop.f32.mrb[0].mxu0
      %951 = vmatprep.mubr.f32.mxu0 0.0
      %952 = vmatmul.mubr.f32.gmra.mrb[0].mxu0 %v824
      %v953 = vpop.f32.mrb[0].mxu0
      %v954 = vadd.f32 %v761, %v953
      %v955 = vpop.f32.mrb[0].mxu0
      %v956 = vadd.f32 %v761, %v955
      %957 = vmatprep.mubr.f32.mxu0 0.0
      %958 = vmatmul.mubr.f32.gmra.mrb[0].mxu0 %v827
      %v959 = vpop.f32.mrb[0].mxu0
      %v960 = vadd.f32 %v766, %v959
      %v961 = vpop.f32.mrb[0].mxu0
      %v962 = vadd.f32 %v766, %v961
      %963 = vmatprep.mubr.f32.mxu0 0.0
      %964 = vmatmul.mubr.f32.gmra.mrb[0].mxu0 %v830
      %v965 = vpop.f32.mrb[0].mxu0
      %v966 = vadd.f32 %v771, %v965
      %v967 = vpop.f32.mrb[0].mxu0
      %v968 = vadd.f32 %v771, %v967
      %969 = vmatprep.mubr.f32.mxu0 0.0
      %970 = vmatmul.mubr.f32.gmra.mrb[0].mxu0 %v833
      %v971 = vpop.f32.mrb[0].mxu0
      %v972 = vadd.f32 %v776, %v971
      %v973 = vpop.f32.mrb[0].mxu0
      %v974 = vadd.f32 %v776, %v973
      %975 = vmatprep.mubr.f32.mxu0 0.0
      %976 = vmatmul.mubr.f32.gmra.mrb[0].mxu0 %v836
      %v977 = vpop.f32.mrb[0].mxu0
      %v978 = vadd.f32 %v781, %v977
      %v979 = vpop.f32.mrb[0].mxu0
      %v980 = vadd.f32 %v781, %v979
      %981 = vmatprep.mubr.f32.mxu0 0.0
      %982 = vmatmul.mubr.f32.gmra.mrb[0].mxu0 %v839
      %v983 = vpop.f32.mrb[0].mxu0
      %v984 = vadd.f32 %v786, %v983
      %v985 = vpop.f32.mrb[0].mxu0
      %v986 = vadd.f32 %v786, %v985
      %987 = vmatprep.mubr.f32.mxu0 0.0
      %988 = vmatmul.mubr.f32.gmra.mrb[0].mxu0 %v842
      %v989 = vpop.f32.mrb[0].mxu0
      %v990 = vadd.f32 %v791, %v989
      %v991 = vpop.f32.mrb[0].mxu0
      %v992 = vadd.f32 %v791, %v991
      %993 = vmatprep.mubr.f32.mxu0 0.0
      %994 = vmatmul.mubr.f32.gmra.mrb[0].mxu0 %v845
      %v995 = vpop.f32.mrb[0].mxu0
      %v996 = vadd.f32 %v796, %v995
      %v997 = vpop.f32.mrb[0].mxu0
      %v998 = vadd.f32 %v796, %v997
      %999 = vdwg.mxu0
      %1000 = vmatprep.subr.mxu0 %v673
      %1001 = vmatpush1.msra.mxu0 %v672
      %1002 = vmatprep.subr.mxu0 %v681
      %1003 = vmatpush1.msra.mxu0 %v680
      %1004 = vmatprep.subr.mxu0 0.0
      %1005 = vmatpush1.msra.mxu0 0.0
      %1006 = vmatprep.subr.mxu0 0.0
      %1007 = vmatpush1.msra.mxu0 0.0
      %1008 = vmatprep.subr.mxu0 0.0
      %1009 = vmatpush1.msra.mxu0 0.0
      %1010 = vmatprep.subr.mxu0 0.0
      %1011 = vmatpush1.msra.mxu0 0.0
      %1012 = vmatprep.subr.mxu0 0.0
      %1013 = vmatpush1.msra.mxu0 0.0
      %1014 = vmatprep.subr.mxu0 0.0
      %1015 = vmatpush1.msra.mxu0 0.0
      %1016 = vmatprep.subr.mxu0 0.0
      %1017 = vmatpush1.msra.mxu0 0.0
      %1018 = vmatprep.subr.mxu0 0.0
      %1019 = vmatpush1.msra.mxu0 0.0
      %1020 = vmatprep.subr.mxu0 0.0
      %1021 = vmatpush1.msra.mxu0 0.0
      %1022 = vmatprep.subr.mxu0 0.0
      %1023 = vmatpush1.msra.mxu0 0.0
      %1024 = vmatprep.subr.mxu0 0.0
      %1025 = vmatpush1.msra.mxu0 0.0
      %1026 = vmatprep.subr.mxu0 0.0
      %1027 = vmatpush1.msra.mxu0 0.0
      %1028 = vmatprep.subr.mxu0 0.0
      %1029 = vmatpush1.msra.mxu0 0.0
      %1030 = vmatprep.subr.mxu0 0.0
      %1031 = vmatpush1.msra.mxu0 0.0
      %1032 = vmatprep.subr.mxu0 0.0
      %1033 = vmatpush1.msra.mxu0 0.0
      %1034 = vmatprep.subr.mxu0 0.0
      %1035 = vmatpush1.msra.mxu0 0.0
      %1036 = vmatprep.subr.mxu0 0.0
      %1037 = vmatpush1.msra.mxu0 0.0
      %1038 = vmatprep.subr.mxu0 0.0
      %1039 = vmatpush1.msra.mxu0 0.0
      %1040 = vmatprep.subr.mxu0 0.0
      %1041 = vmatpush1.msra.mxu0 0.0
      %1042 = vmatprep.subr.mxu0 0.0
      %1043 = vmatpush1.msra.mxu0 0.0
      %1044 = vmatprep.subr.mxu0 0.0
      %1045 = vmatpush1.msra.mxu0 0.0
      %1046 = vmatprep.subr.mxu0 0.0
      %1047 = vmatpush1.msra.mxu0 0.0
      %1048 = vmatprep.subr.mxu0 0.0
      %1049 = vmatpush1.msra.mxu0 0.0
      %1050 = vmatprep.subr.mxu0 0.0
      %1051 = vmatpush1.msra.mxu0 0.0
      %1052 = vmatprep.subr.mxu0 0.0
      %1053 = vmatpush1.msra.mxu0 0.0
      %1054 = vmatprep.subr.mxu0 0.0
      %1055 = vmatpush1.msra.mxu0 0.0
      %1056 = vmatprep.subr.mxu0 0.0
      %1057 = vmatpush1.msra.mxu0 0.0
      %1058 = vmatprep.subr.mxu0 0.0
      %1059 = vmatpush1.msra.mxu0 0.0
      %1060 = vmatprep.subr.mxu0 0.0
      %1061 = vmatpush1.msra.mxu0 0.0
      %1062 = vmatprep.subr.mxu0 0.0
      %1063 = vmatpush1.msra.mxu0 0.0
      %1064 = vmatprep.mubr.f32.mxu0 0.0
      %1065 = vmatmul.mubr.f32.gmra.mrb[0].mxu0 %v800
      %v1066 = vpop.f32.mrb[0].mxu0
      %v1067 = vadd.f32 %v721, %v1066
      %v1068 = vpop.f32.mrb[0].mxu0
      %v1069 = vadd.f32 %v721, %v1068
      %1070 = vmatprep.mubr.f32.mxu0 0.0
      %1071 = vmatmul.mubr.f32.gmra.mrb[0].mxu0 %v803
      %v1072 = vpop.f32.mrb[0].mxu0
      %v1073 = vadd.f32 %v726, %v1072
      %v1074 = vpop.f32.mrb[0].mxu0
      %v1075 = vadd.f32 %v726, %v1074
      %1076 = vmatprep.mubr.f32.mxu0 0.0
      %1077 = vmatmul.mubr.f32.gmra.mrb[0].mxu0 %v806
      %v1078 = vpop.f32.mrb[0].mxu0
      %v1079 = vadd.f32 %v731, %v1078
      %v1080 = vpop.f32.mrb[0].mxu0
      %v1081 = vadd.f32 %v731, %v1080
      %1082 = vmatprep.mubr.f32.mxu0 0.0
      %1083 = vmatmul.mubr.f32.gmra.mrb[0].mxu0 %v809
      %v1084 = vpop.f32.mrb[0].mxu0
      %v1085 = vadd.f32 %v736, %v1084
      %v1086 = vpop.f32.mrb[0].mxu0
      %v1087 = vadd.f32 %v736, %v1086
      %1088 = vmatprep.mubr.f32.mxu0 0.0
      %1089 = vmatmul.mubr.f32.gmra.mrb[0].mxu0 %v812
      %v1090 = vpop.f32.mrb[0].mxu0
      %v1091 = vadd.f32 %v741, %v1090
      %v1092 = vpop.f32.mrb[0].mxu0
      %v1093 = vadd.f32 %v741, %v1092
      %1094 = vmatprep.mubr.f32.mxu0 0.0
      %1095 = vmatmul.mubr.f32.gmra.mrb[0].mxu0 %v815
      %v1096 = vpop.f32.mrb[0].mxu0
      %v1097 = vadd.f32 %v746, %v1096
      %v1098 = vpop.f32.mrb[0].mxu0
      %v1099 = vadd.f32 %v746, %v1098
      %1100 = vmatprep.mubr.f32.mxu0 0.0
      %1101 = vmatmul.mubr.f32.gmra.mrb[0].mxu0 %v818
      %v1102 = vpop.f32.mrb[0].mxu0
      %v1103 = vadd.f32 %v751, %v1102
      %v1104 = vpop.f32.mrb[0].mxu0
      %v1105 = vadd.f32 %v751, %v1104
      %1106 = vmatprep.mubr.f32.mxu0 0.0
      %1107 = vmatmul.mubr.f32.gmra.mrb[0].mxu0 %v821
      %v1108 = vpop.f32.mrb[0].mxu0
      %v1109 = vadd.f32 %v756, %v1108
      %v1110 = vpop.f32.mrb[0].mxu0
      %v1111 = vadd.f32 %v756, %v1110
      %1112 = vmatprep.mubr.f32.mxu0 0.0
      %1113 = vmatmul.mubr.f32.gmra.mrb[0].mxu0 %v824
      %v1114 = vpop.f32.mrb[0].mxu0
      %v1115 = vadd.f32 %v761, %v1114
      %v1116 = vpop.f32.mrb[0].mxu0
      %v1117 = vadd.f32 %v761, %v1116
      %1118 = vmatprep.mubr.f32.mxu0 0.0
      %1119 = vmatmul.mubr.f32.gmra.mrb[0].mxu0 %v827
      %v1120 = vpop.f32.mrb[0].mxu0
      %v1121 = vadd.f32 %v766, %v1120
      %v1122 = vpop.f32.mrb[0].mxu0
      %v1123 = vadd.f32 %v766, %v1122
      %1124 = vmatprep.mubr.f32.mxu0 0.0
      %1125 = vmatmul.mubr.f32.gmra.mrb[0].mxu0 %v830
      %v1126 = vpop.f32.mrb[0].mxu0
      %v1127 = vadd.f32 %v771, %v1126
      %v1128 = vpop.f32.mrb[0].mxu0
      %v1129 = vadd.f32 %v771, %v1128
      %1130 = vmatprep.mubr.f32.mxu0 0.0
      %1131 = vmatmul.mubr.f32.gmra.mrb[0].mxu0 %v833
      %v1132 = vpop.f32.mrb[0].mxu0
      %v1133 = vadd.f32 %v776, %v1132
      %v1134 = vpop.f32.mrb[0].mxu0
      %v1135 = vadd.f32 %v776, %v1134
      %1136 = vmatprep.mubr.f32.mxu0 0.0
      %1137 = vmatmul.mubr.f32.gmra.mrb[0].mxu0 %v836
      %v1138 = vpop.f32.mrb[0].mxu0
      %v1139 = vadd.f32 %v781, %v1138
      %v1140 = vpop.f32.mrb[0].mxu0
      %v1141 = vadd.f32 %v781, %v1140
      %1142 = vmatprep.mubr.f32.mxu0 0.0
      %1143 = vmatmul.mubr.f32.gmra.mrb[0].mxu0 %v839
      %v1144 = vpop.f32.mrb[0].mxu0
      %v1145 = vadd.f32 %v786, %v1144
      %v1146 = vpop.f32.mrb[0].mxu0
      %v1147 = vadd.f32 %v786, %v1146
      %1148 = vmatprep.mubr.f32.mxu0 0.0
      %1149 = vmatmul.mubr.f32.gmra.mrb[0].mxu0 %v842
      %v1150 = vpop.f32.mrb[0].mxu0
      %v1151 = vadd.f32 %v791, %v1150
      %v1152 = vpop.f32.mrb[0].mxu0
      %v1153 = vadd.f32 %v791, %v1152
      %1154 = vmatprep.mubr.f32.mxu0 0.0
      %1155 = vmatmul.mubr.f32.gmra.mrb[0].mxu0 %v845
      %v1156 = vpop.f32.mrb[0].mxu0
      %v1157 = vadd.f32 %v796, %v1156
      %v1158 = vpop.f32.mrb[0].mxu0
      %v1159 = vadd.f32 %v796, %v1158
      %1160 = vdwg.mxu0
      %1161 = vmatprep.subr.mxu0 %v675
      %1162 = vmatpush1.msra.mxu0 %v674
      %1163 = vmatprep.subr.mxu0 %v683
      %1164 = vmatpush1.msra.mxu0 %v682
      %1165 = vmatprep.subr.mxu0 0.0
      %1166 = vmatpush1.msra.mxu0 0.0
      %1167 = vmatprep.subr.mxu0 0.0
      %1168 = vmatpush1.msra.mxu0 0.0
      %1169 = vmatprep.subr.mxu0 0.0
      %1170 = vmatpush1.msra.mxu0 0.0
      %1171 = vmatprep.subr.mxu0 0.0
      %1172 = vmatpush1.msra.mxu0 0.0
      %1173 = vmatprep.subr.mxu0 0.0
      %1174 = vmatpush1.msra.mxu0 0.0
      %1175 = vmatprep.subr.mxu0 0.0
      %1176 = vmatpush1.msra.mxu0 0.0
      %1177 = vmatprep.subr.mxu0 0.0
      %1178 = vmatpush1.msra.mxu0 0.0
      %1179 = vmatprep.subr.mxu0 0.0
      %1180 = vmatpush1.msra.mxu0 0.0
      %1181 = vmatprep.subr.mxu0 0.0
      %1182 = vmatpush1.msra.mxu0 0.0
      %1183 = vmatprep.subr.mxu0 0.0
      %1184 = vmatpush1.msra.mxu0 0.0
      %1185 = vmatprep.subr.mxu0 0.0
      %1186 = vmatpush1.msra.mxu0 0.0
      %1187 = vmatprep.subr.mxu0 0.0
      %1188 = vmatpush1.msra.mxu0 0.0
      %1189 = vmatprep.subr.mxu0 0.0
      %1190 = vmatpush1.msra.mxu0 0.0
      %1191 = vmatprep.subr.mxu0 0.0
      %1192 = vmatpush1.msra.mxu0 0.0
      %1193 = vmatprep.subr.mxu0 0.0
      %1194 = vmatpush1.msra.mxu0 0.0
      %1195 = vmatprep.subr.mxu0 0.0
      %1196 = vmatpush1.msra.mxu0 0.0
      %1197 = vmatprep.subr.mxu0 0.0
      %1198 = vmatpush1.msra.mxu0 0.0
      %1199 = vmatprep.subr.mxu0 0.0
      %1200 = vmatpush1.msra.mxu0 0.0
      %1201 = vmatprep.subr.mxu0 0.0
      %1202 = vmatpush1.msra.mxu0 0.0
      %1203 = vmatprep.subr.mxu0 0.0
      %1204 = vmatpush1.msra.mxu0 0.0
      %1205 = vmatprep.subr.mxu0 0.0
      %1206 = vmatpush1.msra.mxu0 0.0
      %1207 = vmatprep.subr.mxu0 0.0
      %1208 = vmatpush1.msra.mxu0 0.0
      %1209 = vmatprep.subr.mxu0 0.0
      %1210 = vmatpush1.msra.mxu0 0.0
      %1211 = vmatprep.subr.mxu0 0.0
      %1212 = vmatpush1.msra.mxu0 0.0
      %1213 = vmatprep.subr.mxu0 0.0
      %1214 = vmatpush1.msra.mxu0 0.0
      %1215 = vmatprep.subr.mxu0 0.0
      %1216 = vmatpush1.msra.mxu0 0.0
      %1217 = vmatprep.subr.mxu0 0.0
      %1218 = vmatpush1.msra.mxu0 0.0
      %1219 = vmatprep.subr.mxu0 0.0
      %1220 = vmatpush1.msra.mxu0 0.0
      %1221 = vmatprep.subr.mxu0 0.0
      %1222 = vmatpush1.msra.mxu0 0.0
      %1223 = vmatprep.subr.mxu0 0.0
      %1224 = vmatpush1.msra.mxu0 0.0
      %1225 = vmatprep.mubr.f32.mxu0 0.0
      %1226 = vmatmul.mubr.f32.gmra.mrb[0].mxu0 %v800
      %v1227 = vpop.f32.mrb[0].mxu0
      %v1228 = vadd.f32 %v721, %v1227
      %v1229 = vpop.f32.mrb[0].mxu0
      %v1230 = vadd.f32 %v721, %v1229
      %1231 = vmatprep.mubr.f32.mxu0 0.0
      %1232 = vmatmul.mubr.f32.gmra.mrb[0].mxu0 %v803
      %v1233 = vpop.f32.mrb[0].mxu0
      %v1234 = vadd.f32 %v726, %v1233
      %v1235 = vpop.f32.mrb[0].mxu0
      %v1236 = vadd.f32 %v726, %v1235
      %1237 = vmatprep.mubr.f32.mxu0 0.0
      %1238 = vmatmul.mubr.f32.gmra.mrb[0].mxu0 %v806
      %v1239 = vpop.f32.mrb[0].mxu0
      %v1240 = vadd.f32 %v731, %v1239
      %v1241 = vpop.f32.mrb[0].mxu0
      %v1242 = vadd.f32 %v731, %v1241
      %1243 = vmatprep.mubr.f32.mxu0 0.0
      %1244 = vmatmul.mubr.f32.gmra.mrb[0].mxu0 %v809
      %v1245 = vpop.f32.mrb[0].mxu0
      %v1246 = vadd.f32 %v736, %v1245
      %v1247 = vpop.f32.mrb[0].mxu0
      %v1248 = vadd.f32 %v736, %v1247
      %1249 = vmatprep.mubr.f32.mxu0 0.0
      %1250 = vmatmul.mubr.f32.gmra.mrb[0].mxu0 %v812
      %v1251 = vpop.f32.mrb[0].mxu0
      %v1252 = vadd.f32 %v741, %v1251
      %v1253 = vpop.f32.mrb[0].mxu0
      %v1254 = vadd.f32 %v741, %v1253
      %1255 = vmatprep.mubr.f32.mxu0 0.0
      %1256 = vmatmul.mubr.f32.gmra.mrb[0].mxu0 %v815
      %v1257 = vpop.f32.mrb[0].mxu0
      %v1258 = vadd.f32 %v746, %v1257
      %v1259 = vpop.f32.mrb[0].mxu0
      %v1260 = vadd.f32 %v746, %v1259
      %1261 = vmatprep.mubr.f32.mxu0 0.0
      %1262 = vmatmul.mubr.f32.gmra.mrb[0].mxu0 %v818
      %v1263 = vpop.f32.mrb[0].mxu0
      %v1264 = vadd.f32 %v751, %v1263
      %v1265 = vpop.f32.mrb[0].mxu0
      %v1266 = vadd.f32 %v751, %v1265
      %1267 = vmatprep.mubr.f32.mxu0 0.0
      %1268 = vmatmul.mubr.f32.gmra.mrb[0].mxu0 %v821
      %v1269 = vpop.f32.mrb[0].mxu0
      %v1270 = vadd.f32 %v756, %v1269
      %v1271 = vpop.f32.mrb[0].mxu0
      %v1272 = vadd.f32 %v756, %v1271
      %1273 = vmatprep.mubr.f32.mxu0 0.0
      %1274 = vmatmul.mubr.f32.gmra.mrb[0].mxu0 %v824
      %v1275 = vpop.f32.mrb[0].mxu0
      %v1276 = vadd.f32 %v761, %v1275
      %v1277 = vpop.f32.mrb[0].mxu0
      %v1278 = vadd.f32 %v761, %v1277
      %1279 = vmatprep.mubr.f32.mxu0 0.0
      %1280 = vmatmul.mubr.f32.gmra.mrb[0].mxu0 %v827
      %v1281 = vpop.f32.mrb[0].mxu0
      %v1282 = vadd.f32 %v766, %v1281
      %v1283 = vpop.f32.mrb[0].mxu0
      %v1284 = vadd.f32 %v766, %v1283
      %1285 = vmatprep.mubr.f32.mxu0 0.0
      %1286 = vmatmul.mubr.f32.gmra.mrb[0].mxu0 %v830
      %v1287 = vpop.f32.mrb[0].mxu0
      %v1288 = vadd.f32 %v771, %v1287
      %v1289 = vpop.f32.mrb[0].mxu0
      %v1290 = vadd.f32 %v771, %v1289
      %1291 = vmatprep.mubr.f32.mxu0 0.0
      %1292 = vmatmul.mubr.f32.gmra.mrb[0].mxu0 %v833
      %v1293 = vpop.f32.mrb[0].mxu0
      %v1294 = vadd.f32 %v776, %v1293
      %v1295 = vpop.f32.mrb[0].mxu0
      %v1296 = vadd.f32 %v776, %v1295
      %1297 = vmatprep.mubr.f32.mxu0 0.0
      %1298 = vmatmul.mubr.f32.gmra.mrb[0].mxu0 %v836
      %v1299 = vpop.f32.mrb[0].mxu0
      %v1300 = vadd.f32 %v781, %v1299
      %v1301 = vpop.f32.mrb[0].mxu0
      %v1302 = vadd.f32 %v781, %v1301
      %1303 = vmatprep.mubr.f32.mxu0 0.0
      %1304 = vmatmul.mubr.f32.gmra.mrb[0].mxu0 %v839
      %v1305 = vpop.f32.mrb[0].mxu0
      %v1306 = vadd.f32 %v786, %v1305
      %v1307 = vpop.f32.mrb[0].mxu0
      %v1308 = vadd.f32 %v786, %v1307
      %1309 = vmatprep.mubr.f32.mxu0 0.0
      %1310 = vmatmul.mubr.f32.gmra.mrb[0].mxu0 %v842
      %v1311 = vpop.f32.mrb[0].mxu0
      %v1312 = vadd.f32 %v791, %v1311
      %v1313 = vpop.f32.mrb[0].mxu0
      %v1314 = vadd.f32 %v791, %v1313
      %1315 = vmatprep.mubr.f32.mxu0 0.0
      %1316 = vmatmul.mubr.f32.gmra.mrb[0].mxu0 %v845
      %v1317 = vpop.f32.mrb[0].mxu0
      %v1318 = vadd.f32 %v796, %v1317
      %v1319 = vpop.f32.mrb[0].mxu0
      %v1320 = vadd.f32 %v796, %v1319
      %1321 = vdwg.mxu0
      %1322 = vmatprep.subr.mxu0 %v677
      %1323 = vmatpush1.msra.mxu0 %v676
      %1324 = vmatprep.subr.mxu0 %v685
      %1325 = vmatpush1.msra.mxu0 %v684
      %1326 = vmatprep.subr.mxu0 0.0
      %1327 = vmatpush1.msra.mxu0 0.0
      %1328 = vmatprep.subr.mxu0 0.0
      %1329 = vmatpush1.msra.mxu0 0.0
      %1330 = vmatprep.subr.mxu0 0.0
      %1331 = vmatpush1.msra.mxu0 0.0
      %1332 = vmatprep.subr.mxu0 0.0
      %1333 = vmatpush1.msra.mxu0 0.0
      %1334 = vmatprep.subr.mxu0 0.0
      %1335 = vmatpush1.msra.mxu0 0.0
      %1336 = vmatprep.subr.mxu0 0.0
      %1337 = vmatpush1.msra.mxu0 0.0
      %1338 = vmatprep.subr.mxu0 0.0
      %1339 = vmatpush1.msra.mxu0 0.0
      %1340 = vmatprep.subr.mxu0 0.0
      %1341 = vmatpush1.msra.mxu0 0.0
      %1342 = vmatprep.subr.mxu0 0.0
      %1343 = vmatpush1.msra.mxu0 0.0
      %1344 = vmatprep.subr.mxu0 0.0
      %1345 = vmatpush1.msra.mxu0 0.0
      %1346 = vmatprep.subr.mxu0 0.0
      %1347 = vmatpush1.msra.mxu0 0.0
      %1348 = vmatprep.subr.mxu0 0.0
      %1349 = vmatpush1.msra.mxu0 0.0
      %1350 = vmatprep.subr.mxu0 0.0
      %1351 = vmatpush1.msra.mxu0 0.0
      %1352 = vmatprep.subr.mxu0 0.0
      %1353 = vmatpush1.msra.mxu0 0.0
      %1354 = vmatprep.subr.mxu0 0.0
      %1355 = vmatpush1.msra.mxu0 0.0
      %1356 = vmatprep.subr.mxu0 0.0
      %1357 = vmatpush1.msra.mxu0 0.0
      %1358 = vmatprep.subr.mxu0 0.0
      %1359 = vmatpush1.msra.mxu0 0.0
      %1360 = vmatprep.subr.mxu0 0.0
      %1361 = vmatpush1.msra.mxu0 0.0
      %1362 = vmatprep.subr.mxu0 0.0
      %1363 = vmatpush1.msra.mxu0 0.0
      %1364 = vmatprep.subr.mxu0 0.0
      %1365 = vmatpush1.msra.mxu0 0.0
      %1366 = vmatprep.subr.mxu0 0.0
      %1367 = vmatpush1.msra.mxu0 0.0
      %1368 = vmatprep.subr.mxu0 0.0
      %1369 = vmatpush1.msra.mxu0 0.0
      %1370 = vmatprep.subr.mxu0 0.0
      %1371 = vmatpush1.msra.mxu0 0.0
      %1372 = vmatprep.subr.mxu0 0.0
      %1373 = vmatpush1.msra.mxu0 0.0
      %1374 = vmatprep.subr.mxu0 0.0
      %1375 = vmatpush1.msra.mxu0 0.0
      %1376 = vmatprep.subr.mxu0 0.0
      %1377 = vmatpush1.msra.mxu0 0.0
      %1378 = vmatprep.subr.mxu0 0.0
      %1379 = vmatpush1.msra.mxu0 0.0
      %1380 = vmatprep.subr.mxu0 0.0
      %1381 = vmatpush1.msra.mxu0 0.0
      %1382 = vmatprep.subr.mxu0 0.0
      %1383 = vmatpush1.msra.mxu0 0.0
      %1384 = vmatprep.subr.mxu0 0.0
      %1385 = vmatpush1.msra.mxu0 0.0
      %1386 = vmatprep.mubr.f32.mxu0 0.0
      %1387 = vmatmul.mubr.f32.gmra.mrb[0].mxu0 %v800
      %v1388 = vpop.f32.mrb[0].mxu0
      %v1389 = vadd.f32 %v721, %v1388
      %v1390 = vpop.f32.mrb[0].mxu0
      %v1391 = vadd.f32 %v721, %v1390
      %1392 = vmatprep.mubr.f32.mxu0 0.0
      %1393 = vmatmul.mubr.f32.gmra.mrb[0].mxu0 %v803
      %v1394 = vpop.f32.mrb[0].mxu0
      %v1395 = vadd.f32 %v726, %v1394
      %v1396 = vpop.f32.mrb[0].mxu0
      %v1397 = vadd.f32 %v726, %v1396
      %1398 = vmatprep.mubr.f32.mxu0 0.0
      %1399 = vmatmul.mubr.f32.gmra.mrb[0].mxu0 %v806
      %v1400 = vpop.f32.mrb[0].mxu0
      %v1401 = vadd.f32 %v731, %v1400
      %v1402 = vpop.f32.mrb[0].mxu0
      %v1403 = vadd.f32 %v731, %v1402
      %1404 = vmatprep.mubr.f32.mxu0 0.0
      %1405 = vmatmul.mubr.f32.gmra.mrb[0].mxu0 %v809
      %v1406 = vpop.f32.mrb[0].mxu0
      %v1407 = vadd.f32 %v736, %v1406
      %v1408 = vpop.f32.mrb[0].mxu0
      %v1409 = vadd.f32 %v736, %v1408
      %1410 = vmatprep.mubr.f32.mxu0 0.0
      %1411 = vmatmul.mubr.f32.gmra.mrb[0].mxu0 %v812
      %v1412 = vpop.f32.mrb[0].mxu0
      %v1413 = vadd.f32 %v741, %v1412
      %v1414 = vpop.f32.mrb[0].mxu0
      %v1415 = vadd.f32 %v741, %v1414
      %1416 = vmatprep.mubr.f32.mxu0 0.0
      %1417 = vmatmul.mubr.f32.gmra.mrb[0].mxu0 %v815
      %v1418 = vpop.f32.mrb[0].mxu0
      %v1419 = vadd.f32 %v746, %v1418
      %v1420 = vpop.f32.mrb[0].mxu0
      %v1421 = vadd.f32 %v746, %v1420
      %1422 = vmatprep.mubr.f32.mxu0 0.0
      %1423 = vmatmul.mubr.f32.gmra.mrb[0].mxu0 %v818
      %v1424 = vpop.f32.mrb[0].mxu0
      %v1425 = vadd.f32 %v751, %v1424
      %v1426 = vpop.f32.mrb[0].mxu0
      %v1427 = vadd.f32 %v751, %v1426
      %1428 = vmatprep.mubr.f32.mxu0 0.0
      %1429 = vmatmul.mubr.f32.gmra.mrb[0].mxu0 %v821
      %v1430 = vpop.f32.mrb[0].mxu0
      %v1431 = vadd.f32 %v756, %v1430
      %v1432 = vpop.f32.mrb[0].mxu0
      %v1433 = vadd.f32 %v756, %v1432
      %1434 = vmatprep.mubr.f32.mxu0 0.0
      %1435 = vmatmul.mubr.f32.gmra.mrb[0].mxu0 %v824
      %v1436 = vpop.f32.mrb[0].mxu0
      %v1437 = vadd.f32 %v761, %v1436
      %v1438 = vpop.f32.mrb[0].mxu0
      %v1439 = vadd.f32 %v761, %v1438
      %1440 = vmatprep.mubr.f32.mxu0 0.0
      %1441 = vmatmul.mubr.f32.gmra.mrb[0].mxu0 %v827
      %v1442 = vpop.f32.mrb[0].mxu0
      %v1443 = vadd.f32 %v766, %v1442
      %v1444 = vpop.f32.mrb[0].mxu0
      %v1445 = vadd.f32 %v766, %v1444
      %1446 = vmatprep.mubr.f32.mxu0 0.0
      %1447 = vmatmul.mubr.f32.gmra.mrb[0].mxu0 %v830
      %v1448 = vpop.f32.mrb[0].mxu0
      %v1449 = vadd.f32 %v771, %v1448
      %v1450 = vpop.f32.mrb[0].mxu0
      %v1451 = vadd.f32 %v771, %v1450
      %1452 = vmatprep.mubr.f32.mxu0 0.0
      %1453 = vmatmul.mubr.f32.gmra.mrb[0].mxu0 %v833
      %v1454 = vpop.f32.mrb[0].mxu0
      %v1455 = vadd.f32 %v776, %v1454
      %v1456 = vpop.f32.mrb[0].mxu0
      %v1457 = vadd.f32 %v776, %v1456
      %1458 = vmatprep.mubr.f32.mxu0 0.0
      %1459 = vmatmul.mubr.f32.gmra.mrb[0].mxu0 %v836
      %v1460 = vpop.f32.mrb[0].mxu0
      %v1461 = vadd.f32 %v781, %v1460
      %v1462 = vpop.f32.mrb[0].mxu0
      %v1463 = vadd.f32 %v781, %v1462
      %1464 = vmatprep.mubr.f32.mxu0 0.0
      %1465 = vmatmul.mubr.f32.gmra.mrb[0].mxu0 %v839
      %v1466 = vpop.f32.mrb[0].mxu0
      %v1467 = vadd.f32 %v786, %v1466
      %v1468 = vpop.f32.mrb[0].mxu0
      %v1469 = vadd.f32 %v786, %v1468
      %1470 = vmatprep.mubr.f32.mxu0 0.0
      %1471 = vmatmul.mubr.f32.gmra.mrb[0].mxu0 %v842
      %v1472 = vpop.f32.mrb[0].mxu0
      %v1473 = vadd.f32 %v791, %v1472
      %v1474 = vpop.f32.mrb[0].mxu0
      %v1475 = vadd.f32 %v791, %v1474
      %1476 = vmatprep.mubr.f32.mxu0 0.0
      %1477 = vmatmul.mubr.f32.gmra.mrb[0].mxu0 %v845
      %v1478 = vpop.f32.mrb[0].mxu0
      %v1479 = vadd.f32 %v796, %v1478
      %v1480 = vpop.f32.mrb[0].mxu0
      %v1481 = vadd.f32 %v796, %v1480
      %1482 = vdwg.mxu0
      %v1483 = vld [vmem:[%s5] sm:$0xff]
      %v1484 = vld [vmem:[%s5 + $0x8] sm:$0xff]
      %v1485 = vld [vmem:[%s5 + $0x10] sm:$0xff]
      %v1486 = vld [vmem:[%s5 + $0x18] sm:$0xff]
      %v1487 = vld [vmem:[%s5 + $0x20] sm:$0xff]
      %v1488 = vld [vmem:[%s5 + $0x28] sm:$0xff]
      %v1489 = vld [vmem:[%s5 + $0x30] sm:$0xff]
      %v1490 = vld [vmem:[%s5 + $0x38] sm:$0xff]
      %v1491 = vld [vmem:[%s5 + $0x40] sm:$0xff]
      %v1492 = vld [vmem:[%s5 + $0x48] sm:$0xff]
      %v1493 = vld [vmem:[%s5 + $0x50] sm:$0xff]
      %v1494 = vld [vmem:[%s5 + $0x58] sm:$0xff]
      %v1495 = vld [vmem:[%s5 + $0x60] sm:$0xff]
      %v1496 = vld [vmem:[%s5 + $0x68] sm:$0xff]
      %v1497 = vld [vmem:[%s5 + $0x70] sm:$0xff]
      %v1498 = vld [vmem:[%s5 + $0x78] sm:$0xff]
      %v1499 = vxor.u32 %v914, 2147483648
      %v1500 = vxor.u32 %v916, 2147483648
      %v1501 = vxor.u32 %v920, 2147483648
      %v1502 = vxor.u32 %v922, 2147483648
      %v1503 = vxor.u32 %v926, 2147483648
      %v1504 = vxor.u32 %v928, 2147483648
      %v1505 = vxor.u32 %v932, 2147483648
      %v1506 = vxor.u32 %v934, 2147483648
      %v1507 = vmul.f32 %v1499, 1.442695
      %v1508 = vpow.pop %v1507
      %v1509 = vmul.f32 %v1500, 1.442695
      %v1510 = vpow.pop %v1509
      %v1511 = vmul.f32 %v1501, 1.442695
      %v1512 = vpow.pop %v1511
      %v1513 = vmul.f32 %v1502, 1.442695
      %v1514 = vpow.pop %v1513
      %v1515 = vmul.f32 %v1503, 1.442695
      %v1516 = vpow.pop %v1515
      %v1517 = vmul.f32 %v1504, 1.442695
      %v1518 = vpow.pop %v1517
      %v1519 = vmul.f32 %v1505, 1.442695
      %v1520 = vpow.pop %v1519
      %v1521 = vmul.f32 %v1506, 1.442695
      %v1522 = vpow.pop %v1521
      %v1523 = vadd.f32 %v1508, 1.0
      %v1524 = vadd.f32 %v1510, 1.0
      %v1525 = vadd.f32 %v1512, 1.0
      %v1526 = vadd.f32 %v1514, 1.0
      %v1527 = vadd.f32 %v1516, 1.0
      %v1528 = vadd.f32 %v1518, 1.0
      %v1529 = vadd.f32 %v1520, 1.0
      %v1530 = vadd.f32 %v1522, 1.0
      %v1531 = vrcp.pop %v1523
      %v1532 = vmul.f32 1.0, %v1531
      %v1533 = vrcp.pop %v1524
      %v1534 = vmul.f32 1.0, %v1533
      %v1535 = vrcp.pop %v1525
      %v1536 = vmul.f32 1.0, %v1535
      %v1537 = vrcp.pop %v1526
      %v1538 = vmul.f32 1.0, %v1537
      %v1539 = vrcp.pop %v1527
      %v1540 = vmul.f32 1.0, %v1539
      %v1541 = vrcp.pop %v1528
      %v1542 = vmul.f32 1.0, %v1541
      %v1543 = vrcp.pop %v1529
      %v1544 = vmul.f32 1.0, %v1543
      %v1545 = vrcp.pop %v1530
      %v1546 = vmul.f32 1.0, %v1545
      %v1547 = vtanh.pop %v954
      %v1548 = vtanh.pop %v956
      %v1549 = vtanh.pop %v960
      %v1550 = vtanh.pop %v962
      %v1551 = vtanh.pop %v966
      %v1552 = vtanh.pop %v968
      %v1553 = vtanh.pop %v972
      %v1554 = vtanh.pop %v974
      %v1555 = vxor.u32 %v978, 2147483648
      %v1556 = vxor.u32 %v980, 2147483648
      %v1557 = vxor.u32 %v984, 2147483648
      %v1558 = vxor.u32 %v986, 2147483648
      %v1559 = vxor.u32 %v990, 2147483648
      %v1560 = vxor.u32 %v992, 2147483648
      %v1561 = vxor.u32 %v996, 2147483648
      %v1562 = vxor.u32 %v998, 2147483648
      %v1563 = vmul.f32 %v1555, 1.442695
      %v1564 = vpow.pop %v1563
      %v1565 = vmul.f32 %v1556, 1.442695
      %v1566 = vpow.pop %v1565
      %v1567 = vmul.f32 %v1557, 1.442695
      %v1568 = vpow.pop %v1567
      %v1569 = vmul.f32 %v1558, 1.442695
      %v1570 = vpow.pop %v1569
      %v1571 = vmul.f32 %v1559, 1.442695
      %v1572 = vpow.pop %v1571
      %v1573 = vmul.f32 %v1560, 1.442695
      %v1574 = vpow.pop %v1573
      %v1575 = vmul.f32 %v1561, 1.442695
      %v1576 = vpow.pop %v1575
      %v1577 = vmul.f32 %v1562, 1.442695
      %v1578 = vpow.pop %v1577
      %v1579 = vadd.f32 %v1564, 1.0
      %v1580 = vadd.f32 %v1566, 1.0
      %v1581 = vadd.f32 %v1568, 1.0
      %v1582 = vadd.f32 %v1570, 1.0
      %v1583 = vadd.f32 %v1572, 1.0
      %v1584 = vadd.f32 %v1574, 1.0
      %v1585 = vadd.f32 %v1576, 1.0
      %v1586 = vadd.f32 %v1578, 1.0
      %v1587 = vrcp.pop %v1579
      %v1588 = vmul.f32 1.0, %v1587
      %v1589 = vrcp.pop %v1580
      %v1590 = vmul.f32 1.0, %v1589
      %v1591 = vrcp.pop %v1581
      %v1592 = vmul.f32 1.0, %v1591
      %v1593 = vrcp.pop %v1582
      %v1594 = vmul.f32 1.0, %v1593
      %v1595 = vrcp.pop %v1583
      %v1596 = vmul.f32 1.0, %v1595
      %v1597 = vrcp.pop %v1584
      %v1598 = vmul.f32 1.0, %v1597
      %v1599 = vrcp.pop %v1585
      %v1600 = vmul.f32 1.0, %v1599
      %v1601 = vrcp.pop %v1586
      %v1602 = vmul.f32 1.0, %v1601
      %v1603 = vmul.f32 %v1532, %v1547
      %v1604 = vmul.f32 %v1534, %v1548
      %v1605 = vmul.f32 %v1536, %v1549
      %v1606 = vmul.f32 %v1538, %v1550
      %v1607 = vmul.f32 %v1540, %v1551
      %v1608 = vmul.f32 %v1542, %v1552
      %v1609 = vmul.f32 %v1544, %v1553
      %v1610 = vmul.f32 %v1546, %v1554
      %v1611 = vtanh.pop %v1603
      %v1612 = vtanh.pop %v1604
      %v1613 = vtanh.pop %v1605
      %v1614 = vtanh.pop %v1606
      %v1615 = vtanh.pop %v1607
      %v1616 = vtanh.pop %v1608
      %v1617 = vtanh.pop %v1609
      %v1618 = vtanh.pop %v1610
      %v1619 = vmul.f32 %v1588, %v1611
      %v1620 = vmul.f32 %v1590, %v1612
      %v1621 = vmul.f32 %v1592, %v1613
      %v1622 = vmul.f32 %v1594, %v1614
      %v1623 = vmul.f32 %v1596, %v1615
      %v1624 = vmul.f32 %v1598, %v1616
      %v1625 = vmul.f32 %v1600, %v1617
      %v1626 = vmul.f32 %v1602, %v1618
      %vm1627 = vcmask 261120
      %v1629 = vsel %vm1627, %v1483, 0
      %v1632 = vsel %vm1627, %v1484, 0
      %v1635 = vsel %vm1627, %v1485, 0
      %v1638 = vsel %vm1627, %v1486, 0
      %v1641 = vsel %vm1627, %v1487, 0
      %v1644 = vsel %vm1627, %v1488, 0
      %v1647 = vsel %vm1627, %v1489, 0
      %v1650 = vsel %vm1627, %v1490, 0
      %v1653 = vsel %vm1627, %v1491, 0
      %v1656 = vsel %vm1627, %v1492, 0
      %v1659 = vsel %vm1627, %v1493, 0
      %v1662 = vsel %vm1627, %v1494, 0
      %v1665 = vsel %vm1627, %v1495, 0
      %v1668 = vsel %vm1627, %v1496, 0
      %v1671 = vsel %vm1627, %v1497, 0
      %v1674 = vsel %vm1627, %v1498, 0
      %1676 = vmatprep.subr.mxu0 %v1620
      %1677 = vmatpush1.msra.mxu0 %v1619
      %1678 = vmatprep.subr.mxu0 %v1622
      %1679 = vmatpush1.msra.mxu0 %v1621
      %1680 = vmatprep.subr.mxu0 %v1624
      %1681 = vmatpush1.msra.mxu0 %v1623
      %1682 = vmatprep.subr.mxu0 %v1626
      %1683 = vmatpush1.msra.mxu0 %v1625
      %1684 = vmatprep.subr.mxu0 0.0
      %1685 = vmatpush1.msra.mxu0 0.0
      %1686 = vmatprep.subr.mxu0 0.0
      %1687 = vmatpush1.msra.mxu0 0.0
      %1688 = vmatprep.subr.mxu0 0.0
      %1689 = vmatpush1.msra.mxu0 0.0
      %1690 = vmatprep.subr.mxu0 0.0
      %1691 = vmatpush1.msra.mxu0 0.0
      %1692 = vmatprep.subr.mxu0 0.0
      %1693 = vmatpush1.msra.mxu0 0.0
      %1694 = vmatprep.subr.mxu0 0.0
      %1695 = vmatpush1.msra.mxu0 0.0
      %1696 = vmatprep.subr.mxu0 0.0
      %1697 = vmatpush1.msra.mxu0 0.0
      %1698 = vmatprep.subr.mxu0 0.0
      %1699 = vmatpush1.msra.mxu0 0.0
      %1700 = vmatprep.subr.mxu0 0.0
      %1701 = vmatpush1.msra.mxu0 0.0
      %1702 = vmatprep.subr.mxu0 0.0
      %1703 = vmatpush1.msra.mxu0 0.0
      %1704 = vmatprep.subr.mxu0 0.0
      %1705 = vmatpush1.msra.mxu0 0.0
      %1706 = vmatprep.subr.mxu0 0.0
      %1707 = vmatpush1.msra.mxu0 0.0
      %1708 = vmatprep.subr.mxu0 0.0
      %1709 = vmatpush1.msra.mxu0 0.0
      %1710 = vmatprep.subr.mxu0 0.0
      %1711 = vmatpush1.msra.mxu0 0.0
      %1712 = vmatprep.subr.mxu0 0.0
      %1713 = vmatpush1.msra.mxu0 0.0
      %1714 = vmatprep.subr.mxu0 0.0
      %1715 = vmatpush1.msra.mxu0 0.0
      %1716 = vmatprep.subr.mxu0 0.0
      %1717 = vmatpush1.msra.mxu0 0.0
      %1718 = vmatprep.subr.mxu0 0.0
      %1719 = vmatpush1.msra.mxu0 0.0
      %1720 = vmatprep.subr.mxu0 0.0
      %1721 = vmatpush1.msra.mxu0 0.0
      %1722 = vmatprep.subr.mxu0 0.0
      %1723 = vmatpush1.msra.mxu0 0.0
      %1724 = vmatprep.subr.mxu0 0.0
      %1725 = vmatpush1.msra.mxu0 0.0
      %1726 = vmatprep.subr.mxu0 0.0
      %1727 = vmatpush1.msra.mxu0 0.0
      %1728 = vmatprep.subr.mxu0 0.0
      %1729 = vmatpush1.msra.mxu0 0.0
      %1730 = vmatprep.subr.mxu0 0.0
      %1731 = vmatpush1.msra.mxu0 0.0
      %1732 = vmatprep.subr.mxu0 0.0
      %1733 = vmatpush1.msra.mxu0 0.0
      %1734 = vmatprep.subr.mxu0 0.0
      %1735 = vmatpush1.msra.mxu0 0.0
      %1736 = vmatprep.subr.mxu0 0.0
      %1737 = vmatpush1.msra.mxu0 0.0
      %1738 = vmatprep.subr.mxu0 0.0
      %1739 = vmatpush1.msra.mxu0 0.0
      %1740 = vmatprep.mubr.f32.mxu0 0.0
      %1741 = vmatmul.mubr.f32.gmra.mrb[0].mxu0 %v1629
      %v1742 = vpop.f32.mrb[0].mxu0
      %v1743 = vadd.f32 0.0, %v1742
      %v1744 = vpop.f32.mrb[0].mxu0
      %v1745 = vadd.f32 0.0, %v1744
      %1746 = vmatprep.mubr.f32.mxu0 0.0
      %1747 = vmatmul.mubr.f32.gmra.mrb[0].mxu0 %v1632
      %v1748 = vpop.f32.mrb[0].mxu0
      %v1749 = vadd.f32 0.0, %v1748
      %v1750 = vpop.f32.mrb[0].mxu0
      %v1751 = vadd.f32 0.0, %v1750
      %1752 = vmatprep.mubr.f32.mxu0 0.0
      %1753 = vmatmul.mubr.f32.gmra.mrb[0].mxu0 %v1635
      %v1754 = vpop.f32.mrb[0].mxu0
      %v1755 = vadd.f32 0.0, %v1754
      %v1756 = vpop.f32.mrb[0].mxu0
      %v1757 = vadd.f32 0.0, %v1756
      %1758 = vmatprep.mubr.f32.mxu0 0.0
      %1759 = vmatmul.mubr.f32.gmra.mrb[0].mxu0 %v1638
      %v1760 = vpop.f32.mrb[0].mxu0
      %v1761 = vadd.f32 0.0, %v1760
      %v1762 = vpop.f32.mrb[0].mxu0
      %v1763 = vadd.f32 0.0, %v1762
      %1764 = vmatprep.mubr.f32.mxu0 0.0
      %1765 = vmatmul.mubr.f32.gmra.mrb[0].mxu0 %v1641
      %v1766 = vpop.f32.mrb[0].mxu0
      %v1767 = vadd.f32 0.0, %v1766
      %v1768 = vpop.f32.mrb[0].mxu0
      %v1769 = vadd.f32 0.0, %v1768
      %1770 = vmatprep.mubr.f32.mxu0 0.0
      %1771 = vmatmul.mubr.f32.gmra.mrb[0].mxu0 %v1644
      %v1772 = vpop.f32.mrb[0].mxu0
      %v1773 = vadd.f32 0.0, %v1772
      %v1774 = vpop.f32.mrb[0].mxu0
      %v1775 = vadd.f32 0.0, %v1774
      %1776 = vmatprep.mubr.f32.mxu0 0.0
      %1777 = vmatmul.mubr.f32.gmra.mrb[0].mxu0 %v1647
      %v1778 = vpop.f32.mrb[0].mxu0
      %v1779 = vadd.f32 0.0, %v1778
      %v1780 = vpop.f32.mrb[0].mxu0
      %v1781 = vadd.f32 0.0, %v1780
      %1782 = vmatprep.mubr.f32.mxu0 0.0
      %1783 = vmatmul.mubr.f32.gmra.mrb[0].mxu0 %v1650
      %v1784 = vpop.f32.mrb[0].mxu0
      %v1785 = vadd.f32 0.0, %v1784
      %v1786 = vpop.f32.mrb[0].mxu0
      %v1787 = vadd.f32 0.0, %v1786
      %1788 = vmatprep.mubr.f32.mxu0 0.0
      %1789 = vmatmul.mubr.f32.gmra.mrb[0].mxu0 %v1653
      %v1790 = vpop.f32.mrb[0].mxu0
      %v1791 = vadd.f32 0.0, %v1790
      %v1792 = vpop.f32.mrb[0].mxu0
      %v1793 = vadd.f32 0.0, %v1792
      %1794 = vmatprep.mubr.f32.mxu0 0.0
      %1795 = vmatmul.mubr.f32.gmra.mrb[0].mxu0 %v1656
      %v1796 = vpop.f32.mrb[0].mxu0
      %v1797 = vadd.f32 0.0, %v1796
      %v1798 = vpop.f32.mrb[0].mxu0
      %v1799 = vadd.f32 0.0, %v1798
      %1800 = vmatprep.mubr.f32.mxu0 0.0
      %1801 = vmatmul.mubr.f32.gmra.mrb[0].mxu0 %v1659
      %v1802 = vpop.f32.mrb[0].mxu0
      %v1803 = vadd.f32 0.0, %v1802
      %v1804 = vpop.f32.mrb[0].mxu0
      %v1805 = vadd.f32 0.0, %v1804
      %1806 = vmatprep.mubr.f32.mxu0 0.0
      %1807 = vmatmul.mubr.f32.gmra.mrb[0].mxu0 %v1662
      %v1808 = vpop.f32.mrb[0].mxu0
      %v1809 = vadd.f32 0.0, %v1808
      %v1810 = vpop.f32.mrb[0].mxu0
      %v1811 = vadd.f32 0.0, %v1810
      %1812 = vmatprep.mubr.f32.mxu0 0.0
      %1813 = vmatmul.mubr.f32.gmra.mrb[0].mxu0 %v1665
      %v1814 = vpop.f32.mrb[0].mxu0
      %v1815 = vadd.f32 0.0, %v1814
      %v1816 = vpop.f32.mrb[0].mxu0
      %v1817 = vadd.f32 0.0, %v1816
      %1818 = vmatprep.mubr.f32.mxu0 0.0
      %1819 = vmatmul.mubr.f32.gmra.mrb[0].mxu0 %v1668
      %v1820 = vpop.f32.mrb[0].mxu0
      %v1821 = vadd.f32 0.0, %v1820
      %v1822 = vpop.f32.mrb[0].mxu0
      %v1823 = vadd.f32 0.0, %v1822
      %1824 = vmatprep.mubr.f32.mxu0 0.0
      %1825 = vmatmul.mubr.f32.gmra.mrb[0].mxu0 %v1671
      %v1826 = vpop.f32.mrb[0].mxu0
      %v1827 = vadd.f32 0.0, %v1826
      %v1828 = vpop.f32.mrb[0].mxu0
      %v1829 = vadd.f32 0.0, %v1828
      %1830 = vmatprep.mubr.f32.mxu0 0.0
      %1831 = vmatmul.mubr.f32.gmra.mrb[0].mxu0 %v1674
      %v1832 = vpop.f32.mrb[0].mxu0
      %v1833 = vadd.f32 0.0, %v1832
      %v1834 = vpop.f32.mrb[0].mxu0
      %v1835 = vadd.f32 0.0, %v1834
      %1836 = vdwg.mxu0
      %v1837 = vadd.f32 %v1067, %v1743
      %v1838 = vadd.f32 %v1069, %v1745
      %v1839 = vadd.f32 %v1073, %v1749
      %v1840 = vadd.f32 %v1075, %v1751
      %v1841 = vadd.f32 %v1079, %v1755
      %v1842 = vadd.f32 %v1081, %v1757
      %v1843 = vadd.f32 %v1085, %v1761
      %v1844 = vadd.f32 %v1087, %v1763
      %v1845 = vadd.f32 %v1091, %v1767
      %v1846 = vadd.f32 %v1093, %v1769
      %v1847 = vadd.f32 %v1097, %v1773
      %v1848 = vadd.f32 %v1099, %v1775
      %v1849 = vadd.f32 %v1103, %v1779
      %v1850 = vadd.f32 %v1105, %v1781
      %v1851 = vadd.f32 %v1109, %v1785
      %v1852 = vadd.f32 %v1111, %v1787
      %v1853 = vadd.f32 %v1115, %v1791
      %v1854 = vadd.f32 %v1117, %v1793
      %v1855 = vadd.f32 %v1121, %v1797
      %v1856 = vadd.f32 %v1123, %v1799
      %v1857 = vadd.f32 %v1127, %v1803
      %v1858 = vadd.f32 %v1129, %v1805
      %v1859 = vadd.f32 %v1133, %v1809
      %v1860 = vadd.f32 %v1135, %v1811
      %v1861 = vadd.f32 %v1139, %v1815
      %v1862 = vadd.f32 %v1141, %v1817
      %v1863 = vadd.f32 %v1145, %v1821
      %v1864 = vadd.f32 %v1147, %v1823
      %v1865 = vadd.f32 %v1151, %v1827
      %v1866 = vadd.f32 %v1153, %v1829
      %v1867 = vadd.f32 %v1157, %v1833
      %v1868 = vadd.f32 %v1159, %v1835
      %v1869 = vxor.u32 %v1837, 2147483648
      %v1870 = vxor.u32 %v1838, 2147483648
      %v1871 = vxor.u32 %v1839, 2147483648
      %v1872 = vxor.u32 %v1840, 2147483648
      %v1873 = vxor.u32 %v1841, 2147483648
      %v1874 = vxor.u32 %v1842, 2147483648
      %v1875 = vxor.u32 %v1843, 2147483648
      %v1876 = vxor.u32 %v1844, 2147483648
      %v1877 = vmul.f32 %v1869, 1.442695
      %v1878 = vpow.pop %v1877
      %v1879 = vmul.f32 %v1870, 1.442695
      %v1880 = vpow.pop %v1879
      %v1881 = vmul.f32 %v1871, 1.442695
      %v1882 = vpow.pop %v1881
      %v1883 = vmul.f32 %v1872, 1.442695
      %v1884 = vpow.pop %v1883
      %v1885 = vmul.f32 %v1873, 1.442695
      %v1886 = vpow.pop %v1885
      %v1887 = vmul.f32 %v1874, 1.442695
      %v1888 = vpow.pop %v1887
      %v1889 = vmul.f32 %v1875, 1.442695
      %v1890 = vpow.pop %v1889
      %v1891 = vmul.f32 %v1876, 1.442695
      %v1892 = vpow.pop %v1891
      %v1893 = vadd.f32 %v1878, 1.0
      %v1894 = vadd.f32 %v1880, 1.0
      %v1895 = vadd.f32 %v1882, 1.0
      %v1896 = vadd.f32 %v1884, 1.0
      %v1897 = vadd.f32 %v1886, 1.0
      %v1898 = vadd.f32 %v1888, 1.0
      %v1899 = vadd.f32 %v1890, 1.0
      %v1900 = vadd.f32 %v1892, 1.0
      %v1901 = vrcp.pop %v1893
      %v1902 = vmul.f32 1.0, %v1901
      %v1903 = vrcp.pop %v1894
      %v1904 = vmul.f32 1.0, %v1903
      %v1905 = vrcp.pop %v1895
      %v1906 = vmul.f32 1.0, %v1905
      %v1907 = vrcp.pop %v1896
      %v1908 = vmul.f32 1.0, %v1907
      %v1909 = vrcp.pop %v1897
      %v1910 = vmul.f32 1.0, %v1909
      %v1911 = vrcp.pop %v1898
      %v1912 = vmul.f32 1.0, %v1911
      %v1913 = vrcp.pop %v1899
      %v1914 = vmul.f32 1.0, %v1913
      %v1915 = vrcp.pop %v1900
      %v1916 = vmul.f32 1.0, %v1915
      %v1917 = vtanh.pop %v1853
      %v1918 = vtanh.pop %v1854
      %v1919 = vtanh.pop %v1855
      %v1920 = vtanh.pop %v1856
      %v1921 = vtanh.pop %v1857
      %v1922 = vtanh.pop %v1858
      %v1923 = vtanh.pop %v1859
      %v1924 = vtanh.pop %v1860
      %v1925 = vxor.u32 %v1861, 2147483648
      %v1926 = vxor.u32 %v1862, 2147483648
      %v1927 = vxor.u32 %v1863, 2147483648
      %v1928 = vxor.u32 %v1864, 2147483648
      %v1929 = vxor.u32 %v1865, 2147483648
      %v1930 = vxor.u32 %v1866, 2147483648
      %v1931 = vxor.u32 %v1867, 2147483648
      %v1932 = vxor.u32 %v1868, 2147483648
      %v1933 = vmul.f32 %v1925, 1.442695
      %v1934 = vpow.pop %v1933
      %v1935 = vmul.f32 %v1926, 1.442695
      %v1936 = vpow.pop %v1935
      %v1937 = vmul.f32 %v1927, 1.442695
      %v1938 = vpow.pop %v1937
      %v1939 = vmul.f32 %v1928, 1.442695
      %v1940 = vpow.pop %v1939
      %v1941 = vmul.f32 %v1929, 1.442695
      %v1942 = vpow.pop %v1941
      %v1943 = vmul.f32 %v1930, 1.442695
      %v1944 = vpow.pop %v1943
      %v1945 = vmul.f32 %v1931, 1.442695
      %v1946 = vpow.pop %v1945
      %v1947 = vmul.f32 %v1932, 1.442695
      %v1948 = vpow.pop %v1947
      %v1949 = vadd.f32 %v1934, 1.0
      %v1950 = vadd.f32 %v1936, 1.0
      %v1951 = vadd.f32 %v1938, 1.0
      %v1952 = vadd.f32 %v1940, 1.0
      %v1953 = vadd.f32 %v1942, 1.0
      %v1954 = vadd.f32 %v1944, 1.0
      %v1955 = vadd.f32 %v1946, 1.0
      %v1956 = vadd.f32 %v1948, 1.0
      %v1957 = vrcp.pop %v1949
      %v1958 = vmul.f32 1.0, %v1957
      %v1959 = vrcp.pop %v1950
      %v1960 = vmul.f32 1.0, %v1959
      %v1961 = vrcp.pop %v1951
      %v1962 = vmul.f32 1.0, %v1961
      %v1963 = vrcp.pop %v1952
      %v1964 = vmul.f32 1.0, %v1963
      %v1965 = vrcp.pop %v1953
      %v1966 = vmul.f32 1.0, %v1965
      %v1967 = vrcp.pop %v1954
      %v1968 = vmul.f32 1.0, %v1967
      %v1969 = vrcp.pop %v1955
      %v1970 = vmul.f32 1.0, %v1969
      %v1971 = vrcp.pop %v1956
      %v1972 = vmul.f32 1.0, %v1971
      %v1973 = vxor.u32 %v1845, 2147483648
      %v1974 = vxor.u32 %v1846, 2147483648
      %v1975 = vxor.u32 %v1847, 2147483648
      %v1976 = vxor.u32 %v1848, 2147483648
      %v1977 = vxor.u32 %v1849, 2147483648
      %v1978 = vxor.u32 %v1850, 2147483648
      %v1979 = vxor.u32 %v1851, 2147483648
      %v1980 = vxor.u32 %v1852, 2147483648
      %v1981 = vmul.f32 %v1973, 1.442695
      %v1982 = vpow.pop %v1981
      %v1983 = vmul.f32 %v1974, 1.442695
      %v1984 = vpow.pop %v1983
      %v1985 = vmul.f32 %v1975, 1.442695
      %v1986 = vpow.pop %v1985
      %v1987 = vmul.f32 %v1976, 1.442695
      %v1988 = vpow.pop %v1987
      %v1989 = vmul.f32 %v1977, 1.442695
      %v1990 = vpow.pop %v1989
      %v1991 = vmul.f32 %v1978, 1.442695
      %v1992 = vpow.pop %v1991
      %v1993 = vmul.f32 %v1979, 1.442695
      %v1994 = vpow.pop %v1993
      %v1995 = vmul.f32 %v1980, 1.442695
      %v1996 = vpow.pop %v1995
      %v1997 = vadd.f32 %v1982, 1.0
      %v1998 = vadd.f32 %v1984, 1.0
      %v1999 = vadd.f32 %v1986, 1.0
      %v2000 = vadd.f32 %v1988, 1.0
      %v2001 = vadd.f32 %v1990, 1.0
      %v2002 = vadd.f32 %v1992, 1.0
      %v2003 = vadd.f32 %v1994, 1.0
      %v2004 = vadd.f32 %v1996, 1.0
      %v2005 = vrcp.pop %v1997
      %v2006 = vmul.f32 1.0, %v2005
      %v2007 = vrcp.pop %v1998
      %v2008 = vmul.f32 1.0, %v2007
      %v2009 = vrcp.pop %v1999
      %v2010 = vmul.f32 1.0, %v2009
      %v2011 = vrcp.pop %v2000
      %v2012 = vmul.f32 1.0, %v2011
      %v2013 = vrcp.pop %v2001
      %v2014 = vmul.f32 1.0, %v2013
      %v2015 = vrcp.pop %v2002
      %v2016 = vmul.f32 1.0, %v2015
      %v2017 = vrcp.pop %v2003
      %v2018 = vmul.f32 1.0, %v2017
      %v2019 = vrcp.pop %v2004
      %v2020 = vmul.f32 1.0, %v2019
      %v2021 = vmul.f32 %v2006, %v1603
      %v2022 = vmul.f32 %v2008, %v1604
      %v2023 = vmul.f32 %v2010, %v1605
      %v2024 = vmul.f32 %v2012, %v1606
      %v2025 = vmul.f32 %v2014, %v1607
      %v2026 = vmul.f32 %v2016, %v1608
      %v2027 = vmul.f32 %v2018, %v1609
      %v2028 = vmul.f32 %v2020, %v1610
      %v2029 = vmul.f32 %v1902, %v1917
      %v2030 = vmul.f32 %v1904, %v1918
      %v2031 = vmul.f32 %v1906, %v1919
      %v2032 = vmul.f32 %v1908, %v1920
      %v2033 = vmul.f32 %v1910, %v1921
      %v2034 = vmul.f32 %v1912, %v1922
      %v2035 = vmul.f32 %v1914, %v1923
      %v2036 = vmul.f32 %v1916, %v1924
      %v2037 = vadd.f32 %v2021, %v2029
      %v2038 = vadd.f32 %v2022, %v2030
      %v2039 = vadd.f32 %v2023, %v2031
      %v2040 = vadd.f32 %v2024, %v2032
      %v2041 = vadd.f32 %v2025, %v2033
      %v2042 = vadd.f32 %v2026, %v2034
      %v2043 = vadd.f32 %v2027, %v2035
      %v2044 = vadd.f32 %v2028, %v2036
      %v2045 = vtanh.pop %v2037
      %v2046 = vtanh.pop %v2038
      %v2047 = vtanh.pop %v2039
      %v2048 = vtanh.pop %v2040
      %v2049 = vtanh.pop %v2041
      %v2050 = vtanh.pop %v2042
      %v2051 = vtanh.pop %v2043
      %v2052 = vtanh.pop %v2044
      %v2053 = vmul.f32 %v1958, %v2045
      %v2054 = vmul.f32 %v1960, %v2046
      %v2055 = vmul.f32 %v1962, %v2047
      %v2056 = vmul.f32 %v1964, %v2048
      %v2057 = vmul.f32 %v1966, %v2049
      %v2058 = vmul.f32 %v1968, %v2050
      %v2059 = vmul.f32 %v1970, %v2051
      %v2060 = vmul.f32 %v1972, %v2052
      %2061 = vmatprep.subr.mxu0 %v2054
      %2062 = vmatpush1.msra.mxu0 %v2053
      %2063 = vmatprep.subr.mxu0 %v2056
      %2064 = vmatpush1.msra.mxu0 %v2055
      %2065 = vmatprep.subr.mxu0 %v2058
      %2066 = vmatpush1.msra.mxu0 %v2057
      %2067 = vmatprep.subr.mxu0 %v2060
      %2068 = vmatpush1.msra.mxu0 %v2059
      %2069 = vmatprep.subr.mxu0 0.0
      %2070 = vmatpush1.msra.mxu0 0.0
      %2071 = vmatprep.subr.mxu0 0.0
      %2072 = vmatpush1.msra.mxu0 0.0
      %2073 = vmatprep.subr.mxu0 0.0
      %2074 = vmatpush1.msra.mxu0 0.0
      %2075 = vmatprep.subr.mxu0 0.0
      %2076 = vmatpush1.msra.mxu0 0.0
      %2077 = vmatprep.subr.mxu0 0.0
      %2078 = vmatpush1.msra.mxu0 0.0
      %2079 = vmatprep.subr.mxu0 0.0
      %2080 = vmatpush1.msra.mxu0 0.0
      %2081 = vmatprep.subr.mxu0 0.0
      %2082 = vmatpush1.msra.mxu0 0.0
      %2083 = vmatprep.subr.mxu0 0.0
      %2084 = vmatpush1.msra.mxu0 0.0
      %2085 = vmatprep.subr.mxu0 0.0
      %2086 = vmatpush1.msra.mxu0 0.0
      %2087 = vmatprep.subr.mxu0 0.0
      %2088 = vmatpush1.msra.mxu0 0.0
      %2089 = vmatprep.subr.mxu0 0.0
      %2090 = vmatpush1.msra.mxu0 0.0
      %2091 = vmatprep.subr.mxu0 0.0
      %2092 = vmatpush1.msra.mxu0 0.0
      %2093 = vmatprep.subr.mxu0 0.0
      %2094 = vmatpush1.msra.mxu0 0.0
      %2095 = vmatprep.subr.mxu0 0.0
      %2096 = vmatpush1.msra.mxu0 0.0
      %2097 = vmatprep.subr.mxu0 0.0
      %2098 = vmatpush1.msra.mxu0 0.0
      %2099 = vmatprep.subr.mxu0 0.0
      %2100 = vmatpush1.msra.mxu0 0.0
      %2101 = vmatprep.subr.mxu0 0.0
      %2102 = vmatpush1.msra.mxu0 0.0
      %2103 = vmatprep.subr.mxu0 0.0
      %2104 = vmatpush1.msra.mxu0 0.0
      %2105 = vmatprep.subr.mxu0 0.0
      %2106 = vmatpush1.msra.mxu0 0.0
      %2107 = vmatprep.subr.mxu0 0.0
      %2108 = vmatpush1.msra.mxu0 0.0
      %2109 = vmatprep.subr.mxu0 0.0
      %2110 = vmatpush1.msra.mxu0 0.0
      %2111 = vmatprep.subr.mxu0 0.0
      %2112 = vmatpush1.msra.mxu0 0.0
      %2113 = vmatprep.subr.mxu0 0.0
      %2114 = vmatpush1.msra.mxu0 0.0
      %2115 = vmatprep.subr.mxu0 0.0
      %2116 = vmatpush1.msra.mxu0 0.0
      %2117 = vmatprep.subr.mxu0 0.0
      %2118 = vmatpush1.msra.mxu0 0.0
      %2119 = vmatprep.subr.mxu0 0.0
      %2120 = vmatpush1.msra.mxu0 0.0
      %2121 = vmatprep.subr.mxu0 0.0
      %2122 = vmatpush1.msra.mxu0 0.0
      %2123 = vmatprep.subr.mxu0 0.0
      %2124 = vmatpush1.msra.mxu0 0.0
      %2125 = vmatprep.mubr.f32.mxu0 0.0
      %2126 = vmatmul.mubr.f32.gmra.mrb[0].mxu0 %v1629
      %v2127 = vpop.f32.mrb[0].mxu0
      %v2128 = vadd.f32 0.0, %v2127
      %v2129 = vpop.f32.mrb[0].mxu0
      %v2130 = vadd.f32 0.0, %v2129
      %2131 = vmatprep.mubr.f32.mxu0 0.0
      %2132 = vmatmul.mubr.f32.gmra.mrb[0].mxu0 %v1632
      %v2133 = vpop.f32.mrb[0].mxu0
      %v2134 = vadd.f32 0.0, %v2133
      %v2135 = vpop.f32.mrb[0].mxu0
      %v2136 = vadd.f32 0.0, %v2135
      %2137 = vmatprep.mubr.f32.mxu0 0.0
      %2138 = vmatmul.mubr.f32.gmra.mrb[0].mxu0 %v1635
      %v2139 = vpop.f32.mrb[0].mxu0
      %v2140 = vadd.f32 0.0, %v2139
      %v2141 = vpop.f32.mrb[0].mxu0
      %v2142 = vadd.f32 0.0, %v2141
      %2143 = vmatprep.mubr.f32.mxu0 0.0
      %2144 = vmatmul.mubr.f32.gmra.mrb[0].mxu0 %v1638
      %v2145 = vpop.f32.mrb[0].mxu0
      %v2146 = vadd.f32 0.0, %v2145
      %v2147 = vpop.f32.mrb[0].mxu0
      %v2148 = vadd.f32 0.0, %v2147
      %2149 = vmatprep.mubr.f32.mxu0 0.0
      %2150 = vmatmul.mubr.f32.gmra.mrb[0].mxu0 %v1641
      %v2151 = vpop.f32.mrb[0].mxu0
      %v2152 = vadd.f32 0.0, %v2151
      %v2153 = vpop.f32.mrb[0].mxu0
      %v2154 = vadd.f32 0.0, %v2153
      %2155 = vmatprep.mubr.f32.mxu0 0.0
      %2156 = vmatmul.mubr.f32.gmra.mrb[0].mxu0 %v1644
      %v2157 = vpop.f32.mrb[0].mxu0
      %v2158 = vadd.f32 0.0, %v2157
      %v2159 = vpop.f32.mrb[0].mxu0
      %v2160 = vadd.f32 0.0, %v2159
      %2161 = vmatprep.mubr.f32.mxu0 0.0
      %2162 = vmatmul.mubr.f32.gmra.mrb[0].mxu0 %v1647
      %v2163 = vpop.f32.mrb[0].mxu0
      %v2164 = vadd.f32 0.0, %v2163
      %v2165 = vpop.f32.mrb[0].mxu0
      %v2166 = vadd.f32 0.0, %v2165
      %2167 = vmatprep.mubr.f32.mxu0 0.0
      %2168 = vmatmul.mubr.f32.gmra.mrb[0].mxu0 %v1650
      %v2169 = vpop.f32.mrb[0].mxu0
      %v2170 = vadd.f32 0.0, %v2169
      %v2171 = vpop.f32.mrb[0].mxu0
      %v2172 = vadd.f32 0.0, %v2171
      %2173 = vmatprep.mubr.f32.mxu0 0.0
      %2174 = vmatmul.mubr.f32.gmra.mrb[0].mxu0 %v1653
      %v2175 = vpop.f32.mrb[0].mxu0
      %v2176 = vadd.f32 0.0, %v2175
      %v2177 = vpop.f32.mrb[0].mxu0
      %v2178 = vadd.f32 0.0, %v2177
      %2179 = vmatprep.mubr.f32.mxu0 0.0
      %2180 = vmatmul.mubr.f32.gmra.mrb[0].mxu0 %v1656
      %v2181 = vpop.f32.mrb[0].mxu0
      %v2182 = vadd.f32 0.0, %v2181
      %v2183 = vpop.f32.mrb[0].mxu0
      %v2184 = vadd.f32 0.0, %v2183
      %2185 = vmatprep.mubr.f32.mxu0 0.0
      %2186 = vmatmul.mubr.f32.gmra.mrb[0].mxu0 %v1659
      %v2187 = vpop.f32.mrb[0].mxu0
      %v2188 = vadd.f32 0.0, %v2187
      %v2189 = vpop.f32.mrb[0].mxu0
      %v2190 = vadd.f32 0.0, %v2189
      %2191 = vmatprep.mubr.f32.mxu0 0.0
      %2192 = vmatmul.mubr.f32.gmra.mrb[0].mxu0 %v1662
      %v2193 = vpop.f32.mrb[0].mxu0
      %v2194 = vadd.f32 0.0, %v2193
      %v2195 = vpop.f32.mrb[0].mxu0
      %v2196 = vadd.f32 0.0, %v2195
      %2197 = vmatprep.mubr.f32.mxu0 0.0
      %2198 = vmatmul.mubr.f32.gmra.mrb[0].mxu0 %v1665
      %v2199 = vpop.f32.mrb[0].mxu0
      %v2200 = vadd.f32 0.0, %v2199
      %v2201 = vpop.f32.mrb[0].mxu0
      %v2202 = vadd.f32 0.0, %v2201
      %2203 = vmatprep.mubr.f32.mxu0 0.0
      %2204 = vmatmul.mubr.f32.gmra.mrb[0].mxu0 %v1668
      %v2205 = vpop.f32.mrb[0].mxu0
      %v2206 = vadd.f32 0.0, %v2205
      %v2207 = vpop.f32.mrb[0].mxu0
      %v2208 = vadd.f32 0.0, %v2207
      %2209 = vmatprep.mubr.f32.mxu0 0.0
      %2210 = vmatmul.mubr.f32.gmra.mrb[0].mxu0 %v1671
      %v2211 = vpop.f32.mrb[0].mxu0
      %v2212 = vadd.f32 0.0, %v2211
      %v2213 = vpop.f32.mrb[0].mxu0
      %v2214 = vadd.f32 0.0, %v2213
      %2215 = vmatprep.mubr.f32.mxu0 0.0
      %2216 = vmatmul.mubr.f32.gmra.mrb[0].mxu0 %v1674
      %v2217 = vpop.f32.mrb[0].mxu0
      %v2218 = vadd.f32 0.0, %v2217
      %v2219 = vpop.f32.mrb[0].mxu0
      %v2220 = vadd.f32 0.0, %v2219
      %2221 = vdwg.mxu0
      %v2222 = vadd.f32 %v1228, %v2128
      %v2223 = vadd.f32 %v1230, %v2130
      %v2224 = vadd.f32 %v1234, %v2134
      %v2225 = vadd.f32 %v1236, %v2136
      %v2226 = vadd.f32 %v1240, %v2140
      %v2227 = vadd.f32 %v1242, %v2142
      %v2228 = vadd.f32 %v1246, %v2146
      %v2229 = vadd.f32 %v1248, %v2148
      %v2230 = vadd.f32 %v1252, %v2152
      %v2231 = vadd.f32 %v1254, %v2154
      %v2232 = vadd.f32 %v1258, %v2158
      %v2233 = vadd.f32 %v1260, %v2160
      %v2234 = vadd.f32 %v1264, %v2164
      %v2235 = vadd.f32 %v1266, %v2166
      %v2236 = vadd.f32 %v1270, %v2170
      %v2237 = vadd.f32 %v1272, %v2172
      %v2238 = vadd.f32 %v1276, %v2176
      %v2239 = vadd.f32 %v1278, %v2178
      %v2240 = vadd.f32 %v1282, %v2182
      %v2241 = vadd.f32 %v1284, %v2184
      %v2242 = vadd.f32 %v1288, %v2188
      %v2243 = vadd.f32 %v1290, %v2190
      %v2244 = vadd.f32 %v1294, %v2194
      %v2245 = vadd.f32 %v1296, %v2196
      %v2246 = vadd.f32 %v1300, %v2200
      %v2247 = vadd.f32 %v1302, %v2202
      %v2248 = vadd.f32 %v1306, %v2206
      %v2249 = vadd.f32 %v1308, %v2208
      %v2250 = vadd.f32 %v1312, %v2212
      %v2251 = vadd.f32 %v1314, %v2214
      %v2252 = vadd.f32 %v1318, %v2218
      %v2253 = vadd.f32 %v1320, %v2220
      %v2254 = vxor.u32 %v2222, 2147483648
      %v2255 = vxor.u32 %v2223, 2147483648
      %v2256 = vxor.u32 %v2224, 2147483648
      %v2257 = vxor.u32 %v2225, 2147483648
      %v2258 = vxor.u32 %v2226, 2147483648
      %v2259 = vxor.u32 %v2227, 2147483648
      %v2260 = vxor.u32 %v2228, 2147483648
      %v2261 = vxor.u32 %v2229, 2147483648
      %v2262 = vmul.f32 %v2254, 1.442695
      %v2263 = vpow.pop %v2262
      %v2264 = vmul.f32 %v2255, 1.442695
      %v2265 = vpow.pop %v2264
      %v2266 = vmul.f32 %v2256, 1.442695
      %v2267 = vpow.pop %v2266
      %v2268 = vmul.f32 %v2257, 1.442695
      %v2269 = vpow.pop %v2268
      %v2270 = vmul.f32 %v2258, 1.442695
      %v2271 = vpow.pop %v2270
      %v2272 = vmul.f32 %v2259, 1.442695
      %v2273 = vpow.pop %v2272
      %v2274 = vmul.f32 %v2260, 1.442695
      %v2275 = vpow.pop %v2274
      %v2276 = vmul.f32 %v2261, 1.442695
      %v2277 = vpow.pop %v2276
      %v2278 = vadd.f32 %v2263, 1.0
      %v2279 = vadd.f32 %v2265, 1.0
      %v2280 = vadd.f32 %v2267, 1.0
      %v2281 = vadd.f32 %v2269, 1.0
      %v2282 = vadd.f32 %v2271, 1.0
      %v2283 = vadd.f32 %v2273, 1.0
      %v2284 = vadd.f32 %v2275, 1.0
      %v2285 = vadd.f32 %v2277, 1.0
      %v2286 = vrcp.pop %v2278
      %v2287 = vmul.f32 1.0, %v2286
      %v2288 = vrcp.pop %v2279
      %v2289 = vmul.f32 1.0, %v2288
      %v2290 = vrcp.pop %v2280
      %v2291 = vmul.f32 1.0, %v2290
      %v2292 = vrcp.pop %v2281
      %v2293 = vmul.f32 1.0, %v2292
      %v2294 = vrcp.pop %v2282
      %v2295 = vmul.f32 1.0, %v2294
      %v2296 = vrcp.pop %v2283
      %v2297 = vmul.f32 1.0, %v2296
      %v2298 = vrcp.pop %v2284
      %v2299 = vmul.f32 1.0, %v2298
      %v2300 = vrcp.pop %v2285
      %v2301 = vmul.f32 1.0, %v2300
      %v2302 = vtanh.pop %v2238
      %v2303 = vtanh.pop %v2239
      %v2304 = vtanh.pop %v2240
      %v2305 = vtanh.pop %v2241
      %v2306 = vtanh.pop %v2242
      %v2307 = vtanh.pop %v2243
      %v2308 = vtanh.pop %v2244
      %v2309 = vtanh.pop %v2245
      %v2310 = vxor.u32 %v2246, 2147483648
      %v2311 = vxor.u32 %v2247, 2147483648
      %v2312 = vxor.u32 %v2248, 2147483648
      %v2313 = vxor.u32 %v2249, 2147483648
      %v2314 = vxor.u32 %v2250, 2147483648
      %v2315 = vxor.u32 %v2251, 2147483648
      %v2316 = vxor.u32 %v2252, 2147483648
      %v2317 = vxor.u32 %v2253, 2147483648
      %v2318 = vmul.f32 %v2310, 1.442695
      %v2319 = vpow.pop %v2318
      %v2320 = vmul.f32 %v2311, 1.442695
      %v2321 = vpow.pop %v2320
      %v2322 = vmul.f32 %v2312, 1.442695
      %v2323 = vpow.pop %v2322
      %v2324 = vmul.f32 %v2313, 1.442695
      %v2325 = vpow.pop %v2324
      %v2326 = vmul.f32 %v2314, 1.442695
      %v2327 = vpow.pop %v2326
      %v2328 = vmul.f32 %v2315, 1.442695
      %v2329 = vpow.pop %v2328
      %v2330 = vmul.f32 %v2316, 1.442695
      %v2331 = vpow.pop %v2330
      %v2332 = vmul.f32 %v2317, 1.442695
      %v2333 = vpow.pop %v2332
      %v2334 = vadd.f32 %v2319, 1.0
      %v2335 = vadd.f32 %v2321, 1.0
      %v2336 = vadd.f32 %v2323, 1.0
      %v2337 = vadd.f32 %v2325, 1.0
      %v2338 = vadd.f32 %v2327, 1.0
      %v2339 = vadd.f32 %v2329, 1.0
      %v2340 = vadd.f32 %v2331, 1.0
      %v2341 = vadd.f32 %v2333, 1.0
      %v2342 = vrcp.pop %v2334
      %v2343 = vmul.f32 1.0, %v2342
      %v2344 = vrcp.pop %v2335
      %v2345 = vmul.f32 1.0, %v2344
      %v2346 = vrcp.pop %v2336
      %v2347 = vmul.f32 1.0, %v2346
      %v2348 = vrcp.pop %v2337
      %v2349 = vmul.f32 1.0, %v2348
      %v2350 = vrcp.pop %v2338
      %v2351 = vmul.f32 1.0, %v2350
      %v2352 = vrcp.pop %v2339
      %v2353 = vmul.f32 1.0, %v2352
      %v2354 = vrcp.pop %v2340
      %v2355 = vmul.f32 1.0, %v2354
      %v2356 = vrcp.pop %v2341
      %v2357 = vmul.f32 1.0, %v2356
      %v2358 = vxor.u32 %v2230, 2147483648
      %v2359 = vxor.u32 %v2231, 2147483648
      %v2360 = vxor.u32 %v2232, 2147483648
      %v2361 = vxor.u32 %v2233, 2147483648
      %v2362 = vxor.u32 %v2234, 2147483648
      %v2363 = vxor.u32 %v2235, 2147483648
      %v2364 = vxor.u32 %v2236, 2147483648
      %v2365 = vxor.u32 %v2237, 2147483648
      %v2366 = vmul.f32 %v2358, 1.442695
      %v2367 = vpow.pop %v2366
      %v2368 = vmul.f32 %v2359, 1.442695
      %v2369 = vpow.pop %v2368
      %v2370 = vmul.f32 %v2360, 1.442695
      %v2371 = vpow.pop %v2370
      %v2372 = vmul.f32 %v2361, 1.442695
      %v2373 = vpow.pop %v2372
      %v2374 = vmul.f32 %v2362, 1.442695
      %v2375 = vpow.pop %v2374
      %v2376 = vmul.f32 %v2363, 1.442695
      %v2377 = vpow.pop %v2376
      %v2378 = vmul.f32 %v2364, 1.442695
      %v2379 = vpow.pop %v2378
      %v2380 = vmul.f32 %v2365, 1.442695
      %v2381 = vpow.pop %v2380
      %v2382 = vadd.f32 %v2367, 1.0
      %v2383 = vadd.f32 %v2369, 1.0
      %v2384 = vadd.f32 %v2371, 1.0
      %v2385 = vadd.f32 %v2373, 1.0
      %v2386 = vadd.f32 %v2375, 1.0
      %v2387 = vadd.f32 %v2377, 1.0
      %v2388 = vadd.f32 %v2379, 1.0
      %v2389 = vadd.f32 %v2381, 1.0
      %v2390 = vrcp.pop %v2382
      %v2391 = vmul.f32 1.0, %v2390
      %v2392 = vrcp.pop %v2383
      %v2393 = vmul.f32 1.0, %v2392
      %v2394 = vrcp.pop %v2384
      %v2395 = vmul.f32 1.0, %v2394
      %v2396 = vrcp.pop %v2385
      %v2397 = vmul.f32 1.0, %v2396
      %v2398 = vrcp.pop %v2386
      %v2399 = vmul.f32 1.0, %v2398
      %v2400 = vrcp.pop %v2387
      %v2401 = vmul.f32 1.0, %v2400
      %v2402 = vrcp.pop %v2388
      %v2403 = vmul.f32 1.0, %v2402
      %v2404 = vrcp.pop %v2389
      %v2405 = vmul.f32 1.0, %v2404
      %v2406 = vmul.f32 %v2391, %v2037
      %v2407 = vmul.f32 %v2393, %v2038
      %v2408 = vmul.f32 %v2395, %v2039
      %v2409 = vmul.f32 %v2397, %v2040
      %v2410 = vmul.f32 %v2399, %v2041
      %v2411 = vmul.f32 %v2401, %v2042
      %v2412 = vmul.f32 %v2403, %v2043
      %v2413 = vmul.f32 %v2405, %v2044
      %v2414 = vmul.f32 %v2287, %v2302
      %v2415 = vmul.f32 %v2289, %v2303
      %v2416 = vmul.f32 %v2291, %v2304
      %v2417 = vmul.f32 %v2293, %v2305
      %v2418 = vmul.f32 %v2295, %v2306
      %v2419 = vmul.f32 %v2297, %v2307
      %v2420 = vmul.f32 %v2299, %v2308
      %v2421 = vmul.f32 %v2301, %v2309
      %v2422 = vadd.f32 %v2406, %v2414
      %v2423 = vadd.f32 %v2407, %v2415
      %v2424 = vadd.f32 %v2408, %v2416
      %v2425 = vadd.f32 %v2409, %v2417
      %v2426 = vadd.f32 %v2410, %v2418
      %v2427 = vadd.f32 %v2411, %v2419
      %v2428 = vadd.f32 %v2412, %v2420
      %v2429 = vadd.f32 %v2413, %v2421
      %v2430 = vtanh.pop %v2422
      %v2431 = vtanh.pop %v2423
      %v2432 = vtanh.pop %v2424
      %v2433 = vtanh.pop %v2425
      %v2434 = vtanh.pop %v2426
      %v2435 = vtanh.pop %v2427
      %v2436 = vtanh.pop %v2428
      %v2437 = vtanh.pop %v2429
      %v2438 = vmul.f32 %v2343, %v2430
      %v2439 = vmul.f32 %v2345, %v2431
      %v2440 = vmul.f32 %v2347, %v2432
      %v2441 = vmul.f32 %v2349, %v2433
      %v2442 = vmul.f32 %v2351, %v2434
      %v2443 = vmul.f32 %v2353, %v2435
      %v2444 = vmul.f32 %v2355, %v2436
      %v2445 = vmul.f32 %v2357, %v2437
      %2446 = vmatprep.subr.mxu0 %v2439
      %2447 = vmatpush1.msra.mxu0 %v2438
      %2448 = vmatprep.subr.mxu0 %v2441
      %2449 = vmatpush1.msra.mxu0 %v2440
      %2450 = vmatprep.subr.mxu0 %v2443
      %2451 = vmatpush1.msra.mxu0 %v2442
      %2452 = vmatprep.subr.mxu0 %v2445
      %2453 = vmatpush1.msra.mxu0 %v2444
      %2454 = vmatprep.subr.mxu0 0.0
      %2455 = vmatpush1.msra.mxu0 0.0
      %2456 = vmatprep.subr.mxu0 0.0
      %2457 = vmatpush1.msra.mxu0 0.0
      %2458 = vmatprep.subr.mxu0 0.0
      %2459 = vmatpush1.msra.mxu0 0.0
      %2460 = vmatprep.subr.mxu0 0.0
      %2461 = vmatpush1.msra.mxu0 0.0
      %2462 = vmatprep.subr.mxu0 0.0
      %2463 = vmatpush1.msra.mxu0 0.0
      %2464 = vmatprep.subr.mxu0 0.0
      %2465 = vmatpush1.msra.mxu0 0.0
      %2466 = vmatprep.subr.mxu0 0.0
      %2467 = vmatpush1.msra.mxu0 0.0
      %2468 = vmatprep.subr.mxu0 0.0
      %2469 = vmatpush1.msra.mxu0 0.0
      %2470 = vmatprep.subr.mxu0 0.0
      %2471 = vmatpush1.msra.mxu0 0.0
      %2472 = vmatprep.subr.mxu0 0.0
      %2473 = vmatpush1.msra.mxu0 0.0
      %2474 = vmatprep.subr.mxu0 0.0
      %2475 = vmatpush1.msra.mxu0 0.0
      %2476 = vmatprep.subr.mxu0 0.0
      %2477 = vmatpush1.msra.mxu0 0.0
      %2478 = vmatprep.subr.mxu0 0.0
      %2479 = vmatpush1.msra.mxu0 0.0
      %2480 = vmatprep.subr.mxu0 0.0
      %2481 = vmatpush1.msra.mxu0 0.0
      %2482 = vmatprep.subr.mxu0 0.0
      %2483 = vmatpush1.msra.mxu0 0.0
      %2484 = vmatprep.subr.mxu0 0.0
      %2485 = vmatpush1.msra.mxu0 0.0
      %2486 = vmatprep.subr.mxu0 0.0
      %2487 = vmatpush1.msra.mxu0 0.0
      %2488 = vmatprep.subr.mxu0 0.0
      %2489 = vmatpush1.msra.mxu0 0.0
      %2490 = vmatprep.subr.mxu0 0.0
      %2491 = vmatpush1.msra.mxu0 0.0
      %2492 = vmatprep.subr.mxu0 0.0
      %2493 = vmatpush1.msra.mxu0 0.0
      %2494 = vmatprep.subr.mxu0 0.0
      %2495 = vmatpush1.msra.mxu0 0.0
      %2496 = vmatprep.subr.mxu0 0.0
      %2497 = vmatpush1.msra.mxu0 0.0
      %2498 = vmatprep.subr.mxu0 0.0
      %2499 = vmatpush1.msra.mxu0 0.0
      %2500 = vmatprep.subr.mxu0 0.0
      %2501 = vmatpush1.msra.mxu0 0.0
      %2502 = vmatprep.subr.mxu0 0.0
      %2503 = vmatpush1.msra.mxu0 0.0
      %2504 = vmatprep.subr.mxu0 0.0
      %2505 = vmatpush1.msra.mxu0 0.0
      %2506 = vmatprep.subr.mxu0 0.0
      %2507 = vmatpush1.msra.mxu0 0.0
      %2508 = vmatprep.subr.mxu0 0.0
      %2509 = vmatpush1.msra.mxu0 0.0
      %2510 = vmatprep.mubr.f32.mxu0 0.0
      %2511 = vmatmul.mubr.f32.gmra.mrb[0].mxu0 %v1629
      %v2512 = vpop.f32.mrb[0].mxu0
      %v2513 = vadd.f32 0.0, %v2512
      %v2514 = vpop.f32.mrb[0].mxu0
      %v2515 = vadd.f32 0.0, %v2514
      %2516 = vmatprep.mubr.f32.mxu0 0.0
      %2517 = vmatmul.mubr.f32.gmra.mrb[0].mxu0 %v1632
      %v2518 = vpop.f32.mrb[0].mxu0
      %v2519 = vadd.f32 0.0, %v2518
      %v2520 = vpop.f32.mrb[0].mxu0
      %v2521 = vadd.f32 0.0, %v2520
      %2522 = vmatprep.mubr.f32.mxu0 0.0
      %2523 = vmatmul.mubr.f32.gmra.mrb[0].mxu0 %v1635
      %v2524 = vpop.f32.mrb[0].mxu0
      %v2525 = vadd.f32 0.0, %v2524
      %v2526 = vpop.f32.mrb[0].mxu0
      %v2527 = vadd.f32 0.0, %v2526
      %2528 = vmatprep.mubr.f32.mxu0 0.0
      %2529 = vmatmul.mubr.f32.gmra.mrb[0].mxu0 %v1638
      %v2530 = vpop.f32.mrb[0].mxu0
      %v2531 = vadd.f32 0.0, %v2530
      %v2532 = vpop.f32.mrb[0].mxu0
      %v2533 = vadd.f32 0.0, %v2532
      %2534 = vmatprep.mubr.f32.mxu0 0.0
      %2535 = vmatmul.mubr.f32.gmra.mrb[0].mxu0 %v1641
      %v2536 = vpop.f32.mrb[0].mxu0
      %v2537 = vadd.f32 0.0, %v2536
      %v2538 = vpop.f32.mrb[0].mxu0
      %v2539 = vadd.f32 0.0, %v2538
      %2540 = vmatprep.mubr.f32.mxu0 0.0
      %2541 = vmatmul.mubr.f32.gmra.mrb[0].mxu0 %v1644
      %v2542 = vpop.f32.mrb[0].mxu0
      %v2543 = vadd.f32 0.0, %v2542
      %v2544 = vpop.f32.mrb[0].mxu0
      %v2545 = vadd.f32 0.0, %v2544
      %2546 = vmatprep.mubr.f32.mxu0 0.0
      %2547 = vmatmul.mubr.f32.gmra.mrb[0].mxu0 %v1647
      %v2548 = vpop.f32.mrb[0].mxu0
      %v2549 = vadd.f32 0.0, %v2548
      %v2550 = vpop.f32.mrb[0].mxu0
      %v2551 = vadd.f32 0.0, %v2550
      %2552 = vmatprep.mubr.f32.mxu0 0.0
      %2553 = vmatmul.mubr.f32.gmra.mrb[0].mxu0 %v1650
      %v2554 = vpop.f32.mrb[0].mxu0
      %v2555 = vadd.f32 0.0, %v2554
      %v2556 = vpop.f32.mrb[0].mxu0
      %v2557 = vadd.f32 0.0, %v2556
      %2558 = vmatprep.mubr.f32.mxu0 0.0
      %2559 = vmatmul.mubr.f32.gmra.mrb[0].mxu0 %v1653
      %v2560 = vpop.f32.mrb[0].mxu0
      %v2561 = vadd.f32 0.0, %v2560
      %v2562 = vpop.f32.mrb[0].mxu0
      %v2563 = vadd.f32 0.0, %v2562
      %2564 = vmatprep.mubr.f32.mxu0 0.0
      %2565 = vmatmul.mubr.f32.gmra.mrb[0].mxu0 %v1656
      %v2566 = vpop.f32.mrb[0].mxu0
      %v2567 = vadd.f32 0.0, %v2566
      %v2568 = vpop.f32.mrb[0].mxu0
      %v2569 = vadd.f32 0.0, %v2568
      %2570 = vmatprep.mubr.f32.mxu0 0.0
      %2571 = vmatmul.mubr.f32.gmra.mrb[0].mxu0 %v1659
      %v2572 = vpop.f32.mrb[0].mxu0
      %v2573 = vadd.f32 0.0, %v2572
      %v2574 = vpop.f32.mrb[0].mxu0
      %v2575 = vadd.f32 0.0, %v2574
      %2576 = vmatprep.mubr.f32.mxu0 0.0
      %2577 = vmatmul.mubr.f32.gmra.mrb[0].mxu0 %v1662
      %v2578 = vpop.f32.mrb[0].mxu0
      %v2579 = vadd.f32 0.0, %v2578
      %v2580 = vpop.f32.mrb[0].mxu0
      %v2581 = vadd.f32 0.0, %v2580
      %2582 = vmatprep.mubr.f32.mxu0 0.0
      %2583 = vmatmul.mubr.f32.gmra.mrb[0].mxu0 %v1665
      %v2584 = vpop.f32.mrb[0].mxu0
      %v2585 = vadd.f32 0.0, %v2584
      %v2586 = vpop.f32.mrb[0].mxu0
      %v2587 = vadd.f32 0.0, %v2586
      %2588 = vmatprep.mubr.f32.mxu0 0.0
      %2589 = vmatmul.mubr.f32.gmra.mrb[0].mxu0 %v1668
      %v2590 = vpop.f32.mrb[0].mxu0
      %v2591 = vadd.f32 0.0, %v2590
      %v2592 = vpop.f32.mrb[0].mxu0
      %v2593 = vadd.f32 0.0, %v2592
      %2594 = vmatprep.mubr.f32.mxu0 0.0
      %2595 = vmatmul.mubr.f32.gmra.mrb[0].mxu0 %v1671
      %v2596 = vpop.f32.mrb[0].mxu0
      %v2597 = vadd.f32 0.0, %v2596
      %v2598 = vpop.f32.mrb[0].mxu0
      %v2599 = vadd.f32 0.0, %v2598
      %2600 = vmatprep.mubr.f32.mxu0 0.0
      %2601 = vmatmul.mubr.f32.gmra.mrb[0].mxu0 %v1674
      %v2602 = vpop.f32.mrb[0].mxu0
      %v2603 = vadd.f32 0.0, %v2602
      %v2604 = vpop.f32.mrb[0].mxu0
      %v2605 = vadd.f32 0.0, %v2604
      %2606 = vdwg.mxu0
      %v2607 = vadd.f32 %v1389, %v2513
      %v2608 = vadd.f32 %v1391, %v2515
      %v2609 = vadd.f32 %v1395, %v2519
      %v2610 = vadd.f32 %v1397, %v2521
      %v2611 = vadd.f32 %v1401, %v2525
      %v2612 = vadd.f32 %v1403, %v2527
      %v2613 = vadd.f32 %v1407, %v2531
      %v2614 = vadd.f32 %v1409, %v2533
      %v2615 = vadd.f32 %v1413, %v2537
      %v2616 = vadd.f32 %v1415, %v2539
      %v2617 = vadd.f32 %v1419, %v2543
      %v2618 = vadd.f32 %v1421, %v2545
      %v2619 = vadd.f32 %v1425, %v2549
      %v2620 = vadd.f32 %v1427, %v2551
      %v2621 = vadd.f32 %v1431, %v2555
      %v2622 = vadd.f32 %v1433, %v2557
      %v2623 = vadd.f32 %v1437, %v2561
      %v2624 = vadd.f32 %v1439, %v2563
      %v2625 = vadd.f32 %v1443, %v2567
      %v2626 = vadd.f32 %v1445, %v2569
      %v2627 = vadd.f32 %v1449, %v2573
      %v2628 = vadd.f32 %v1451, %v2575
      %v2629 = vadd.f32 %v1455, %v2579
      %v2630 = vadd.f32 %v1457, %v2581
      %v2631 = vadd.f32 %v1461, %v2585
      %v2632 = vadd.f32 %v1463, %v2587
      %v2633 = vadd.f32 %v1467, %v2591
      %v2634 = vadd.f32 %v1469, %v2593
      %v2635 = vadd.f32 %v1473, %v2597
      %v2636 = vadd.f32 %v1475, %v2599
      %v2637 = vadd.f32 %v1479, %v2603
      %v2638 = vadd.f32 %v1481, %v2605
      %v2639 = vxor.u32 %v2607, 2147483648
      %v2640 = vxor.u32 %v2608, 2147483648
      %v2641 = vxor.u32 %v2609, 2147483648
      %v2642 = vxor.u32 %v2610, 2147483648
      %v2643 = vxor.u32 %v2611, 2147483648
      %v2644 = vxor.u32 %v2612, 2147483648
      %v2645 = vxor.u32 %v2613, 2147483648
      %v2646 = vxor.u32 %v2614, 2147483648
      %v2647 = vmul.f32 %v2639, 1.442695
      %v2648 = vpow.pop %v2647
      %v2649 = vmul.f32 %v2640, 1.442695
      %v2650 = vpow.pop %v2649
      %v2651 = vmul.f32 %v2641, 1.442695
      %v2652 = vpow.pop %v2651
      %v2653 = vmul.f32 %v2642, 1.442695
      %v2654 = vpow.pop %v2653
      %v2655 = vmul.f32 %v2643, 1.442695
      %v2656 = vpow.pop %v2655
      %v2657 = vmul.f32 %v2644, 1.442695
      %v2658 = vpow.pop %v2657
      %v2659 = vmul.f32 %v2645, 1.442695
      %v2660 = vpow.pop %v2659
      %v2661 = vmul.f32 %v2646, 1.442695
      %v2662 = vpow.pop %v2661
      %v2663 = vadd.f32 %v2648, 1.0
      %v2664 = vadd.f32 %v2650, 1.0
      %v2665 = vadd.f32 %v2652, 1.0
      %v2666 = vadd.f32 %v2654, 1.0
      %v2667 = vadd.f32 %v2656, 1.0
      %v2668 = vadd.f32 %v2658, 1.0
      %v2669 = vadd.f32 %v2660, 1.0
      %v2670 = vadd.f32 %v2662, 1.0
      %v2671 = vrcp.pop %v2663
      %v2672 = vmul.f32 1.0, %v2671
      %v2673 = vrcp.pop %v2664
      %v2674 = vmul.f32 1.0, %v2673
      %v2675 = vrcp.pop %v2665
      %v2676 = vmul.f32 1.0, %v2675
      %v2677 = vrcp.pop %v2666
      %v2678 = vmul.f32 1.0, %v2677
      %v2679 = vrcp.pop %v2667
      %v2680 = vmul.f32 1.0, %v2679
      %v2681 = vrcp.pop %v2668
      %v2682 = vmul.f32 1.0, %v2681
      %v2683 = vrcp.pop %v2669
      %v2684 = vmul.f32 1.0, %v2683
      %v2685 = vrcp.pop %v2670
      %v2686 = vmul.f32 1.0, %v2685
      %v2687 = vtanh.pop %v2623
      %v2688 = vtanh.pop %v2624
      %v2689 = vtanh.pop %v2625
      %v2690 = vtanh.pop %v2626
      %v2691 = vtanh.pop %v2627
      %v2692 = vtanh.pop %v2628
      %v2693 = vtanh.pop %v2629
      %v2694 = vtanh.pop %v2630
      %v2695 = vxor.u32 %v2631, 2147483648
      %v2696 = vxor.u32 %v2632, 2147483648
      %v2697 = vxor.u32 %v2633, 2147483648
      %v2698 = vxor.u32 %v2634, 2147483648
      %v2699 = vxor.u32 %v2635, 2147483648
      %v2700 = vxor.u32 %v2636, 2147483648
      %v2701 = vxor.u32 %v2637, 2147483648
      %v2702 = vxor.u32 %v2638, 2147483648
      %v2703 = vmul.f32 %v2695, 1.442695
      %v2704 = vpow.pop %v2703
      %v2705 = vmul.f32 %v2696, 1.442695
      %v2706 = vpow.pop %v2705
      %v2707 = vmul.f32 %v2697, 1.442695
      %v2708 = vpow.pop %v2707
      %v2709 = vmul.f32 %v2698, 1.442695
      %v2710 = vpow.pop %v2709
      %v2711 = vmul.f32 %v2699, 1.442695
      %v2712 = vpow.pop %v2711
      %v2713 = vmul.f32 %v2700, 1.442695
      %v2714 = vpow.pop %v2713
      %v2715 = vmul.f32 %v2701, 1.442695
      %v2716 = vpow.pop %v2715
      %v2717 = vmul.f32 %v2702, 1.442695
      %v2718 = vpow.pop %v2717
      %v2719 = vadd.f32 %v2704, 1.0
      %v2720 = vadd.f32 %v2706, 1.0
      %v2721 = vadd.f32 %v2708, 1.0
      %v2722 = vadd.f32 %v2710, 1.0
      %v2723 = vadd.f32 %v2712, 1.0
      %v2724 = vadd.f32 %v2714, 1.0
      %v2725 = vadd.f32 %v2716, 1.0
      %v2726 = vadd.f32 %v2718, 1.0
      %v2727 = vrcp.pop %v2719
      %v2728 = vmul.f32 1.0, %v2727
      %v2729 = vrcp.pop %v2720
      %v2730 = vmul.f32 1.0, %v2729
      %v2731 = vrcp.pop %v2721
      %v2732 = vmul.f32 1.0, %v2731
      %v2733 = vrcp.pop %v2722
      %v2734 = vmul.f32 1.0, %v2733
      %v2735 = vrcp.pop %v2723
      %v2736 = vmul.f32 1.0, %v2735
      %v2737 = vrcp.pop %v2724
      %v2738 = vmul.f32 1.0, %v2737
      %v2739 = vrcp.pop %v2725
      %v2740 = vmul.f32 1.0, %v2739
      %v2741 = vrcp.pop %v2726
      %v2742 = vmul.f32 1.0, %v2741
      %v2743 = vxor.u32 %v2615, 2147483648
      %v2744 = vxor.u32 %v2616, 2147483648
      %v2745 = vxor.u32 %v2617, 2147483648
      %v2746 = vxor.u32 %v2618, 2147483648
      %v2747 = vxor.u32 %v2619, 2147483648
      %v2748 = vxor.u32 %v2620, 2147483648
      %v2749 = vxor.u32 %v2621, 2147483648
      %v2750 = vxor.u32 %v2622, 2147483648
      %v2751 = vmul.f32 %v2743, 1.442695
      %v2752 = vpow.pop %v2751
      %v2753 = vmul.f32 %v2744, 1.442695
      %v2754 = vpow.pop %v2753
      %v2755 = vmul.f32 %v2745, 1.442695
      %v2756 = vpow.pop %v2755
      %v2757 = vmul.f32 %v2746, 1.442695
      %v2758 = vpow.pop %v2757
      %v2759 = vmul.f32 %v2747, 1.442695
      %v2760 = vpow.pop %v2759
      %v2761 = vmul.f32 %v2748, 1.442695
      %v2762 = vpow.pop %v2761
      %v2763 = vmul.f32 %v2749, 1.442695
      %v2764 = vpow.pop %v2763
      %v2765 = vmul.f32 %v2750, 1.442695
      %v2766 = vpow.pop %v2765
      %v2767 = vadd.f32 %v2752, 1.0
      %v2768 = vadd.f32 %v2754, 1.0
      %v2769 = vadd.f32 %v2756, 1.0
      %v2770 = vadd.f32 %v2758, 1.0
      %v2771 = vadd.f32 %v2760, 1.0
      %v2772 = vadd.f32 %v2762, 1.0
      %v2773 = vadd.f32 %v2764, 1.0
      %v2774 = vadd.f32 %v2766, 1.0
      %v2775 = vrcp.pop %v2767
      %v2776 = vmul.f32 1.0, %v2775
      %v2777 = vrcp.pop %v2768
      %v2778 = vmul.f32 1.0, %v2777
      %v2779 = vrcp.pop %v2769
      %v2780 = vmul.f32 1.0, %v2779
      %v2781 = vrcp.pop %v2770
      %v2782 = vmul.f32 1.0, %v2781
      %v2783 = vrcp.pop %v2771
      %v2784 = vmul.f32 1.0, %v2783
      %v2785 = vrcp.pop %v2772
      %v2786 = vmul.f32 1.0, %v2785
      %v2787 = vrcp.pop %v2773
      %v2788 = vmul.f32 1.0, %v2787
      %v2789 = vrcp.pop %v2774
      %v2790 = vmul.f32 1.0, %v2789
      %v2791 = vmul.f32 %v2776, %v2422
      %v2792 = vmul.f32 %v2778, %v2423
      %v2793 = vmul.f32 %v2780, %v2424
      %v2794 = vmul.f32 %v2782, %v2425
      %v2795 = vmul.f32 %v2784, %v2426
      %v2796 = vmul.f32 %v2786, %v2427
      %v2797 = vmul.f32 %v2788, %v2428
      %v2798 = vmul.f32 %v2790, %v2429
      %v2799 = vmul.f32 %v2672, %v2687
      %v2800 = vmul.f32 %v2674, %v2688
      %v2801 = vmul.f32 %v2676, %v2689
      %v2802 = vmul.f32 %v2678, %v2690
      %v2803 = vmul.f32 %v2680, %v2691
      %v2804 = vmul.f32 %v2682, %v2692
      %v2805 = vmul.f32 %v2684, %v2693
      %v2806 = vmul.f32 %v2686, %v2694
      %v2807 = vadd.f32 %v2791, %v2799
      %v2808 = vadd.f32 %v2792, %v2800
      %v2809 = vadd.f32 %v2793, %v2801
      %v2810 = vadd.f32 %v2794, %v2802
      %v2811 = vadd.f32 %v2795, %v2803
      %v2812 = vadd.f32 %v2796, %v2804
      %v2813 = vadd.f32 %v2797, %v2805
      %v2814 = vadd.f32 %v2798, %v2806
      %v2815 = vtanh.pop %v2807
      %v2816 = vtanh.pop %v2808
      %v2817 = vtanh.pop %v2809
      %v2818 = vtanh.pop %v2810
      %v2819 = vtanh.pop %v2811
      %v2820 = vtanh.pop %v2812
      %v2821 = vtanh.pop %v2813
      %v2822 = vtanh.pop %v2814
      %v2823 = vmul.f32 %v2728, %v2815
      %v2824 = vmul.f32 %v2730, %v2816
      %v2825 = vmul.f32 %v2732, %v2817
      %v2826 = vmul.f32 %v2734, %v2818
      %v2827 = vmul.f32 %v2736, %v2819
      %v2828 = vmul.f32 %v2738, %v2820
      %v2829 = vmul.f32 %v2740, %v2821
      %v2830 = vmul.f32 %v2742, %v2822
      %v2831 = vld [vmem:[%s7] sm:$0xff]
      %v2832 = vld [vmem:[%s7 + $0x8] sm:$0xff]
      %v2833 = vld [vmem:[%s7 + $0x10] sm:$0xff]
      %v2834 = vld [vmem:[%s7 + $0x18] sm:$0xff]
      %v2835 = vld [vmem:[#allocation4] sm:$0x1]
      %v2836 = vld [vmem:[%s6] sm:$0xff]
      %v2837 = vld [vmem:[%s6 + $0x8] sm:$0xff]
      %v2838 = vld [vmem:[%s6 + $0x10] sm:$0xff]
      %v2839 = vld [vmem:[%s6 + $0x18] sm:$0xff]
      %v2840 = vlaneseq
      %v2841 = vand.u32 %v2840, 127
      %s2842 = sld [smem:[#allocation3 + %s28]]
      %s2843 = ssub.s32 %s2842, 7
      %p2844 = scmp.gt.s32.totalorder %s2843, 0
      %s2845 = scalar_select %p2844, %s2843, 0
      %p2846 = scmp.lt.s32.totalorder %s2845, 7
      %s2847 = scalar_select %p2846, %s2845, 7
      %v2848 = vstv %s2847
      %vm2849 = vcmp.eq.s32.totalorder %v2841, %v2848
      %v2850 = vsel %vm2849, 1, 0
      %vm2851 = vcmp.eq.s32.totalorder %v2850, 1
      %v2852 = vsel %vm2851, %v2836, 0.0
      %v2853 = vsel %vm2851, %v2837, 0.0
      %v2854 = vsel %vm2851, %v2838, 0.0
      %v2855 = vsel %vm2851, %v2839, 0.0
      %vm2856 = vcmask 64512
      %v2857 = vsel %vm2856, %v2852, 0.0
      %2858 = vadd.xlane.f32.xlu0 %v2857
      %v2859 = vpop.xlane.xlu0 %2858
      %v2860 = vsel %vm2856, %v2853, 0.0
      %2861 = vadd.xlane.f32.xlu0 %v2860
      %v2862 = vpop.xlane.xlu0 %2861
      %v2863 = vsel %vm2856, %v2854, 0.0
      %2864 = vadd.xlane.f32.xlu0 %v2863
      %v2865 = vpop.xlane.xlu0 %2864
      %v2866 = vsel %vm2856, %v2855, 0.0
      %2867 = vadd.xlane.f32.xlu0 %v2866
      %v2868 = vpop.xlane.xlu0 %2867
      %v2869 = vadd.f32 %v2823, %v2859
      %v2870 = vadd.f32 %v2824, %v2859
      %v2871 = vadd.f32 %v2825, %v2862
      %v2872 = vadd.f32 %v2826, %v2862
      %v2873 = vadd.f32 %v2827, %v2865
      %v2874 = vadd.f32 %v2828, %v2865
      %v2875 = vadd.f32 %v2829, %v2868
      %v2876 = vadd.f32 %v2830, %v2868
      %v2877 = vadd.f32 %v2869, %v2871
      %v2878 = vadd.f32 %v2877, %v2873
      %v2879 = vadd.f32 %v2878, %v2875
      %v2880 = vrot.slane %v2879, 4
      %v2881 = vadd.f32 %v2879, %v2880
      %v2882 = vrot.slane %v2881, 2
      %v2883 = vadd.f32 %v2881, %v2882
      %v2884 = vrot.slane %v2883, 1
      %v2885 = vadd.f32 %v2883, %v2884
      %v2886 = vadd.f32 %v2870, %v2872
      %v2887 = vadd.f32 %v2886, %v2874
      %v2888 = vadd.f32 %v2887, %v2876
      %v2889 = vrot.slane %v2888, 4
      %v2890 = vadd.f32 %v2888, %v2889
      %v2891 = vrot.slane %v2890, 2
      %v2892 = vadd.f32 %v2890, %v2891
      %v2893 = vrot.slane %v2892, 1
      %v2894 = vadd.f32 %v2892, %v2893
      %v2895 = vmul.f32 %v2869, %v2869
      %v2896 = vmul.f32 %v2870, %v2870
      %v2897 = vmul.f32 %v2871, %v2871
      %v2898 = vmul.f32 %v2872, %v2872
      %v2899 = vmul.f32 %v2873, %v2873
      %v2900 = vmul.f32 %v2874, %v2874
      %v2901 = vmul.f32 %v2875, %v2875
      %v2902 = vmul.f32 %v2876, %v2876
      %v2903 = vadd.f32 %v2895, %v2897
      %v2904 = vadd.f32 %v2903, %v2899
      %v2905 = vadd.f32 %v2904, %v2901
      %v2906 = vrot.slane %v2905, 4
      %v2907 = vadd.f32 %v2905, %v2906
      %v2908 = vrot.slane %v2907, 2
      %v2909 = vadd.f32 %v2907, %v2908
      %v2910 = vrot.slane %v2909, 1
      %v2911 = vadd.f32 %v2909, %v2910
      %v2912 = vadd.f32 %v2896, %v2898
      %v2913 = vadd.f32 %v2912, %v2900
      %v2914 = vadd.f32 %v2913, %v2902
      %v2915 = vrot.slane %v2914, 4
      %v2916 = vadd.f32 %v2914, %v2915
      %v2917 = vrot.slane %v2916, 2
      %v2918 = vadd.f32 %v2916, %v2917
      %v2919 = vrot.slane %v2918, 1
      %v2920 = vadd.f32 %v2918, %v2919
      %2922 = vset.pattern.permute.xlu0 0
      %2923 = vperm.xlu0 %2922, %v2831
      %v2924 = vpop.permute.xlu0 %2923
      %2927 = vset.pattern.permute.xlu0 0
      %2928 = vperm.xlu0 %2927, %v2832
      %v2929 = vpop.permute.xlu0 %2928
      %2932 = vset.pattern.permute.xlu0 0
      %2933 = vperm.xlu0 %2932, %v2833
      %v2934 = vpop.permute.xlu0 %2933
      %2937 = vset.pattern.permute.xlu0 0
      %2938 = vperm.xlu0 %2937, %v2834
      %v2939 = vpop.permute.xlu0 %2938
      %v2941 = vmul.f32 %v2869, %v2924
      %v2942 = vmul.f32 %v2870, %v2924
      %v2943 = vmul.f32 %v2871, %v2929
      %v2944 = vmul.f32 %v2872, %v2929
      %v2945 = vmul.f32 %v2873, %v2934
      %v2946 = vmul.f32 %v2874, %v2934
      %v2947 = vmul.f32 %v2875, %v2939
      %v2948 = vmul.f32 %v2876, %v2939
      %v2949 = vadd.f32 %v2941, %v2943
      %v2950 = vadd.f32 %v2949, %v2945
      %v2951 = vadd.f32 %v2950, %v2947
      %v2952 = vrot.slane %v2951, 4
      %v2953 = vadd.f32 %v2951, %v2952
      %v2954 = vrot.slane %v2953, 2
      %v2955 = vadd.f32 %v2953, %v2954
      %v2956 = vrot.slane %v2955, 1
      %v2957 = vadd.f32 %v2955, %v2956
      %v2958 = vadd.f32 %v2942, %v2944
      %v2959 = vadd.f32 %v2958, %v2946
      %v2960 = vadd.f32 %v2959, %v2948
      %v2961 = vrot.slane %v2960, 4
      %v2962 = vadd.f32 %v2960, %v2961
      %v2963 = vrot.slane %v2962, 2
      %v2964 = vadd.f32 %v2962, %v2963
      %v2965 = vrot.slane %v2964, 1
      %v2966 = vadd.f32 %v2964, %v2965
      %v2967 = vmul.f32 %v2885, 0.03125
      %v2968 = vmul.f32 %v2894, 0.03125
      %v2969 = vmul.f32 %v2911, 0.03125
      %v2970 = vmul.f32 %v2920, 0.03125
      %v2971 = vmul.f32 %v2967, %v2967
      %v2972 = vmul.f32 %v2968, %v2968
      %v2973 = vsub.f32 %v2969, %v2971
      %v2974 = vsub.f32 %v2970, %v2972
      %v2975 = vadd.f32 %v2973, 1e-05
      %v2976 = vadd.f32 %v2974, 1e-05
      %v2977 = vrsqrt.pop %v2975
      %v2978 = vrsqrt.pop %v2976
      %v2979 = vmul.f32 %v2957, %v2977
      %v2980 = vmul.f32 %v2966, %v2978
      %2982 = vset.pattern.permute.xlu0 0
      %2983 = vperm.xlu0 %2982, %v2835
      %v2984 = vpop.permute.xlu0 %2983
      %v2986 = vlaneseq
      %v2987 = vshrl.u32 %v2986, 7
      %v2988 = vsub.s32 0, %v2987
      %v2989 = vrot.slane %v2984, %v2988
      %v2990 = vadd.f32 %v2979, %v2989
      %v2991 = vadd.f32 %v2980, %v2989
      %v2994 = vcombine.low %v2990, %v2991
      %v2996 = vunpack.c.l.s4 1966171168
      %v2997 = vunpack.c.0.s8 %v2996
      %v2998 = vlaneseq
      %v2999 = vshrl.u32 %v2998, 7
      %v3000 = vsub.s32 %v2997, %v2999
      %v3001 = vrot.slane %v2994, %v3000
      %v3003 = vunpack.c.l.s4 1966171168
      %v3004 = vunpack.c.0.s8 %v3003
      %v3005 = vlaneseq
      %v3006 = vshrl.u32 %v3005, 7
      %v3007 = vsub.s32 %v3004, %v3006
      %v3008 = vrot.slane %v3001, %v3007
      %v3010 = vlaneseq
      %vm3011 = vcmp.ge.s32.totalorder %v3010, 0
      %vm3012 = vcmp.lt.s32.totalorder %v3010, 256
      %vm3013 = vmand %vm3011, %vm3012
      %3014 = vst.msk [vmem:[%s312] sm:$0x3] %vm3013, %v3008
      %p3015 = scmp.lt.s32.totalorder %s28, 1
      %s3016 = scalar_select %p3015, %s28, 1
      %s3017 = smul.addr %s3016, 2
      %s3018 = scalar_lea.vmem %s9, %s3017
      // Predicated region
      $region53: #{model_ver1_forward.1} parent=51 // pred_check
        %p3019 = pneg %p219
      $region54: #{model_ver1_forward.1} parent=51 // pred_check_branch
        %3021 = sbr.rel (%p3019) target = $region56
      $region55: #{model_ver1_forward.1} parent=51 // pred_region
        _
      $region56: #{model_ver1_forward.1} parent=51 // pred_fallthru
        _
    $region52: #{model_ver1_forward.1} parent=5 // pred_fallthru
      _
    %p3022 = scmp.le.s32.totalorder 2, %s23
    // Predicated region
    $region57: #{model_ver1_forward.1} parent=5 // pred_check
      %p3023 = pneg %p3022
    $region58: #{model_ver1_forward.1} parent=5 // pred_check_branch
      %3025 = sbr.rel (%p3023) target = $region60
    $region59: #{model_ver1_forward.1} parent=5 // pred_region
      %s3026 = ssub.s32 %s23, 2
      // Predicated region
      $region61: #{model_ver1_forward.1} parent=59 // pred_check
        %p3027 = pneg %p225
      $region62: #{model_ver1_forward.1} parent=59 // pred_check_branch
        %3029 = sbr.rel (%p3027) target = $region64
      $region63: #{model_ver1_forward.1} parent=59 // pred_region
        %p3030 = scmp.lt.s32.totalorder %s29, 1
        %s3031 = scalar_select %p3030, %s29, 1
        %s3032 = smul.addr %s3031, 2
        %s3033 = scalar_lea.vmem %s9, %s3032
      $region64: #{model_ver1_forward.1} parent=59 // pred_fallthru
        _
    $region60: #{model_ver1_forward.1} parent=5 // pred_fallthru
      _
  $region6: #{model_ver1_forward.1} parent=0 // loop_footer
    %s27 = sadd.s32 1, %s23
  $region7: #{model_ver1_forward.1} parent=0 // loop_footer_branch
    %22 = sbr.rel target = $region3
  $region8: #{model_ver1_forward.1} parent=0 // loop_exit
    _

</llo_original>
